<compile_context>
chip_gen: v5e
topology: v5e:2x2
jax: 0.10.0
libtpu: 0.0.40
codegen_flags: <defaults>
</compile_context>

<pallas_src>
from functools import partial

import jax
import jax.numpy as jnp
from jax import lax
from jax.experimental import pallas as pl
from jax.experimental.pallas import tpu as pltpu


N_STATIC = 4
N_DYNAMIC = 8
N_RNN_HIDDEN = 32
N_RNN_LAYERS = 3
NS_LINEAR = [32, 32, 32]


# ------------------------------ fused model kernel -----------------------------

def fused_model_kernel(x_ref, xs_ref,
                       wih0_ref, whh0_ref, b0_ref,
                       wcat1_ref, b1_ref,
                       wcat2_ref, b2_ref,
                       w0h_ref, w0s_ref, lb0_ref,
                       w1_ref, lb1_ref,
                       w2_ref, lb2_ref,
                       wf_ref, bf_ref,
                       y_ref,
                       gx0_sc, hseq_sc,
                       *, seq_len, b_blk, hidden):
    """One batch block, all timesteps, whole model.

    x_ref    : (T, B_blk, D)   time-major dynamic input block
    xs_ref   : (B_blk, S)      static features for this batch block
    wih0/whh0: (D,4H)/(H,4H)   layer-0 weights, gate cols permuted to (i,f,o,g)
    b0       : (1, 4H)
    wcat1/2  : (2H, 4H)        [W_ih ; W_hh] fused for layers 1/2, permuted
    b1/b2    : (1, 4H)
    w0h/w0s  : (H,32)/(S,32)   first MLP layer split hidden/static
    w1, w2   : (32, 32); wf : (1, 32) row; biases (1, n); bf (1, 1)
    y_ref    : (T, B_blk)      lane-dense probability slab
    gx0_sc   : (T, B_blk, 4H)  hoisted layer-0 input projection
    hseq_sc  : (T, B_blk, H)   final-layer hidden sequence
    """
    T, Bb, H = seq_len, b_blk, hidden
    f32 = jnp.float32
    D = x_ref.shape[2]

    # ---- layer-0 input projection hoisted over all timesteps: one MXU pass ----
    x2 = x_ref[...].reshape(T * Bb, D)
    gx0_sc[...] = (jnp.dot(x2, wih0_ref[...], preferred_element_type=f32)
                   + b0_ref[...]).reshape(T, Bb, 4 * H)

    whh0 = whh0_ref[...]
    wcat1 = wcat1_ref[...]
    wcat2 = wcat2_ref[...]
    b1 = b1_ref[...]
    b2 = b2_ref[...]

    def cell(gates, c_prev):
        # gate columns are (i, f, o, g): one contiguous sigmoid + one tanh.
        sg = jax.nn.sigmoid(gates[:, :3 * H])
        g = jnp.tanh(gates[:, 3 * H:])
        i = sg[:, :H]
        f = sg[:, H:2 * H]
        o = sg[:, 2 * H:3 * H]
        c = f * c_prev + i * g
        h = o * jnp.tanh(c)
        return h, c

    n_wave = T + N_RNN_LAYERS - 1

    def wave(s, carry):
        # All reads come from `carry` (state after wavefront s-1), so the three
        # layer-steps below are mutually independent (issue back-to-back on MXU/EUP).
        h0, c0, h1, c1, h2, c2 = carry

        # layer 0 processes t = s
        t0 = jnp.minimum(s, T - 1)
        g0 = gx0_sc[t0] + jnp.dot(h0, whh0, preferred_element_type=f32)
        h0n, c0n = cell(g0, c0)

        # layer 1 processes t = s-1; its input is layer-0's h from wavefront s-1
        g1 = jnp.dot(jnp.concatenate([h0, h1], axis=1), wcat1,
                     preferred_element_type=f32) + b1
        h1n, c1n = cell(g1, c1)

        # layer 2 processes t = s-2; its input is layer-1's h from wavefront s-1
        g2 = jnp.dot(jnp.concatenate([h1, h2], axis=1), wcat2,
                     preferred_element_type=f32) + b2
        h2n, c2n = cell(g2, c2)

        # validity masks at the wavefront head/tail
        v0 = s < T
        v1 = jnp.logical_and(s >= 1, s <= T)
        v2 = s >= 2
        h0o = jnp.where(v0, h0n, h0)
        c0o = jnp.where(v0, c0n, c0)
        h1o = jnp.where(v1, h1n, h1)
        c1o = jnp.where(v1, c1n, c1)
        h2o = jnp.where(v2, h2n, h2)
        c2o = jnp.where(v2, c2n, c2)

        # write final-layer hidden (clamped index; bogus early writes to row 0 are
        # overwritten by the first valid write at s == 2)
        hseq_sc[jnp.maximum(s - 2, 0)] = h2o
        return (h0o, c0o, h1o, c1o, h2o, c2o)

    zeros = jnp.zeros((Bb, H), f32)
    init = (zeros, zeros, zeros, zeros, zeros, zeros)
    unroll = True if n_wave <= 32 else 8
    lax.fori_loop(0, n_wave, wave, init, unroll=unroll)

    # ------------------------------ MLP head ----------------------------------
    n0 = w0h_ref.shape[1]
    n2 = w2_ref.shape[1]
    hs2 = hseq_sc[...].reshape(T * Bb, H)

    # static contribution computed ONCE per block, broadcast over time
    s_c = jnp.dot(xs_ref[...], w0s_ref[...],
                  preferred_element_type=f32) + lb0_ref[...]          # (Bb, 32)
    a0 = jnp.dot(hs2, w0h_ref[...], preferred_element_type=f32)       # (T*Bb, 32)
    h = jnp.maximum(a0.reshape(T, Bb, n0) + s_c[None, :, :], 0.0).reshape(T * Bb, n0)
    h = jnp.maximum(jnp.dot(h, w1_ref[...],
                            preferred_element_type=f32) + lb1_ref[...], 0.0)
    h = jnp.maximum(jnp.dot(h, w2_ref[...],
                            preferred_element_type=f32) + lb2_ref[...], 0.0)

    # final Linear(32 -> 1) as multiply + lane reduction (skip the N=1 MXU pass),
    # producing a lane-dense (T, Bb) output slab directly.
    z = jnp.sum(h.reshape(T, Bb, n2) * wf_ref[...][None, :, :], axis=-1) + bf_ref[...]
    y_ref[...] = jax.nn.sigmoid(z).astype(y_ref.dtype)


# ---------------------------------- parameters ---------------------------------

def init_params(key):
    """Weights stored PRE-TRANSPOSED (in_features, out_features), PyTorch gate order."""
    params = {}
    H = N_RNN_HIDDEN
    k = 1.0 / jnp.sqrt(jnp.float32(H))
    for layer in range(N_RNN_LAYERS):
        d_in = N_DYNAMIC if layer == 0 else H
        key, k1, k2, k3, k4 = jax.random.split(key, 5)
        w_ih = jax.random.uniform(k1, (4 * H, d_in), jnp.float32, -k, k)
        w_hh = jax.random.uniform(k2, (4 * H, H), jnp.float32, -k, k)
        b_ih = jax.random.uniform(k3, (4 * H,), jnp.float32, -k, k)
        b_hh = jax.random.uniform(k4, (4 * H,), jnp.float32, -k, k)
        params[f"w_ihT_{layer}"] = w_ih.T                     # (d_in, 4H)
        params[f"w_hhT_{layer}"] = w_hh.T                     # (H, 4H)
        params[f"b_{layer}"] = (b_ih + b_hh).reshape(1, 4 * H)

    d_in = H + N_STATIC
    for i, n_out in enumerate(NS_LINEAR):
        key, k1, k2 = jax.random.split(key, 3)
        kl = 1.0 / jnp.sqrt(jnp.float32(d_in))
        w = jax.random.uniform(k1, (n_out, d_in), jnp.float32, -kl, kl)
        params[f"lin_wT_{i}"] = w.T                           # (d_in, n_out)
        params[f"lin_b_{i}"] = jax.random.uniform(
            k2, (n_out,), jnp.float32, -kl, kl).reshape(1, n_out)
        d_in = n_out

    key, k1, k2 = jax.random.split(key, 3)
    kf = 1.0 / jnp.sqrt(jnp.float32(d_in))
    params["fin_wT"] = jax.random.uniform(k1, (1, d_in), jnp.float32, -kf, kf).T  # (d_in, 1)
    params["fin_b"] = jax.random.uniform(k2, (1,), jnp.float32, -kf, kf).reshape(1, 1)
    return params


# ----------------------------------- forward -----------------------------------

@jax.jit
def baseline_forward(params, x_dynamic, x_static):
    assert N_RNN_LAYERS == 3
    B, T, D = x_dynamic.shape
    S = x_static.shape[1]
    H = N_RNN_HIDDEN

    def reorder(w):
        # PyTorch gate order (i,f,g,o) -> (i,f,o,g): sigmoid gates contiguous.
        return jnp.concatenate([w[..., :2 * H], w[..., 3 * H:], w[..., 2 * H:3 * H]],
                               axis=-1)

    wih0 = reorder(params["w_ihT_0"])                         # (D, 4H)
    whh0 = reorder(params["w_hhT_0"])                         # (H, 4H)
    b0 = reorder(params["b_0"])                               # (1, 4H)
    wcat1 = jnp.concatenate([reorder(params["w_ihT_1"]),
                             reorder(params["w_hhT_1"])], axis=0)   # (2H, 4H)
    b1 = reorder(params["b_1"])
    wcat2 = jnp.concatenate([reorder(params["w_ihT_2"]),
                             reorder(params["w_hhT_2"])], axis=0)   # (2H, 4H)
    b2 = reorder(params["b_2"])

    w0 = params["lin_wT_0"]                                   # (H + S, 32)
    w0h, w0s = w0[:H], w0[H:]
    wf_row = params["fin_wT"].T                               # (1, 32)

    # batch blocking: sublane-aligned (multiple of 8), megacore-parallel grid axis
    B_blk = min(128, ((B + 7) // 8) * 8)
    B_pad = ((B + B_blk - 1) // B_blk) * B_blk
    nb = B_pad // B_blk

    x_tm = jnp.swapaxes(x_dynamic, 0, 1)                      # (T, B, D) time-major
    x_tm = jnp.pad(x_tm, ((0, 0), (0, B_pad - B), (0, 0)))
    xs_p = jnp.pad(x_static, ((0, B_pad - B), (0, 0)))

    # VMEM budget per block (scratch + blocks + head temporaries), generation-safe cap
    rows = T * B_blk
    est = rows * 1200 + (2 << 20)
    vmem_bytes = int(min(max(2 * est, 16 << 20), 48 << 20))

    def _full(shape):
        nd = len(shape)
        return pl.BlockSpec(shape, lambda *_: (0,) * nd)

    kernel = partial(fused_model_kernel, seq_len=T, b_blk=B_blk, hidden=H)

    y_tb = pl.pallas_call(
        kernel,
        out_shape=jax.ShapeDtypeStruct((T, B_pad), jnp.float32),
        grid=(nb,),
        in_specs=[
            pl.BlockSpec((T, B_blk, D), lambda b: (0, b, 0)),   # x (time-major)
            pl.BlockSpec((B_blk, S), lambda b: (b, 0)),         # x_static (not tiled over T)
            _full(wih0.shape), _full(whh0.shape), _full(b0.shape),
            _full(wcat1.shape), _full(b1.shape),
            _full(wcat2.shape), _full(b2.shape),
            _full(w0h.shape), _full(w0s.shape), _full(params["lin_b_0"].shape),
            _full(params["lin_wT_1"].shape), _full(params["lin_b_1"].shape),
            _full(params["lin_wT_2"].shape), _full(params["lin_b_2"].shape),
            _full(wf_row.shape), _full(params["fin_b"].shape),
        ],
        out_specs=pl.BlockSpec((T, B_blk), lambda b: (0, b)),
        scratch_shapes=[
            pltpu.VMEM((T, B_blk, 4 * H), jnp.float32),        # gx0_sc
            pltpu.VMEM((T, B_blk, H), jnp.float32),            # hseq_sc
        ],
        compiler_params=pltpu.CompilerParams(
            dimension_semantics=("parallel",),
            vmem_limit_bytes=vmem_bytes),
    )(x_tm, xs_p,
      wih0, whh0, b0,
      wcat1, b1,
      wcat2, b2,
      w0h, w0s, params["lin_b_0"],
      params["lin_wT_1"], params["lin_b_1"],
      params["lin_wT_2"], params["lin_b_2"],
      wf_row, params["fin_b"])

    return jnp.transpose(y_tb[:, :B], (1, 0))[..., None]       # (B, T, 1)


# ------------------------------ pure-JAX reference -----------------------------

def ref_forward(params, x_dynamic, x_static):
    B, T, _ = x_dynamic.shape
    H = N_RNN_HIDDEN
    h_seq = x_dynamic
    for layer in range(N_RNN_LAYERS):
        w_ihT = params[f"w_ihT_{layer}"]
        w_hhT = params[f"w_hhT_{layer}"]
        b = params[f"b_{layer}"]

        def step(carry, x_t):
            h_prev, c_prev = carry
            gates = x_t @ w_ihT + h_prev @ w_hhT + b
            i = jax.nn.sigmoid(gates[:, 0 * H:1 * H])
            f = jax.nn.sigmoid(gates[:, 1 * H:2 * H])
            g = jnp.tanh(gates[:, 2 * H:3 * H])
            o = jax.nn.sigmoid(gates[:, 3 * H:4 * H])
            c = f * c_prev + i * g
            hn = o * jnp.tanh(c)
            return (hn, c), hn

        init = (jnp.zeros((B, H), jnp.float32), jnp.zeros((B, H), jnp.float32))
        _, ys = jax.lax.scan(step, init, jnp.swapaxes(h_seq, 0, 1))
        h_seq = jnp.swapaxes(ys, 0, 1)

    x = jnp.concatenate(
        [h_seq, jnp.broadcast_to(x_static[:, None, :], (B, T, N_STATIC))], axis=2)
    h = x.reshape(B * T, -1)
    for i in range(len(NS_LINEAR)):
        h = jnp.maximum(h @ params[f"lin_wT_{i}"] + params[f"lin_b_{i}"], 0.0)
    z = h @ params["fin_wT"] + params["fin_b"]
    return jax.nn.sigmoid(z).reshape(B, T, 1)


# ------------------------------------ main -------------------------------------

if __name__ == "__main__":
    key = jax.random.PRNGKey(0)
    key, kp, kd, ks = jax.random.split(key, 4)

    B, T = 2, 8
    params = init_params(kp)
    x_dynamic = jax.random.normal(kd, (B, T, N_DYNAMIC), jnp.float32)
    x_static = jax.random.normal(ks, (B, N_STATIC), jnp.float32)

    y = baseline_forward(params, x_dynamic, x_static)
    y = jax.block_until_ready(y)

    with jax.default_matmul_precision("float32"):
        y_ref = ref_forward(params, x_dynamic, x_static)

    assert y.shape == (B, T, 1)
    err = float(jnp.max(jnp.abs(y - y_ref)))
    assert err < 1e-4, f"mismatch vs pure-JAX reference: max abs err = {err}"

    print("KERNEL_OK")
</pallas_src>

<mosaic_0001>
module attributes {stable_mosaic.version = 11 : i64} {
  func.func @fused_model_kernel(%arg0: i32, %arg1: memref<8x8x8xf32, #tpu.memory_space<vmem>>, %arg2: memref<8x4xf32, #tpu.memory_space<vmem>>, %arg3: memref<8x128xf32, #tpu.memory_space<vmem>>, %arg4: memref<32x128xf32, #tpu.memory_space<vmem>>, %arg5: memref<1x128xf32, #tpu.memory_space<vmem>>, %arg6: memref<64x128xf32, #tpu.memory_space<vmem>>, %arg7: memref<1x128xf32, #tpu.memory_space<vmem>>, %arg8: memref<64x128xf32, #tpu.memory_space<vmem>>, %arg9: memref<1x128xf32, #tpu.memory_space<vmem>>, %arg10: memref<32x32xf32, #tpu.memory_space<vmem>>, %arg11: memref<4x32xf32, #tpu.memory_space<vmem>>, %arg12: memref<1x32xf32, #tpu.memory_space<vmem>>, %arg13: memref<32x32xf32, #tpu.memory_space<vmem>>, %arg14: memref<1x32xf32, #tpu.memory_space<vmem>>, %arg15: memref<32x32xf32, #tpu.memory_space<vmem>>, %arg16: memref<1x32xf32, #tpu.memory_space<vmem>>, %arg17: memref<1x32xf32, #tpu.memory_space<vmem>>, %arg18: memref<1x1xf32, #tpu.memory_space<vmem>>, %arg19: memref<8x8xf32, #tpu.memory_space<vmem>>, %arg20: memref<8x8x128xf32, #tpu.memory_space<vmem>>, %arg21: memref<8x8x32xf32, #tpu.memory_space<vmem>>) attributes {dimension_semantics = [#tpu.dimension_semantics<parallel>], iteration_bounds = array<i64: 1>, scalar_prefetch = 0 : i64, scratch_operands = 2 : i64, tpu.core_type = #tpu.core_type<tc>, window_params = [{transform_indices = @transform_0, window_bounds = array<i64: 8, 8, 8>}, {transform_indices = @transform_1, window_bounds = array<i64: 8, 4>}, {pipeline_mode = #tpu.pipeline_mode<synchronous>, transform_indices = @transform_2, window_bounds = array<i64: 8, 128>}, {pipeline_mode = #tpu.pipeline_mode<synchronous>, transform_indices = @transform_3, window_bounds = array<i64: 32, 128>}, {pipeline_mode = #tpu.pipeline_mode<synchronous>, transform_indices = @transform_4, window_bounds = array<i64: 1, 128>}, {pipeline_mode = #tpu.pipeline_mode<synchronous>, transform_indices = @transform_5, window_bounds = array<i64: 64, 128>}, {pipeline_mode = #tpu.pipeline_mode<synchronous>, transform_indices = @transform_6, window_bounds = array<i64: 1, 128>}, {pipeline_mode = #tpu.pipeline_mode<synchronous>, transform_indices = @transform_7, window_bounds = array<i64: 64, 128>}, {pipeline_mode = #tpu.pipeline_mode<synchronous>, transform_indices = @transform_8, window_bounds = array<i64: 1, 128>}, {pipeline_mode = #tpu.pipeline_mode<synchronous>, transform_indices = @transform_9, window_bounds = array<i64: 32, 32>}, {pipeline_mode = #tpu.pipeline_mode<synchronous>, transform_indices = @transform_10, window_bounds = array<i64: 4, 32>}, {pipeline_mode = #tpu.pipeline_mode<synchronous>, transform_indices = @transform_11, window_bounds = array<i64: 1, 32>}, {pipeline_mode = #tpu.pipeline_mode<synchronous>, transform_indices = @transform_12, window_bounds = array<i64: 32, 32>}, {pipeline_mode = #tpu.pipeline_mode<synchronous>, transform_indices = @transform_13, window_bounds = array<i64: 1, 32>}, {pipeline_mode = #tpu.pipeline_mode<synchronous>, transform_indices = @transform_14, window_bounds = array<i64: 32, 32>}, {pipeline_mode = #tpu.pipeline_mode<synchronous>, transform_indices = @transform_15, window_bounds = array<i64: 1, 32>}, {pipeline_mode = #tpu.pipeline_mode<synchronous>, transform_indices = @transform_16, window_bounds = array<i64: 1, 32>}, {pipeline_mode = #tpu.pipeline_mode<synchronous>, transform_indices = @transform_17, window_bounds = array<i64: 1, 1>}, {transform_indices = @transform_18, window_bounds = array<i64: 8, 8>}]} {
    %c0 = arith.constant 0 : index
    %c0_0 = arith.constant 0 : index
    %c0_1 = arith.constant 0 : index
    %0 = vector.load %arg1[%c0, %c0_0, %c0_1] : memref<8x8x8xf32, #tpu.memory_space<vmem>>, vector<8x8x8xf32>
    %1 = vector.shape_cast %0 : vector<8x8x8xf32> to vector<64x8xf32>
    %c0_2 = arith.constant 0 : index
    %c0_3 = arith.constant 0 : index
    %2 = vector.load %arg3[%c0_2, %c0_3] : memref<8x128xf32, #tpu.memory_space<vmem>>, vector<8x128xf32>
    %cst = arith.constant dense<0.000000e+00> : vector<64x128xf32>
    %3 = tpu.matmul %1, %2, %cst {dimension_numbers = #tpu.dot_dimension_numbers<[1], [0], [0], [1], [0, 0, 1, 1], [], []>} : vector<64x8xf32>, vector<8x128xf32>, vector<64x128xf32> -> vector<64x128xf32>
    %c0_4 = arith.constant 0 : index
    %c0_5 = arith.constant 0 : index
    %4 = vector.load %arg5[%c0_4, %c0_5] : memref<1x128xf32, #tpu.memory_space<vmem>>, vector<1x128xf32>
    %5 = vector.broadcast %4 : vector<1x128xf32> to vector<64x128xf32>
    %6 = arith.addf %3, %5 : vector<64x128xf32>
    %7 = vector.shape_cast %6 : vector<64x128xf32> to vector<8x8x128xf32>
    %c0_6 = arith.constant 0 : index
    %c0_7 = arith.constant 0 : index
    %c0_8 = arith.constant 0 : index
    %8 = vector.load %arg20[%c0_6, %c0_7, %c0_8] : memref<8x8x128xf32, #tpu.memory_space<vmem>>, vector<8x8x128xf32>
    tpu.vector_store %arg20[%c0_6, %c0_7, %c0_8], %7 {strides = array<i32>} : memref<8x8x128xf32, #tpu.memory_space<vmem>>, vector<8x8x128xf32>,
    %c0_9 = arith.constant 0 : index
    %c0_10 = arith.constant 0 : index
    %9 = vector.load %arg4[%c0_9, %c0_10] : memref<32x128xf32, #tpu.memory_space<vmem>>, vector<32x128xf32>
    %c0_11 = arith.constant 0 : index
    %c0_12 = arith.constant 0 : index
    %10 = vector.load %arg6[%c0_11, %c0_12] : memref<64x128xf32, #tpu.memory_space<vmem>>, vector<64x128xf32>
    %c0_13 = arith.constant 0 : index
    %c0_14 = arith.constant 0 : index
    %11 = vector.load %arg8[%c0_13, %c0_14] : memref<64x128xf32, #tpu.memory_space<vmem>>, vector<64x128xf32>
    %c0_15 = arith.constant 0 : index
    %c0_16 = arith.constant 0 : index
    %12 = vector.load %arg7[%c0_15, %c0_16] : memref<1x128xf32, #tpu.memory_space<vmem>>, vector<1x128xf32>
    %c0_17 = arith.constant 0 : index
    %c0_18 = arith.constant 0 : index
    %13 = vector.load %arg9[%c0_17, %c0_18] : memref<1x128xf32, #tpu.memory_space<vmem>>, vector<1x128xf32>
    %cst_19 = arith.constant 0.000000e+00 : f32
    %14 = vector.broadcast %cst_19 : f32 to vector<8x32xf32>
    %c0_i32 = arith.constant 0 : i32
    %c7_i32 = arith.constant 7 : i32
    %15 = arith.minsi %c0_i32, %c7_i32 : i32
    %16 = arith.index_cast %15 : i32 to index
    %c0_20 = arith.constant 0 : index
    %c0_21 = arith.constant 0 : index
    %17 = vector.load %arg20[%16, %c0_20, %c0_21] : memref<8x8x128xf32, #tpu.memory_space<vmem>>, vector<1x8x128xf32>
    %18 = vector.shape_cast %17 : vector<1x8x128xf32> to vector<8x128xf32>
    %cst_22 = arith.constant dense<0.000000e+00> : vector<8x128xf32>
    %19 = tpu.matmul %14, %9, %cst_22 {dimension_numbers = #tpu.dot_dimension_numbers<[1], [0], [0], [1], [0, 0, 1, 1], [], []>} : vector<8x32xf32>, vector<32x128xf32>, vector<8x128xf32> -> vector<8x128xf32>
    %20 = arith.addf %18, %19 : vector<8x128xf32>
    %21 = vector.extract_strided_slice %20 {offsets = [0, 0], sizes = [8, 96], strides = [1, 1]} : vector<8x128xf32> to vector<8x96xf32>
    %22 = arith.negf %21 : vector<8x96xf32>
    %23 = math.exp %22 : vector<8x96xf32>
    %cst_23 = arith.constant 1.000000e+00 : f32
    %24 = vector.broadcast %cst_23 : f32 to vector<8x96xf32>
    %25 = arith.addf %24, %23 : vector<8x96xf32>
    %26 = arith.divf %24, %25 : vector<8x96xf32>
    %27 = vector.extract_strided_slice %20 {offsets = [0, 96], sizes = [8, 32], strides = [1, 1]} : vector<8x128xf32> to vector<8x32xf32>
    %28 = math.tanh %27 : vector<8x32xf32>
    %29 = vector.extract_strided_slice %26 {offsets = [0, 0], sizes = [8, 32], strides = [1, 1]} : vector<8x96xf32> to vector<8x32xf32>
    %30 = vector.extract_strided_slice %26 {offsets = [0, 32], sizes = [8, 32], strides = [1, 1]} : vector<8x96xf32> to vector<8x32xf32>
    %31 = vector.extract_strided_slice %26 {offsets = [0, 64], sizes = [8, 32], strides = [1, 1]} : vector<8x96xf32> to vector<8x32xf32>
    %32 = arith.mulf %30, %14 : vector<8x32xf32>
    %33 = arith.mulf %29, %28 : vector<8x32xf32>
    %34 = arith.addf %32, %33 : vector<8x32xf32>
    %35 = math.tanh %34 : vector<8x32xf32>
    %36 = arith.mulf %31, %35 : vector<8x32xf32>
    %37 = tpu.concatenate %14, %14 in 1 : vector<8x32xf32>, vector<8x32xf32> -> vector<8x64xf32>
    %cst_24 = arith.constant dense<0.000000e+00> : vector<8x128xf32>
    %38 = tpu.matmul %37, %10, %cst_24 {dimension_numbers = #tpu.dot_dimension_numbers<[1], [0], [0], [1], [0, 0, 1, 1], [], []>} : vector<8x64xf32>, vector<64x128xf32>, vector<8x128xf32> -> vector<8x128xf32>
    %39 = vector.broadcast %12 : vector<1x128xf32> to vector<8x128xf32>
    %40 = arith.addf %38, %39 : vector<8x128xf32>
    %41 = vector.extract_strided_slice %40 {offsets = [0, 0], sizes = [8, 96], strides = [1, 1]} : vector<8x128xf32> to vector<8x96xf32>
    %42 = arith.negf %41 : vector<8x96xf32>
    %43 = math.exp %42 : vector<8x96xf32>
    %cst_25 = arith.constant 1.000000e+00 : f32
    %44 = vector.broadcast %cst_25 : f32 to vector<8x96xf32>
    %45 = arith.addf %44, %43 : vector<8x96xf32>
    %46 = arith.divf %44, %45 : vector<8x96xf32>
    %47 = vector.extract_strided_slice %40 {offsets = [0, 96], sizes = [8, 32], strides = [1, 1]} : vector<8x128xf32> to vector<8x32xf32>
    %48 = math.tanh %47 : vector<8x32xf32>
    %49 = vector.extract_strided_slice %46 {offsets = [0, 0], sizes = [8, 32], strides = [1, 1]} : vector<8x96xf32> to vector<8x32xf32>
    %50 = vector.extract_strided_slice %46 {offsets = [0, 32], sizes = [8, 32], strides = [1, 1]} : vector<8x96xf32> to vector<8x32xf32>
    %51 = vector.extract_strided_slice %46 {offsets = [0, 64], sizes = [8, 32], strides = [1, 1]} : vector<8x96xf32> to vector<8x32xf32>
    %52 = arith.mulf %50, %14 : vector<8x32xf32>
    %53 = arith.mulf %49, %48 : vector<8x32xf32>
    %54 = arith.addf %52, %53 : vector<8x32xf32>
    %55 = math.tanh %54 : vector<8x32xf32>
    %56 = arith.mulf %51, %55 : vector<8x32xf32>
    %57 = tpu.concatenate %14, %14 in 1 : vector<8x32xf32>, vector<8x32xf32> -> vector<8x64xf32>
    %cst_26 = arith.constant dense<0.000000e+00> : vector<8x128xf32>
    %58 = tpu.matmul %57, %11, %cst_26 {dimension_numbers = #tpu.dot_dimension_numbers<[1], [0], [0], [1], [0, 0, 1, 1], [], []>} : vector<8x64xf32>, vector<64x128xf32>, vector<8x128xf32> -> vector<8x128xf32>
    %59 = vector.broadcast %13 : vector<1x128xf32> to vector<8x128xf32>
    %60 = arith.addf %58, %59 : vector<8x128xf32>
    %61 = vector.extract_strided_slice %60 {offsets = [0, 0], sizes = [8, 96], strides = [1, 1]} : vector<8x128xf32> to vector<8x96xf32>
    %62 = arith.negf %61 : vector<8x96xf32>
    %63 = math.exp %62 : vector<8x96xf32>
    %cst_27 = arith.constant 1.000000e+00 : f32
    %64 = vector.broadcast %cst_27 : f32 to vector<8x96xf32>
    %65 = arith.addf %64, %63 : vector<8x96xf32>
    %66 = arith.divf %64, %65 : vector<8x96xf32>
    %67 = vector.extract_strided_slice %60 {offsets = [0, 96], sizes = [8, 32], strides = [1, 1]} : vector<8x128xf32> to vector<8x32xf32>
    %68 = math.tanh %67 : vector<8x32xf32>
    %69 = vector.extract_strided_slice %66 {offsets = [0, 0], sizes = [8, 32], strides = [1, 1]} : vector<8x96xf32> to vector<8x32xf32>
    %70 = vector.extract_strided_slice %66 {offsets = [0, 32], sizes = [8, 32], strides = [1, 1]} : vector<8x96xf32> to vector<8x32xf32>
    %71 = vector.extract_strided_slice %66 {offsets = [0, 64], sizes = [8, 32], strides = [1, 1]} : vector<8x96xf32> to vector<8x32xf32>
    %72 = arith.mulf %70, %14 : vector<8x32xf32>
    %73 = arith.mulf %69, %68 : vector<8x32xf32>
    %74 = arith.addf %72, %73 : vector<8x32xf32>
    %75 = math.tanh %74 : vector<8x32xf32>
    %76 = arith.mulf %71, %75 : vector<8x32xf32>
    %c8_i32 = arith.constant 8 : i32
    %77 = arith.cmpi slt, %c0_i32, %c8_i32 : i32
    %c1_i32 = arith.constant 1 : i32
    %78 = arith.cmpi sge, %c0_i32, %c1_i32 : i32
    %c8_i32_28 = arith.constant 8 : i32
    %79 = arith.cmpi sle, %c0_i32, %c8_i32_28 : i32
    %80 = arith.andi %78, %79 : i1
    %c2_i32 = arith.constant 2 : i32
    %81 = arith.cmpi sge, %c0_i32, %c2_i32 : i32
    %82 = arith.select %77, %36, %14 : vector<8x32xf32>
    %83 = arith.select %77, %34, %14 : vector<8x32xf32>
    %84 = arith.select %80, %56, %14 : vector<8x32xf32>
    %85 = arith.select %80, %54, %14 : vector<8x32xf32>
    %86 = arith.select %81, %76, %14 : vector<8x32xf32>
    %87 = arith.select %81, %74, %14 : vector<8x32xf32>
    %c2_i32_29 = arith.constant 2 : i32
    %88 = arith.subi %c0_i32, %c2_i32_29 : i32
    %c0_i32_30 = arith.constant 0 : i32
    %89 = arith.maxsi %88, %c0_i32_30 : i32
    %90 = arith.index_cast %89 : i32 to index
    %c0_31 = arith.constant 0 : index
    %c0_32 = arith.constant 0 : index
    %91 = vector.load %arg21[%90, %c0_31, %c0_32] : memref<8x8x32xf32, #tpu.memory_space<vmem>>, vector<1x8x32xf32>
    %92 = vector.shape_cast %91 : vector<1x8x32xf32> to vector<8x32xf32>
    %93 = vector.shape_cast %86 : vector<8x32xf32> to vector<1x8x32xf32>
    tpu.vector_store %arg21[%90, %c0_31, %c0_32], %93 {strides = array<i32>} : memref<8x8x32xf32, #tpu.memory_space<vmem>>, vector<1x8x32xf32>,
    %c1_i32_33 = arith.constant 1 : i32
    %c7_i32_34 = arith.constant 7 : i32
    %94 = arith.minsi %c1_i32_33, %c7_i32_34 : i32
    %95 = arith.index_cast %94 : i32 to index
    %c0_35 = arith.constant 0 : index
    %c0_36 = arith.constant 0 : index
    %96 = vector.load %arg20[%95, %c0_35, %c0_36] : memref<8x8x128xf32, #tpu.memory_space<vmem>>, vector<1x8x128xf32>
    %97 = vector.shape_cast %96 : vector<1x8x128xf32> to vector<8x128xf32>
    %cst_37 = arith.constant dense<0.000000e+00> : vector<8x128xf32>
    %98 = tpu.matmul %82, %9, %cst_37 {dimension_numbers = #tpu.dot_dimension_numbers<[1], [0], [0], [1], [0, 0, 1, 1], [], []>} : vector<8x32xf32>, vector<32x128xf32>, vector<8x128xf32> -> vector<8x128xf32>
    %99 = arith.addf %97, %98 : vector<8x128xf32>
    %100 = vector.extract_strided_slice %99 {offsets = [0, 0], sizes = [8, 96], strides = [1, 1]} : vector<8x128xf32> to vector<8x96xf32>
    %101 = arith.negf %100 : vector<8x96xf32>
    %102 = math.exp %101 : vector<8x96xf32>
    %cst_38 = arith.constant 1.000000e+00 : f32
    %103 = vector.broadcast %cst_38 : f32 to vector<8x96xf32>
    %104 = arith.addf %103, %102 : vector<8x96xf32>
    %105 = arith.divf %103, %104 : vector<8x96xf32>
    %106 = vector.extract_strided_slice %99 {offsets = [0, 96], sizes = [8, 32], strides = [1, 1]} : vector<8x128xf32> to vector<8x32xf32>
    %107 = math.tanh %106 : vector<8x32xf32>
    %108 = vector.extract_strided_slice %105 {offsets = [0, 0], sizes = [8, 32], strides = [1, 1]} : vector<8x96xf32> to vector<8x32xf32>
    %109 = vector.extract_strided_slice %105 {offsets = [0, 32], sizes = [8, 32], strides = [1, 1]} : vector<8x96xf32> to vector<8x32xf32>
    %110 = vector.extract_strided_slice %105 {offsets = [0, 64], sizes = [8, 32], strides = [1, 1]} : vector<8x96xf32> to vector<8x32xf32>
    %111 = arith.mulf %109, %83 : vector<8x32xf32>
    %112 = arith.mulf %108, %107 : vector<8x32xf32>
    %113 = arith.addf %111, %112 : vector<8x32xf32>
    %114 = math.tanh %113 : vector<8x32xf32>
    %115 = arith.mulf %110, %114 : vector<8x32xf32>
    %116 = tpu.concatenate %82, %84 in 1 : vector<8x32xf32>, vector<8x32xf32> -> vector<8x64xf32>
    %cst_39 = arith.constant dense<0.000000e+00> : vector<8x128xf32>
    %117 = tpu.matmul %116, %10, %cst_39 {dimension_numbers = #tpu.dot_dimension_numbers<[1], [0], [0], [1], [0, 0, 1, 1], [], []>} : vector<8x64xf32>, vector<64x128xf32>, vector<8x128xf32> -> vector<8x128xf32>
    %118 = vector.broadcast %12 : vector<1x128xf32> to vector<8x128xf32>
    %119 = arith.addf %117, %118 : vector<8x128xf32>
    %120 = vector.extract_strided_slice %119 {offsets = [0, 0], sizes = [8, 96], strides = [1, 1]} : vector<8x128xf32> to vector<8x96xf32>
    %121 = arith.negf %120 : vector<8x96xf32>
    %122 = math.exp %121 : vector<8x96xf32>
    %cst_40 = arith.constant 1.000000e+00 : f32
    %123 = vector.broadcast %cst_40 : f32 to vector<8x96xf32>
    %124 = arith.addf %123, %122 : vector<8x96xf32>
    %125 = arith.divf %123, %124 : vector<8x96xf32>
    %126 = vector.extract_strided_slice %119 {offsets = [0, 96], sizes = [8, 32], strides = [1, 1]} : vector<8x128xf32> to vector<8x32xf32>
    %127 = math.tanh %126 : vector<8x32xf32>
    %128 = vector.extract_strided_slice %125 {offsets = [0, 0], sizes = [8, 32], strides = [1, 1]} : vector<8x96xf32> to vector<8x32xf32>
    %129 = vector.extract_strided_slice %125 {offsets = [0, 32], sizes = [8, 32], strides = [1, 1]} : vector<8x96xf32> to vector<8x32xf32>
    %130 = vector.extract_strided_slice %125 {offsets = [0, 64], sizes = [8, 32], strides = [1, 1]} : vector<8x96xf32> to vector<8x32xf32>
    %131 = arith.mulf %129, %85 : vector<8x32xf32>
    %132 = arith.mulf %128, %127 : vector<8x32xf32>
    %133 = arith.addf %131, %132 : vector<8x32xf32>
    %134 = math.tanh %133 : vector<8x32xf32>
    %135 = arith.mulf %130, %134 : vector<8x32xf32>
    %136 = tpu.concatenate %84, %86 in 1 : vector<8x32xf32>, vector<8x32xf32> -> vector<8x64xf32>
    %cst_41 = arith.constant dense<0.000000e+00> : vector<8x128xf32>
    %137 = tpu.matmul %136, %11, %cst_41 {dimension_numbers = #tpu.dot_dimension_numbers<[1], [0], [0], [1], [0, 0, 1, 1], [], []>} : vector<8x64xf32>, vector<64x128xf32>, vector<8x128xf32> -> vector<8x128xf32>
    %138 = vector.broadcast %13 : vector<1x128xf32> to vector<8x128xf32>
    %139 = arith.addf %137, %138 : vector<8x128xf32>
    %140 = vector.extract_strided_slice %139 {offsets = [0, 0], sizes = [8, 96], strides = [1, 1]} : vector<8x128xf32> to vector<8x96xf32>
    %141 = arith.negf %140 : vector<8x96xf32>
    %142 = math.exp %141 : vector<8x96xf32>
    %cst_42 = arith.constant 1.000000e+00 : f32
    %143 = vector.broadcast %cst_42 : f32 to vector<8x96xf32>
    %144 = arith.addf %143, %142 : vector<8x96xf32>
    %145 = arith.divf %143, %144 : vector<8x96xf32>
    %146 = vector.extract_strided_slice %139 {offsets = [0, 96], sizes = [8, 32], strides = [1, 1]} : vector<8x128xf32> to vector<8x32xf32>
    %147 = math.tanh %146 : vector<8x32xf32>
    %148 = vector.extract_strided_slice %145 {offsets = [0, 0], sizes = [8, 32], strides = [1, 1]} : vector<8x96xf32> to vector<8x32xf32>
    %149 = vector.extract_strided_slice %145 {offsets = [0, 32], sizes = [8, 32], strides = [1, 1]} : vector<8x96xf32> to vector<8x32xf32>
    %150 = vector.extract_strided_slice %145 {offsets = [0, 64], sizes = [8, 32], strides = [1, 1]} : vector<8x96xf32> to vector<8x32xf32>
    %151 = arith.mulf %149, %87 : vector<8x32xf32>
    %152 = arith.mulf %148, %147 : vector<8x32xf32>
    %153 = arith.addf %151, %152 : vector<8x32xf32>
    %154 = math.tanh %153 : vector<8x32xf32>
    %155 = arith.mulf %150, %154 : vector<8x32xf32>
    %c8_i32_43 = arith.constant 8 : i32
    %156 = arith.cmpi slt, %c1_i32_33, %c8_i32_43 : i32
    %c1_i32_44 = arith.constant 1 : i32
    %157 = arith.cmpi sge, %c1_i32_33, %c1_i32_44 : i32
    %c8_i32_45 = arith.constant 8 : i32
    %158 = arith.cmpi sle, %c1_i32_33, %c8_i32_45 : i32
    %159 = arith.andi %157, %158 : i1
    %c2_i32_46 = arith.constant 2 : i32
    %160 = arith.cmpi sge, %c1_i32_33, %c2_i32_46 : i32
    %161 = arith.select %156, %115, %82 : vector<8x32xf32>
    %162 = arith.select %156, %113, %83 : vector<8x32xf32>
    %163 = arith.select %159, %135, %84 : vector<8x32xf32>
    %164 = arith.select %159, %133, %85 : vector<8x32xf32>
    %165 = arith.select %160, %155, %86 : vector<8x32xf32>
    %166 = arith.select %160, %153, %87 : vector<8x32xf32>
    %c2_i32_47 = arith.constant 2 : i32
    %167 = arith.subi %c1_i32_33, %c2_i32_47 : i32
    %c0_i32_48 = arith.constant 0 : i32
    %168 = arith.maxsi %167, %c0_i32_48 : i32
    %169 = arith.index_cast %168 : i32 to index
    %c0_49 = arith.constant 0 : index
    %c0_50 = arith.constant 0 : index
    %170 = vector.load %arg21[%169, %c0_49, %c0_50] : memref<8x8x32xf32, #tpu.memory_space<vmem>>, vector<1x8x32xf32>
    %171 = vector.shape_cast %170 : vector<1x8x32xf32> to vector<8x32xf32>
    %172 = vector.shape_cast %165 : vector<8x32xf32> to vector<1x8x32xf32>
    tpu.vector_store %arg21[%169, %c0_49, %c0_50], %172 {strides = array<i32>} : memref<8x8x32xf32, #tpu.memory_space<vmem>>, vector<1x8x32xf32>,
    %c2_i32_51 = arith.constant 2 : i32
    %c7_i32_52 = arith.constant 7 : i32
    %173 = arith.minsi %c2_i32_51, %c7_i32_52 : i32
    %174 = arith.index_cast %173 : i32 to index
    %c0_53 = arith.constant 0 : index
    %c0_54 = arith.constant 0 : index
    %175 = vector.load %arg20[%174, %c0_53, %c0_54] : memref<8x8x128xf32, #tpu.memory_space<vmem>>, vector<1x8x128xf32>
    %176 = vector.shape_cast %175 : vector<1x8x128xf32> to vector<8x128xf32>
    %cst_55 = arith.constant dense<0.000000e+00> : vector<8x128xf32>
    %177 = tpu.matmul %161, %9, %cst_55 {dimension_numbers = #tpu.dot_dimension_numbers<[1], [0], [0], [1], [0, 0, 1, 1], [], []>} : vector<8x32xf32>, vector<32x128xf32>, vector<8x128xf32> -> vector<8x128xf32>
    %178 = arith.addf %176, %177 : vector<8x128xf32>
    %179 = vector.extract_strided_slice %178 {offsets = [0, 0], sizes = [8, 96], strides = [1, 1]} : vector<8x128xf32> to vector<8x96xf32>
    %180 = arith.negf %179 : vector<8x96xf32>
    %181 = math.exp %180 : vector<8x96xf32>
    %cst_56 = arith.constant 1.000000e+00 : f32
    %182 = vector.broadcast %cst_56 : f32 to vector<8x96xf32>
    %183 = arith.addf %182, %181 : vector<8x96xf32>
    %184 = arith.divf %182, %183 : vector<8x96xf32>
    %185 = vector.extract_strided_slice %178 {offsets = [0, 96], sizes = [8, 32], strides = [1, 1]} : vector<8x128xf32> to vector<8x32xf32>
    %186 = math.tanh %185 : vector<8x32xf32>
    %187 = vector.extract_strided_slice %184 {offsets = [0, 0], sizes = [8, 32], strides = [1, 1]} : vector<8x96xf32> to vector<8x32xf32>
    %188 = vector.extract_strided_slice %184 {offsets = [0, 32], sizes = [8, 32], strides = [1, 1]} : vector<8x96xf32> to vector<8x32xf32>
    %189 = vector.extract_strided_slice %184 {offsets = [0, 64], sizes = [8, 32], strides = [1, 1]} : vector<8x96xf32> to vector<8x32xf32>
    %190 = arith.mulf %188, %162 : vector<8x32xf32>
    %191 = arith.mulf %187, %186 : vector<8x32xf32>
    %192 = arith.addf %190, %191 : vector<8x32xf32>
    %193 = math.tanh %192 : vector<8x32xf32>
    %194 = arith.mulf %189, %193 : vector<8x32xf32>
    %195 = tpu.concatenate %161, %163 in 1 : vector<8x32xf32>, vector<8x32xf32> -> vector<8x64xf32>
    %cst_57 = arith.constant dense<0.000000e+00> : vector<8x128xf32>
    %196 = tpu.matmul %195, %10, %cst_57 {dimension_numbers = #tpu.dot_dimension_numbers<[1], [0], [0], [1], [0, 0, 1, 1], [], []>} : vector<8x64xf32>, vector<64x128xf32>, vector<8x128xf32> -> vector<8x128xf32>
    %197 = vector.broadcast %12 : vector<1x128xf32> to vector<8x128xf32>
    %198 = arith.addf %196, %197 : vector<8x128xf32>
    %199 = vector.extract_strided_slice %198 {offsets = [0, 0], sizes = [8, 96], strides = [1, 1]} : vector<8x128xf32> to vector<8x96xf32>
    %200 = arith.negf %199 : vector<8x96xf32>
    %201 = math.exp %200 : vector<8x96xf32>
    %cst_58 = arith.constant 1.000000e+00 : f32
    %202 = vector.broadcast %cst_58 : f32 to vector<8x96xf32>
    %203 = arith.addf %202, %201 : vector<8x96xf32>
    %204 = arith.divf %202, %203 : vector<8x96xf32>
    %205 = vector.extract_strided_slice %198 {offsets = [0, 96], sizes = [8, 32], strides = [1, 1]} : vector<8x128xf32> to vector<8x32xf32>
    %206 = math.tanh %205 : vector<8x32xf32>
    %207 = vector.extract_strided_slice %204 {offsets = [0, 0], sizes = [8, 32], strides = [1, 1]} : vector<8x96xf32> to vector<8x32xf32>
    %208 = vector.extract_strided_slice %204 {offsets = [0, 32], sizes = [8, 32], strides = [1, 1]} : vector<8x96xf32> to vector<8x32xf32>
    %209 = vector.extract_strided_slice %204 {offsets = [0, 64], sizes = [8, 32], strides = [1, 1]} : vector<8x96xf32> to vector<8x32xf32>
    %210 = arith.mulf %208, %164 : vector<8x32xf32>
    %211 = arith.mulf %207, %206 : vector<8x32xf32>
    %212 = arith.addf %210, %211 : vector<8x32xf32>
    %213 = math.tanh %212 : vector<8x32xf32>
    %214 = arith.mulf %209, %213 : vector<8x32xf32>
    %215 = tpu.concatenate %163, %165 in 1 : vector<8x32xf32>, vector<8x32xf32> -> vector<8x64xf32>
    %cst_59 = arith.constant dense<0.000000e+00> : vector<8x128xf32>
    %216 = tpu.matmul %215, %11, %cst_59 {dimension_numbers = #tpu.dot_dimension_numbers<[1], [0], [0], [1], [0, 0, 1, 1], [], []>} : vector<8x64xf32>, vector<64x128xf32>, vector<8x128xf32> -> vector<8x128xf32>
    %217 = vector.broadcast %13 : vector<1x128xf32> to vector<8x128xf32>
    %218 = arith.addf %216, %217 : vector<8x128xf32>
    %219 = vector.extract_strided_slice %218 {offsets = [0, 0], sizes = [8, 96], strides = [1, 1]} : vector<8x128xf32> to vector<8x96xf32>
    %220 = arith.negf %219 : vector<8x96xf32>
    %221 = math.exp %220 : vector<8x96xf32>
    %cst_60 = arith.constant 1.000000e+00 : f32
    %222 = vector.broadcast %cst_60 : f32 to vector<8x96xf32>
    %223 = arith.addf %222, %221 : vector<8x96xf32>
    %224 = arith.divf %222, %223 : vector<8x96xf32>
    %225 = vector.extract_strided_slice %218 {offsets = [0, 96], sizes = [8, 32], strides = [1, 1]} : vector<8x128xf32> to vector<8x32xf32>
    %226 = math.tanh %225 : vector<8x32xf32>
    %227 = vector.extract_strided_slice %224 {offsets = [0, 0], sizes = [8, 32], strides = [1, 1]} : vector<8x96xf32> to vector<8x32xf32>
    %228 = vector.extract_strided_slice %224 {offsets = [0, 32], sizes = [8, 32], strides = [1, 1]} : vector<8x96xf32> to vector<8x32xf32>
    %229 = vector.extract_strided_slice %224 {offsets = [0, 64], sizes = [8, 32], strides = [1, 1]} : vector<8x96xf32> to vector<8x32xf32>
    %230 = arith.mulf %228, %166 : vector<8x32xf32>
    %231 = arith.mulf %227, %226 : vector<8x32xf32>
    %232 = arith.addf %230, %231 : vector<8x32xf32>
    %233 = math.tanh %232 : vector<8x32xf32>
    %234 = arith.mulf %229, %233 : vector<8x32xf32>
    %c8_i32_61 = arith.constant 8 : i32
    %235 = arith.cmpi slt, %c2_i32_51, %c8_i32_61 : i32
    %c1_i32_62 = arith.constant 1 : i32
    %236 = arith.cmpi sge, %c2_i32_51, %c1_i32_62 : i32
    %c8_i32_63 = arith.constant 8 : i32
    %237 = arith.cmpi sle, %c2_i32_51, %c8_i32_63 : i32
    %238 = arith.andi %236, %237 : i1
    %c2_i32_64 = arith.constant 2 : i32
    %239 = arith.cmpi sge, %c2_i32_51, %c2_i32_64 : i32
    %240 = arith.select %235, %194, %161 : vector<8x32xf32>
    %241 = arith.select %235, %192, %162 : vector<8x32xf32>
    %242 = arith.select %238, %214, %163 : vector<8x32xf32>
    %243 = arith.select %238, %212, %164 : vector<8x32xf32>
    %244 = arith.select %239, %234, %165 : vector<8x32xf32>
    %245 = arith.select %239, %232, %166 : vector<8x32xf32>
    %c2_i32_65 = arith.constant 2 : i32
    %246 = arith.subi %c2_i32_51, %c2_i32_65 : i32
    %c0_i32_66 = arith.constant 0 : i32
    %247 = arith.maxsi %246, %c0_i32_66 : i32
    %248 = arith.index_cast %247 : i32 to index
    %c0_67 = arith.constant 0 : index
    %c0_68 = arith.constant 0 : index
    %249 = vector.load %arg21[%248, %c0_67, %c0_68] : memref<8x8x32xf32, #tpu.memory_space<vmem>>, vector<1x8x32xf32>
    %250 = vector.shape_cast %249 : vector<1x8x32xf32> to vector<8x32xf32>
    %251 = vector.shape_cast %244 : vector<8x32xf32> to vector<1x8x32xf32>
    tpu.vector_store %arg21[%248, %c0_67, %c0_68], %251 {strides = array<i32>} : memref<8x8x32xf32, #tpu.memory_space<vmem>>, vector<1x8x32xf32>,
    %c3_i32 = arith.constant 3 : i32
    %c7_i32_69 = arith.constant 7 : i32
    %252 = arith.minsi %c3_i32, %c7_i32_69 : i32
    %253 = arith.index_cast %252 : i32 to index
    %c0_70 = arith.constant 0 : index
    %c0_71 = arith.constant 0 : index
    %254 = vector.load %arg20[%253, %c0_70, %c0_71] : memref<8x8x128xf32, #tpu.memory_space<vmem>>, vector<1x8x128xf32>
    %255 = vector.shape_cast %254 : vector<1x8x128xf32> to vector<8x128xf32>
    %cst_72 = arith.constant dense<0.000000e+00> : vector<8x128xf32>
    %256 = tpu.matmul %240, %9, %cst_72 {dimension_numbers = #tpu.dot_dimension_numbers<[1], [0], [0], [1], [0, 0, 1, 1], [], []>} : vector<8x32xf32>, vector<32x128xf32>, vector<8x128xf32> -> vector<8x128xf32>
    %257 = arith.addf %255, %256 : vector<8x128xf32>
    %258 = vector.extract_strided_slice %257 {offsets = [0, 0], sizes = [8, 96], strides = [1, 1]} : vector<8x128xf32> to vector<8x96xf32>
    %259 = arith.negf %258 : vector<8x96xf32>
    %260 = math.exp %259 : vector<8x96xf32>
    %cst_73 = arith.constant 1.000000e+00 : f32
    %261 = vector.broadcast %cst_73 : f32 to vector<8x96xf32>
    %262 = arith.addf %261, %260 : vector<8x96xf32>
    %263 = arith.divf %261, %262 : vector<8x96xf32>
    %264 = vector.extract_strided_slice %257 {offsets = [0, 96], sizes = [8, 32], strides = [1, 1]} : vector<8x128xf32> to vector<8x32xf32>
    %265 = math.tanh %264 : vector<8x32xf32>
    %266 = vector.extract_strided_slice %263 {offsets = [0, 0], sizes = [8, 32], strides = [1, 1]} : vector<8x96xf32> to vector<8x32xf32>
    %267 = vector.extract_strided_slice %263 {offsets = [0, 32], sizes = [8, 32], strides = [1, 1]} : vector<8x96xf32> to vector<8x32xf32>
    %268 = vector.extract_strided_slice %263 {offsets = [0, 64], sizes = [8, 32], strides = [1, 1]} : vector<8x96xf32> to vector<8x32xf32>
    %269 = arith.mulf %267, %241 : vector<8x32xf32>
    %270 = arith.mulf %266, %265 : vector<8x32xf32>
    %271 = arith.addf %269, %270 : vector<8x32xf32>
    %272 = math.tanh %271 : vector<8x32xf32>
    %273 = arith.mulf %268, %272 : vector<8x32xf32>
    %274 = tpu.concatenate %240, %242 in 1 : vector<8x32xf32>, vector<8x32xf32> -> vector<8x64xf32>
    %cst_74 = arith.constant dense<0.000000e+00> : vector<8x128xf32>
    %275 = tpu.matmul %274, %10, %cst_74 {dimension_numbers = #tpu.dot_dimension_numbers<[1], [0], [0], [1], [0, 0, 1, 1], [], []>} : vector<8x64xf32>, vector<64x128xf32>, vector<8x128xf32> -> vector<8x128xf32>
    %276 = vector.broadcast %12 : vector<1x128xf32> to vector<8x128xf32>
    %277 = arith.addf %275, %276 : vector<8x128xf32>
    %278 = vector.extract_strided_slice %277 {offsets = [0, 0], sizes = [8, 96], strides = [1, 1]} : vector<8x128xf32> to vector<8x96xf32>
    %279 = arith.negf %278 : vector<8x96xf32>
    %280 = math.exp %279 : vector<8x96xf32>
    %cst_75 = arith.constant 1.000000e+00 : f32
    %281 = vector.broadcast %cst_75 : f32 to vector<8x96xf32>
    %282 = arith.addf %281, %280 : vector<8x96xf32>
    %283 = arith.divf %281, %282 : vector<8x96xf32>
    %284 = vector.extract_strided_slice %277 {offsets = [0, 96], sizes = [8, 32], strides = [1, 1]} : vector<8x128xf32> to vector<8x32xf32>
    %285 = math.tanh %284 : vector<8x32xf32>
    %286 = vector.extract_strided_slice %283 {offsets = [0, 0], sizes = [8, 32], strides = [1, 1]} : vector<8x96xf32> to vector<8x32xf32>
    %287 = vector.extract_strided_slice %283 {offsets = [0, 32], sizes = [8, 32], strides = [1, 1]} : vector<8x96xf32> to vector<8x32xf32>
    %288 = vector.extract_strided_slice %283 {offsets = [0, 64], sizes = [8, 32], strides = [1, 1]} : vector<8x96xf32> to vector<8x32xf32>
    %289 = arith.mulf %287, %243 : vector<8x32xf32>
    %290 = arith.mulf %286, %285 : vector<8x32xf32>
    %291 = arith.addf %289, %290 : vector<8x32xf32>
    %292 = math.tanh %291 : vector<8x32xf32>
    %293 = arith.mulf %288, %292 : vector<8x32xf32>
    %294 = tpu.concatenate %242, %244 in 1 : vector<8x32xf32>, vector<8x32xf32> -> vector<8x64xf32>
    %cst_76 = arith.constant dense<0.000000e+00> : vector<8x128xf32>
    %295 = tpu.matmul %294, %11, %cst_76 {dimension_numbers = #tpu.dot_dimension_numbers<[1], [0], [0], [1], [0, 0, 1, 1], [], []>} : vector<8x64xf32>, vector<64x128xf32>, vector<8x128xf32> -> vector<8x128xf32>
    %296 = vector.broadcast %13 : vector<1x128xf32> to vector<8x128xf32>
    %297 = arith.addf %295, %296 : vector<8x128xf32>
    %298 = vector.extract_strided_slice %297 {offsets = [0, 0], sizes = [8, 96], strides = [1, 1]} : vector<8x128xf32> to vector<8x96xf32>
    %299 = arith.negf %298 : vector<8x96xf32>
    %300 = math.exp %299 : vector<8x96xf32>
    %cst_77 = arith.constant 1.000000e+00 : f32
    %301 = vector.broadcast %cst_77 : f32 to vector<8x96xf32>
    %302 = arith.addf %301, %300 : vector<8x96xf32>
    %303 = arith.divf %301, %302 : vector<8x96xf32>
    %304 = vector.extract_strided_slice %297 {offsets = [0, 96], sizes = [8, 32], strides = [1, 1]} : vector<8x128xf32> to vector<8x32xf32>
    %305 = math.tanh %304 : vector<8x32xf32>
    %306 = vector.extract_strided_slice %303 {offsets = [0, 0], sizes = [8, 32], strides = [1, 1]} : vector<8x96xf32> to vector<8x32xf32>
    %307 = vector.extract_strided_slice %303 {offsets = [0, 32], sizes = [8, 32], strides = [1, 1]} : vector<8x96xf32> to vector<8x32xf32>
    %308 = vector.extract_strided_slice %303 {offsets = [0, 64], sizes = [8, 32], strides = [1, 1]} : vector<8x96xf32> to vector<8x32xf32>
    %309 = arith.mulf %307, %245 : vector<8x32xf32>
    %310 = arith.mulf %306, %305 : vector<8x32xf32>
    %311 = arith.addf %309, %310 : vector<8x32xf32>
    %312 = math.tanh %311 : vector<8x32xf32>
    %313 = arith.mulf %308, %312 : vector<8x32xf32>
    %c8_i32_78 = arith.constant 8 : i32
    %314 = arith.cmpi slt, %c3_i32, %c8_i32_78 : i32
    %c1_i32_79 = arith.constant 1 : i32
    %315 = arith.cmpi sge, %c3_i32, %c1_i32_79 : i32
    %c8_i32_80 = arith.constant 8 : i32
    %316 = arith.cmpi sle, %c3_i32, %c8_i32_80 : i32
    %317 = arith.andi %315, %316 : i1
    %c2_i32_81 = arith.constant 2 : i32
    %318 = arith.cmpi sge, %c3_i32, %c2_i32_81 : i32
    %319 = arith.select %314, %273, %240 : vector<8x32xf32>
    %320 = arith.select %314, %271, %241 : vector<8x32xf32>
    %321 = arith.select %317, %293, %242 : vector<8x32xf32>
    %322 = arith.select %317, %291, %243 : vector<8x32xf32>
    %323 = arith.select %318, %313, %244 : vector<8x32xf32>
    %324 = arith.select %318, %311, %245 : vector<8x32xf32>
    %c2_i32_82 = arith.constant 2 : i32
    %325 = arith.subi %c3_i32, %c2_i32_82 : i32
    %c0_i32_83 = arith.constant 0 : i32
    %326 = arith.maxsi %325, %c0_i32_83 : i32
    %327 = arith.index_cast %326 : i32 to index
    %c0_84 = arith.constant 0 : index
    %c0_85 = arith.constant 0 : index
    %328 = vector.load %arg21[%327, %c0_84, %c0_85] : memref<8x8x32xf32, #tpu.memory_space<vmem>>, vector<1x8x32xf32>
    %329 = vector.shape_cast %328 : vector<1x8x32xf32> to vector<8x32xf32>
    %330 = vector.shape_cast %323 : vector<8x32xf32> to vector<1x8x32xf32>
    tpu.vector_store %arg21[%327, %c0_84, %c0_85], %330 {strides = array<i32>} : memref<8x8x32xf32, #tpu.memory_space<vmem>>, vector<1x8x32xf32>,
    %c4_i32 = arith.constant 4 : i32
    %c7_i32_86 = arith.constant 7 : i32
    %331 = arith.minsi %c4_i32, %c7_i32_86 : i32
    %332 = arith.index_cast %331 : i32 to index
    %c0_87 = arith.constant 0 : index
    %c0_88 = arith.constant 0 : index
    %333 = vector.load %arg20[%332, %c0_87, %c0_88] : memref<8x8x128xf32, #tpu.memory_space<vmem>>, vector<1x8x128xf32>
    %334 = vector.shape_cast %333 : vector<1x8x128xf32> to vector<8x128xf32>
    %cst_89 = arith.constant dense<0.000000e+00> : vector<8x128xf32>
    %335 = tpu.matmul %319, %9, %cst_89 {dimension_numbers = #tpu.dot_dimension_numbers<[1], [0], [0], [1], [0, 0, 1, 1], [], []>} : vector<8x32xf32>, vector<32x128xf32>, vector<8x128xf32> -> vector<8x128xf32>
    %336 = arith.addf %334, %335 : vector<8x128xf32>
    %337 = vector.extract_strided_slice %336 {offsets = [0, 0], sizes = [8, 96], strides = [1, 1]} : vector<8x128xf32> to vector<8x96xf32>
    %338 = arith.negf %337 : vector<8x96xf32>
    %339 = math.exp %338 : vector<8x96xf32>
    %cst_90 = arith.constant 1.000000e+00 : f32
    %340 = vector.broadcast %cst_90 : f32 to vector<8x96xf32>
    %341 = arith.addf %340, %339 : vector<8x96xf32>
    %342 = arith.divf %340, %341 : vector<8x96xf32>
    %343 = vector.extract_strided_slice %336 {offsets = [0, 96], sizes = [8, 32], strides = [1, 1]} : vector<8x128xf32> to vector<8x32xf32>
    %344 = math.tanh %343 : vector<8x32xf32>
    %345 = vector.extract_strided_slice %342 {offsets = [0, 0], sizes = [8, 32], strides = [1, 1]} : vector<8x96xf32> to vector<8x32xf32>
    %346 = vector.extract_strided_slice %342 {offsets = [0, 32], sizes = [8, 32], strides = [1, 1]} : vector<8x96xf32> to vector<8x32xf32>
    %347 = vector.extract_strided_slice %342 {offsets = [0, 64], sizes = [8, 32], strides = [1, 1]} : vector<8x96xf32> to vector<8x32xf32>
    %348 = arith.mulf %346, %320 : vector<8x32xf32>
    %349 = arith.mulf %345, %344 : vector<8x32xf32>
    %350 = arith.addf %348, %349 : vector<8x32xf32>
    %351 = math.tanh %350 : vector<8x32xf32>
    %352 = arith.mulf %347, %351 : vector<8x32xf32>
    %353 = tpu.concatenate %319, %321 in 1 : vector<8x32xf32>, vector<8x32xf32> -> vector<8x64xf32>
    %cst_91 = arith.constant dense<0.000000e+00> : vector<8x128xf32>
    %354 = tpu.matmul %353, %10, %cst_91 {dimension_numbers = #tpu.dot_dimension_numbers<[1], [0], [0], [1], [0, 0, 1, 1], [], []>} : vector<8x64xf32>, vector<64x128xf32>, vector<8x128xf32> -> vector<8x128xf32>
    %355 = vector.broadcast %12 : vector<1x128xf32> to vector<8x128xf32>
    %356 = arith.addf %354, %355 : vector<8x128xf32>
    %357 = vector.extract_strided_slice %356 {offsets = [0, 0], sizes = [8, 96], strides = [1, 1]} : vector<8x128xf32> to vector<8x96xf32>
    %358 = arith.negf %357 : vector<8x96xf32>
    %359 = math.exp %358 : vector<8x96xf32>
    %cst_92 = arith.constant 1.000000e+00 : f32
    %360 = vector.broadcast %cst_92 : f32 to vector<8x96xf32>
    %361 = arith.addf %360, %359 : vector<8x96xf32>
    %362 = arith.divf %360, %361 : vector<8x96xf32>
    %363 = vector.extract_strided_slice %356 {offsets = [0, 96], sizes = [8, 32], strides = [1, 1]} : vector<8x128xf32> to vector<8x32xf32>
    %364 = math.tanh %363 : vector<8x32xf32>
    %365 = vector.extract_strided_slice %362 {offsets = [0, 0], sizes = [8, 32], strides = [1, 1]} : vector<8x96xf32> to vector<8x32xf32>
    %366 = vector.extract_strided_slice %362 {offsets = [0, 32], sizes = [8, 32], strides = [1, 1]} : vector<8x96xf32> to vector<8x32xf32>
    %367 = vector.extract_strided_slice %362 {offsets = [0, 64], sizes = [8, 32], strides = [1, 1]} : vector<8x96xf32> to vector<8x32xf32>
    %368 = arith.mulf %366, %322 : vector<8x32xf32>
    %369 = arith.mulf %365, %364 : vector<8x32xf32>
    %370 = arith.addf %368, %369 : vector<8x32xf32>
    %371 = math.tanh %370 : vector<8x32xf32>
    %372 = arith.mulf %367, %371 : vector<8x32xf32>
    %373 = tpu.concatenate %321, %323 in 1 : vector<8x32xf32>, vector<8x32xf32> -> vector<8x64xf32>
    %cst_93 = arith.constant dense<0.000000e+00> : vector<8x128xf32>
    %374 = tpu.matmul %373, %11, %cst_93 {dimension_numbers = #tpu.dot_dimension_numbers<[1], [0], [0], [1], [0, 0, 1, 1], [], []>} : vector<8x64xf32>, vector<64x128xf32>, vector<8x128xf32> -> vector<8x128xf32>
    %375 = vector.broadcast %13 : vector<1x128xf32> to vector<8x128xf32>
    %376 = arith.addf %374, %375 : vector<8x128xf32>
    %377 = vector.extract_strided_slice %376 {offsets = [0, 0], sizes = [8, 96], strides = [1, 1]} : vector<8x128xf32> to vector<8x96xf32>
    %378 = arith.negf %377 : vector<8x96xf32>
    %379 = math.exp %378 : vector<8x96xf32>
    %cst_94 = arith.constant 1.000000e+00 : f32
    %380 = vector.broadcast %cst_94 : f32 to vector<8x96xf32>
    %381 = arith.addf %380, %379 : vector<8x96xf32>
    %382 = arith.divf %380, %381 : vector<8x96xf32>
    %383 = vector.extract_strided_slice %376 {offsets = [0, 96], sizes = [8, 32], strides = [1, 1]} : vector<8x128xf32> to vector<8x32xf32>
    %384 = math.tanh %383 : vector<8x32xf32>
    %385 = vector.extract_strided_slice %382 {offsets = [0, 0], sizes = [8, 32], strides = [1, 1]} : vector<8x96xf32> to vector<8x32xf32>
    %386 = vector.extract_strided_slice %382 {offsets = [0, 32], sizes = [8, 32], strides = [1, 1]} : vector<8x96xf32> to vector<8x32xf32>
    %387 = vector.extract_strided_slice %382 {offsets = [0, 64], sizes = [8, 32], strides = [1, 1]} : vector<8x96xf32> to vector<8x32xf32>
    %388 = arith.mulf %386, %324 : vector<8x32xf32>
    %389 = arith.mulf %385, %384 : vector<8x32xf32>
    %390 = arith.addf %388, %389 : vector<8x32xf32>
    %391 = math.tanh %390 : vector<8x32xf32>
    %392 = arith.mulf %387, %391 : vector<8x32xf32>
    %c8_i32_95 = arith.constant 8 : i32
    %393 = arith.cmpi slt, %c4_i32, %c8_i32_95 : i32
    %c1_i32_96 = arith.constant 1 : i32
    %394 = arith.cmpi sge, %c4_i32, %c1_i32_96 : i32
    %c8_i32_97 = arith.constant 8 : i32
    %395 = arith.cmpi sle, %c4_i32, %c8_i32_97 : i32
    %396 = arith.andi %394, %395 : i1
    %c2_i32_98 = arith.constant 2 : i32
    %397 = arith.cmpi sge, %c4_i32, %c2_i32_98 : i32
    %398 = arith.select %393, %352, %319 : vector<8x32xf32>
    %399 = arith.select %393, %350, %320 : vector<8x32xf32>
    %400 = arith.select %396, %372, %321 : vector<8x32xf32>
    %401 = arith.select %396, %370, %322 : vector<8x32xf32>
    %402 = arith.select %397, %392, %323 : vector<8x32xf32>
    %403 = arith.select %397, %390, %324 : vector<8x32xf32>
    %c2_i32_99 = arith.constant 2 : i32
    %404 = arith.subi %c4_i32, %c2_i32_99 : i32
    %c0_i32_100 = arith.constant 0 : i32
    %405 = arith.maxsi %404, %c0_i32_100 : i32
    %406 = arith.index_cast %405 : i32 to index
    %c0_101 = arith.constant 0 : index
    %c0_102 = arith.constant 0 : index
    %407 = vector.load %arg21[%406, %c0_101, %c0_102] : memref<8x8x32xf32, #tpu.memory_space<vmem>>, vector<1x8x32xf32>
    %408 = vector.shape_cast %407 : vector<1x8x32xf32> to vector<8x32xf32>
    %409 = vector.shape_cast %402 : vector<8x32xf32> to vector<1x8x32xf32>
    tpu.vector_store %arg21[%406, %c0_101, %c0_102], %409 {strides = array<i32>} : memref<8x8x32xf32, #tpu.memory_space<vmem>>, vector<1x8x32xf32>,
    %c5_i32 = arith.constant 5 : i32
    %c7_i32_103 = arith.constant 7 : i32
    %410 = arith.minsi %c5_i32, %c7_i32_103 : i32
    %411 = arith.index_cast %410 : i32 to index
    %c0_104 = arith.constant 0 : index
    %c0_105 = arith.constant 0 : index
    %412 = vector.load %arg20[%411, %c0_104, %c0_105] : memref<8x8x128xf32, #tpu.memory_space<vmem>>, vector<1x8x128xf32>
    %413 = vector.shape_cast %412 : vector<1x8x128xf32> to vector<8x128xf32>
    %cst_106 = arith.constant dense<0.000000e+00> : vector<8x128xf32>
    %414 = tpu.matmul %398, %9, %cst_106 {dimension_numbers = #tpu.dot_dimension_numbers<[1], [0], [0], [1], [0, 0, 1, 1], [], []>} : vector<8x32xf32>, vector<32x128xf32>, vector<8x128xf32> -> vector<8x128xf32>
    %415 = arith.addf %413, %414 : vector<8x128xf32>
    %416 = vector.extract_strided_slice %415 {offsets = [0, 0], sizes = [8, 96], strides = [1, 1]} : vector<8x128xf32> to vector<8x96xf32>
    %417 = arith.negf %416 : vector<8x96xf32>
    %418 = math.exp %417 : vector<8x96xf32>
    %cst_107 = arith.constant 1.000000e+00 : f32
    %419 = vector.broadcast %cst_107 : f32 to vector<8x96xf32>
    %420 = arith.addf %419, %418 : vector<8x96xf32>
    %421 = arith.divf %419, %420 : vector<8x96xf32>
    %422 = vector.extract_strided_slice %415 {offsets = [0, 96], sizes = [8, 32], strides = [1, 1]} : vector<8x128xf32> to vector<8x32xf32>
    %423 = math.tanh %422 : vector<8x32xf32>
    %424 = vector.extract_strided_slice %421 {offsets = [0, 0], sizes = [8, 32], strides = [1, 1]} : vector<8x96xf32> to vector<8x32xf32>
    %425 = vector.extract_strided_slice %421 {offsets = [0, 32], sizes = [8, 32], strides = [1, 1]} : vector<8x96xf32> to vector<8x32xf32>
    %426 = vector.extract_strided_slice %421 {offsets = [0, 64], sizes = [8, 32], strides = [1, 1]} : vector<8x96xf32> to vector<8x32xf32>
    %427 = arith.mulf %425, %399 : vector<8x32xf32>
    %428 = arith.mulf %424, %423 : vector<8x32xf32>
    %429 = arith.addf %427, %428 : vector<8x32xf32>
    %430 = math.tanh %429 : vector<8x32xf32>
    %431 = arith.mulf %426, %430 : vector<8x32xf32>
    %432 = tpu.concatenate %398, %400 in 1 : vector<8x32xf32>, vector<8x32xf32> -> vector<8x64xf32>
    %cst_108 = arith.constant dense<0.000000e+00> : vector<8x128xf32>
    %433 = tpu.matmul %432, %10, %cst_108 {dimension_numbers = #tpu.dot_dimension_numbers<[1], [0], [0], [1], [0, 0, 1, 1], [], []>} : vector<8x64xf32>, vector<64x128xf32>, vector<8x128xf32> -> vector<8x128xf32>
    %434 = vector.broadcast %12 : vector<1x128xf32> to vector<8x128xf32>
    %435 = arith.addf %433, %434 : vector<8x128xf32>
    %436 = vector.extract_strided_slice %435 {offsets = [0, 0], sizes = [8, 96], strides = [1, 1]} : vector<8x128xf32> to vector<8x96xf32>
    %437 = arith.negf %436 : vector<8x96xf32>
    %438 = math.exp %437 : vector<8x96xf32>
    %cst_109 = arith.constant 1.000000e+00 : f32
    %439 = vector.broadcast %cst_109 : f32 to vector<8x96xf32>
    %440 = arith.addf %439, %438 : vector<8x96xf32>
    %441 = arith.divf %439, %440 : vector<8x96xf32>
    %442 = vector.extract_strided_slice %435 {offsets = [0, 96], sizes = [8, 32], strides = [1, 1]} : vector<8x128xf32> to vector<8x32xf32>
    %443 = math.tanh %442 : vector<8x32xf32>
    %444 = vector.extract_strided_slice %441 {offsets = [0, 0], sizes = [8, 32], strides = [1, 1]} : vector<8x96xf32> to vector<8x32xf32>
    %445 = vector.extract_strided_slice %441 {offsets = [0, 32], sizes = [8, 32], strides = [1, 1]} : vector<8x96xf32> to vector<8x32xf32>
    %446 = vector.extract_strided_slice %441 {offsets = [0, 64], sizes = [8, 32], strides = [1, 1]} : vector<8x96xf32> to vector<8x32xf32>
    %447 = arith.mulf %445, %401 : vector<8x32xf32>
    %448 = arith.mulf %444, %443 : vector<8x32xf32>
    %449 = arith.addf %447, %448 : vector<8x32xf32>
    %450 = math.tanh %449 : vector<8x32xf32>
    %451 = arith.mulf %446, %450 : vector<8x32xf32>
    %452 = tpu.concatenate %400, %402 in 1 : vector<8x32xf32>, vector<8x32xf32> -> vector<8x64xf32>
    %cst_110 = arith.constant dense<0.000000e+00> : vector<8x128xf32>
    %453 = tpu.matmul %452, %11, %cst_110 {dimension_numbers = #tpu.dot_dimension_numbers<[1], [0], [0], [1], [0, 0, 1, 1], [], []>} : vector<8x64xf32>, vector<64x128xf32>, vector<8x128xf32> -> vector<8x128xf32>
    %454 = vector.broadcast %13 : vector<1x128xf32> to vector<8x128xf32>
    %455 = arith.addf %453, %454 : vector<8x128xf32>
    %456 = vector.extract_strided_slice %455 {offsets = [0, 0], sizes = [8, 96], strides = [1, 1]} : vector<8x128xf32> to vector<8x96xf32>
    %457 = arith.negf %456 : vector<8x96xf32>
    %458 = math.exp %457 : vector<8x96xf32>
    %cst_111 = arith.constant 1.000000e+00 : f32
    %459 = vector.broadcast %cst_111 : f32 to vector<8x96xf32>
    %460 = arith.addf %459, %458 : vector<8x96xf32>
    %461 = arith.divf %459, %460 : vector<8x96xf32>
    %462 = vector.extract_strided_slice %455 {offsets = [0, 96], sizes = [8, 32], strides = [1, 1]} : vector<8x128xf32> to vector<8x32xf32>
    %463 = math.tanh %462 : vector<8x32xf32>
    %464 = vector.extract_strided_slice %461 {offsets = [0, 0], sizes = [8, 32], strides = [1, 1]} : vector<8x96xf32> to vector<8x32xf32>
    %465 = vector.extract_strided_slice %461 {offsets = [0, 32], sizes = [8, 32], strides = [1, 1]} : vector<8x96xf32> to vector<8x32xf32>
    %466 = vector.extract_strided_slice %461 {offsets = [0, 64], sizes = [8, 32], strides = [1, 1]} : vector<8x96xf32> to vector<8x32xf32>
    %467 = arith.mulf %465, %403 : vector<8x32xf32>
    %468 = arith.mulf %464, %463 : vector<8x32xf32>
    %469 = arith.addf %467, %468 : vector<8x32xf32>
    %470 = math.tanh %469 : vector<8x32xf32>
    %471 = arith.mulf %466, %470 : vector<8x32xf32>
    %c8_i32_112 = arith.constant 8 : i32
    %472 = arith.cmpi slt, %c5_i32, %c8_i32_112 : i32
    %c1_i32_113 = arith.constant 1 : i32
    %473 = arith.cmpi sge, %c5_i32, %c1_i32_113 : i32
    %c8_i32_114 = arith.constant 8 : i32
    %474 = arith.cmpi sle, %c5_i32, %c8_i32_114 : i32
    %475 = arith.andi %473, %474 : i1
    %c2_i32_115 = arith.constant 2 : i32
    %476 = arith.cmpi sge, %c5_i32, %c2_i32_115 : i32
    %477 = arith.select %472, %431, %398 : vector<8x32xf32>
    %478 = arith.select %472, %429, %399 : vector<8x32xf32>
    %479 = arith.select %475, %451, %400 : vector<8x32xf32>
    %480 = arith.select %475, %449, %401 : vector<8x32xf32>
    %481 = arith.select %476, %471, %402 : vector<8x32xf32>
    %482 = arith.select %476, %469, %403 : vector<8x32xf32>
    %c2_i32_116 = arith.constant 2 : i32
    %483 = arith.subi %c5_i32, %c2_i32_116 : i32
    %c0_i32_117 = arith.constant 0 : i32
    %484 = arith.maxsi %483, %c0_i32_117 : i32
    %485 = arith.index_cast %484 : i32 to index
    %c0_118 = arith.constant 0 : index
    %c0_119 = arith.constant 0 : index
    %486 = vector.load %arg21[%485, %c0_118, %c0_119] : memref<8x8x32xf32, #tpu.memory_space<vmem>>, vector<1x8x32xf32>
    %487 = vector.shape_cast %486 : vector<1x8x32xf32> to vector<8x32xf32>
    %488 = vector.shape_cast %481 : vector<8x32xf32> to vector<1x8x32xf32>
    tpu.vector_store %arg21[%485, %c0_118, %c0_119], %488 {strides = array<i32>} : memref<8x8x32xf32, #tpu.memory_space<vmem>>, vector<1x8x32xf32>,
    %c6_i32 = arith.constant 6 : i32
    %c7_i32_120 = arith.constant 7 : i32
    %489 = arith.minsi %c6_i32, %c7_i32_120 : i32
    %490 = arith.index_cast %489 : i32 to index
    %c0_121 = arith.constant 0 : index
    %c0_122 = arith.constant 0 : index
    %491 = vector.load %arg20[%490, %c0_121, %c0_122] : memref<8x8x128xf32, #tpu.memory_space<vmem>>, vector<1x8x128xf32>
    %492 = vector.shape_cast %491 : vector<1x8x128xf32> to vector<8x128xf32>
    %cst_123 = arith.constant dense<0.000000e+00> : vector<8x128xf32>
    %493 = tpu.matmul %477, %9, %cst_123 {dimension_numbers = #tpu.dot_dimension_numbers<[1], [0], [0], [1], [0, 0, 1, 1], [], []>} : vector<8x32xf32>, vector<32x128xf32>, vector<8x128xf32> -> vector<8x128xf32>
    %494 = arith.addf %492, %493 : vector<8x128xf32>
    %495 = vector.extract_strided_slice %494 {offsets = [0, 0], sizes = [8, 96], strides = [1, 1]} : vector<8x128xf32> to vector<8x96xf32>
    %496 = arith.negf %495 : vector<8x96xf32>
    %497 = math.exp %496 : vector<8x96xf32>
    %cst_124 = arith.constant 1.000000e+00 : f32
    %498 = vector.broadcast %cst_124 : f32 to vector<8x96xf32>
    %499 = arith.addf %498, %497 : vector<8x96xf32>
    %500 = arith.divf %498, %499 : vector<8x96xf32>
    %501 = vector.extract_strided_slice %494 {offsets = [0, 96], sizes = [8, 32], strides = [1, 1]} : vector<8x128xf32> to vector<8x32xf32>
    %502 = math.tanh %501 : vector<8x32xf32>
    %503 = vector.extract_strided_slice %500 {offsets = [0, 0], sizes = [8, 32], strides = [1, 1]} : vector<8x96xf32> to vector<8x32xf32>
    %504 = vector.extract_strided_slice %500 {offsets = [0, 32], sizes = [8, 32], strides = [1, 1]} : vector<8x96xf32> to vector<8x32xf32>
    %505 = vector.extract_strided_slice %500 {offsets = [0, 64], sizes = [8, 32], strides = [1, 1]} : vector<8x96xf32> to vector<8x32xf32>
    %506 = arith.mulf %504, %478 : vector<8x32xf32>
    %507 = arith.mulf %503, %502 : vector<8x32xf32>
    %508 = arith.addf %506, %507 : vector<8x32xf32>
    %509 = math.tanh %508 : vector<8x32xf32>
    %510 = arith.mulf %505, %509 : vector<8x32xf32>
    %511 = tpu.concatenate %477, %479 in 1 : vector<8x32xf32>, vector<8x32xf32> -> vector<8x64xf32>
    %cst_125 = arith.constant dense<0.000000e+00> : vector<8x128xf32>
    %512 = tpu.matmul %511, %10, %cst_125 {dimension_numbers = #tpu.dot_dimension_numbers<[1], [0], [0], [1], [0, 0, 1, 1], [], []>} : vector<8x64xf32>, vector<64x128xf32>, vector<8x128xf32> -> vector<8x128xf32>
    %513 = vector.broadcast %12 : vector<1x128xf32> to vector<8x128xf32>
    %514 = arith.addf %512, %513 : vector<8x128xf32>
    %515 = vector.extract_strided_slice %514 {offsets = [0, 0], sizes = [8, 96], strides = [1, 1]} : vector<8x128xf32> to vector<8x96xf32>
    %516 = arith.negf %515 : vector<8x96xf32>
    %517 = math.exp %516 : vector<8x96xf32>
    %cst_126 = arith.constant 1.000000e+00 : f32
    %518 = vector.broadcast %cst_126 : f32 to vector<8x96xf32>
    %519 = arith.addf %518, %517 : vector<8x96xf32>
    %520 = arith.divf %518, %519 : vector<8x96xf32>
    %521 = vector.extract_strided_slice %514 {offsets = [0, 96], sizes = [8, 32], strides = [1, 1]} : vector<8x128xf32> to vector<8x32xf32>
    %522 = math.tanh %521 : vector<8x32xf32>
    %523 = vector.extract_strided_slice %520 {offsets = [0, 0], sizes = [8, 32], strides = [1, 1]} : vector<8x96xf32> to vector<8x32xf32>
    %524 = vector.extract_strided_slice %520 {offsets = [0, 32], sizes = [8, 32], strides = [1, 1]} : vector<8x96xf32> to vector<8x32xf32>
    %525 = vector.extract_strided_slice %520 {offsets = [0, 64], sizes = [8, 32], strides = [1, 1]} : vector<8x96xf32> to vector<8x32xf32>
    %526 = arith.mulf %524, %480 : vector<8x32xf32>
    %527 = arith.mulf %523, %522 : vector<8x32xf32>
    %528 = arith.addf %526, %527 : vector<8x32xf32>
    %529 = math.tanh %528 : vector<8x32xf32>
    %530 = arith.mulf %525, %529 : vector<8x32xf32>
    %531 = tpu.concatenate %479, %481 in 1 : vector<8x32xf32>, vector<8x32xf32> -> vector<8x64xf32>
    %cst_127 = arith.constant dense<0.000000e+00> : vector<8x128xf32>
    %532 = tpu.matmul %531, %11, %cst_127 {dimension_numbers = #tpu.dot_dimension_numbers<[1], [0], [0], [1], [0, 0, 1, 1], [], []>} : vector<8x64xf32>, vector<64x128xf32>, vector<8x128xf32> -> vector<8x128xf32>
    %533 = vector.broadcast %13 : vector<1x128xf32> to vector<8x128xf32>
    %534 = arith.addf %532, %533 : vector<8x128xf32>
    %535 = vector.extract_strided_slice %534 {offsets = [0, 0], sizes = [8, 96], strides = [1, 1]} : vector<8x128xf32> to vector<8x96xf32>
    %536 = arith.negf %535 : vector<8x96xf32>
    %537 = math.exp %536 : vector<8x96xf32>
    %cst_128 = arith.constant 1.000000e+00 : f32
    %538 = vector.broadcast %cst_128 : f32 to vector<8x96xf32>
    %539 = arith.addf %538, %537 : vector<8x96xf32>
    %540 = arith.divf %538, %539 : vector<8x96xf32>
    %541 = vector.extract_strided_slice %534 {offsets = [0, 96], sizes = [8, 32], strides = [1, 1]} : vector<8x128xf32> to vector<8x32xf32>
    %542 = math.tanh %541 : vector<8x32xf32>
    %543 = vector.extract_strided_slice %540 {offsets = [0, 0], sizes = [8, 32], strides = [1, 1]} : vector<8x96xf32> to vector<8x32xf32>
    %544 = vector.extract_strided_slice %540 {offsets = [0, 32], sizes = [8, 32], strides = [1, 1]} : vector<8x96xf32> to vector<8x32xf32>
    %545 = vector.extract_strided_slice %540 {offsets = [0, 64], sizes = [8, 32], strides = [1, 1]} : vector<8x96xf32> to vector<8x32xf32>
    %546 = arith.mulf %544, %482 : vector<8x32xf32>
    %547 = arith.mulf %543, %542 : vector<8x32xf32>
    %548 = arith.addf %546, %547 : vector<8x32xf32>
    %549 = math.tanh %548 : vector<8x32xf32>
    %550 = arith.mulf %545, %549 : vector<8x32xf32>
    %c8_i32_129 = arith.constant 8 : i32
    %551 = arith.cmpi slt, %c6_i32, %c8_i32_129 : i32
    %c1_i32_130 = arith.constant 1 : i32
    %552 = arith.cmpi sge, %c6_i32, %c1_i32_130 : i32
    %c8_i32_131 = arith.constant 8 : i32
    %553 = arith.cmpi sle, %c6_i32, %c8_i32_131 : i32
    %554 = arith.andi %552, %553 : i1
    %c2_i32_132 = arith.constant 2 : i32
    %555 = arith.cmpi sge, %c6_i32, %c2_i32_132 : i32
    %556 = arith.select %551, %510, %477 : vector<8x32xf32>
    %557 = arith.select %551, %508, %478 : vector<8x32xf32>
    %558 = arith.select %554, %530, %479 : vector<8x32xf32>
    %559 = arith.select %554, %528, %480 : vector<8x32xf32>
    %560 = arith.select %555, %550, %481 : vector<8x32xf32>
    %561 = arith.select %555, %548, %482 : vector<8x32xf32>
    %c2_i32_133 = arith.constant 2 : i32
    %562 = arith.subi %c6_i32, %c2_i32_133 : i32
    %c0_i32_134 = arith.constant 0 : i32
    %563 = arith.maxsi %562, %c0_i32_134 : i32
    %564 = arith.index_cast %563 : i32 to index
    %c0_135 = arith.constant 0 : index
    %c0_136 = arith.constant 0 : index
    %565 = vector.load %arg21[%564, %c0_135, %c0_136] : memref<8x8x32xf32, #tpu.memory_space<vmem>>, vector<1x8x32xf32>
    %566 = vector.shape_cast %565 : vector<1x8x32xf32> to vector<8x32xf32>
    %567 = vector.shape_cast %560 : vector<8x32xf32> to vector<1x8x32xf32>
    tpu.vector_store %arg21[%564, %c0_135, %c0_136], %567 {strides = array<i32>} : memref<8x8x32xf32, #tpu.memory_space<vmem>>, vector<1x8x32xf32>,
    %c7_i32_137 = arith.constant 7 : i32
    %c7_i32_138 = arith.constant 7 : i32
    %568 = arith.minsi %c7_i32_137, %c7_i32_138 : i32
    %569 = arith.index_cast %568 : i32 to index
    %c0_139 = arith.constant 0 : index
    %c0_140 = arith.constant 0 : index
    %570 = vector.load %arg20[%569, %c0_139, %c0_140] : memref<8x8x128xf32, #tpu.memory_space<vmem>>, vector<1x8x128xf32>
    %571 = vector.shape_cast %570 : vector<1x8x128xf32> to vector<8x128xf32>
    %cst_141 = arith.constant dense<0.000000e+00> : vector<8x128xf32>
    %572 = tpu.matmul %556, %9, %cst_141 {dimension_numbers = #tpu.dot_dimension_numbers<[1], [0], [0], [1], [0, 0, 1, 1], [], []>} : vector<8x32xf32>, vector<32x128xf32>, vector<8x128xf32> -> vector<8x128xf32>
    %573 = arith.addf %571, %572 : vector<8x128xf32>
    %574 = vector.extract_strided_slice %573 {offsets = [0, 0], sizes = [8, 96], strides = [1, 1]} : vector<8x128xf32> to vector<8x96xf32>
    %575 = arith.negf %574 : vector<8x96xf32>
    %576 = math.exp %575 : vector<8x96xf32>
    %cst_142 = arith.constant 1.000000e+00 : f32
    %577 = vector.broadcast %cst_142 : f32 to vector<8x96xf32>
    %578 = arith.addf %577, %576 : vector<8x96xf32>
    %579 = arith.divf %577, %578 : vector<8x96xf32>
    %580 = vector.extract_strided_slice %573 {offsets = [0, 96], sizes = [8, 32], strides = [1, 1]} : vector<8x128xf32> to vector<8x32xf32>
    %581 = math.tanh %580 : vector<8x32xf32>
    %582 = vector.extract_strided_slice %579 {offsets = [0, 0], sizes = [8, 32], strides = [1, 1]} : vector<8x96xf32> to vector<8x32xf32>
    %583 = vector.extract_strided_slice %579 {offsets = [0, 32], sizes = [8, 32], strides = [1, 1]} : vector<8x96xf32> to vector<8x32xf32>
    %584 = vector.extract_strided_slice %579 {offsets = [0, 64], sizes = [8, 32], strides = [1, 1]} : vector<8x96xf32> to vector<8x32xf32>
    %585 = arith.mulf %583, %557 : vector<8x32xf32>
    %586 = arith.mulf %582, %581 : vector<8x32xf32>
    %587 = arith.addf %585, %586 : vector<8x32xf32>
    %588 = math.tanh %587 : vector<8x32xf32>
    %589 = arith.mulf %584, %588 : vector<8x32xf32>
    %590 = tpu.concatenate %556, %558 in 1 : vector<8x32xf32>, vector<8x32xf32> -> vector<8x64xf32>
    %cst_143 = arith.constant dense<0.000000e+00> : vector<8x128xf32>
    %591 = tpu.matmul %590, %10, %cst_143 {dimension_numbers = #tpu.dot_dimension_numbers<[1], [0], [0], [1], [0, 0, 1, 1], [], []>} : vector<8x64xf32>, vector<64x128xf32>, vector<8x128xf32> -> vector<8x128xf32>
    %592 = vector.broadcast %12 : vector<1x128xf32> to vector<8x128xf32>
    %593 = arith.addf %591, %592 : vector<8x128xf32>
    %594 = vector.extract_strided_slice %593 {offsets = [0, 0], sizes = [8, 96], strides = [1, 1]} : vector<8x128xf32> to vector<8x96xf32>
    %595 = arith.negf %594 : vector<8x96xf32>
    %596 = math.exp %595 : vector<8x96xf32>
    %cst_144 = arith.constant 1.000000e+00 : f32
    %597 = vector.broadcast %cst_144 : f32 to vector<8x96xf32>
    %598 = arith.addf %597, %596 : vector<8x96xf32>
    %599 = arith.divf %597, %598 : vector<8x96xf32>
    %600 = vector.extract_strided_slice %593 {offsets = [0, 96], sizes = [8, 32], strides = [1, 1]} : vector<8x128xf32> to vector<8x32xf32>
    %601 = math.tanh %600 : vector<8x32xf32>
    %602 = vector.extract_strided_slice %599 {offsets = [0, 0], sizes = [8, 32], strides = [1, 1]} : vector<8x96xf32> to vector<8x32xf32>
    %603 = vector.extract_strided_slice %599 {offsets = [0, 32], sizes = [8, 32], strides = [1, 1]} : vector<8x96xf32> to vector<8x32xf32>
    %604 = vector.extract_strided_slice %599 {offsets = [0, 64], sizes = [8, 32], strides = [1, 1]} : vector<8x96xf32> to vector<8x32xf32>
    %605 = arith.mulf %603, %559 : vector<8x32xf32>
    %606 = arith.mulf %602, %601 : vector<8x32xf32>
    %607 = arith.addf %605, %606 : vector<8x32xf32>
    %608 = math.tanh %607 : vector<8x32xf32>
    %609 = arith.mulf %604, %608 : vector<8x32xf32>
    %610 = tpu.concatenate %558, %560 in 1 : vector<8x32xf32>, vector<8x32xf32> -> vector<8x64xf32>
    %cst_145 = arith.constant dense<0.000000e+00> : vector<8x128xf32>
    %611 = tpu.matmul %610, %11, %cst_145 {dimension_numbers = #tpu.dot_dimension_numbers<[1], [0], [0], [1], [0, 0, 1, 1], [], []>} : vector<8x64xf32>, vector<64x128xf32>, vector<8x128xf32> -> vector<8x128xf32>
    %612 = vector.broadcast %13 : vector<1x128xf32> to vector<8x128xf32>
    %613 = arith.addf %611, %612 : vector<8x128xf32>
    %614 = vector.extract_strided_slice %613 {offsets = [0, 0], sizes = [8, 96], strides = [1, 1]} : vector<8x128xf32> to vector<8x96xf32>
    %615 = arith.negf %614 : vector<8x96xf32>
    %616 = math.exp %615 : vector<8x96xf32>
    %cst_146 = arith.constant 1.000000e+00 : f32
    %617 = vector.broadcast %cst_146 : f32 to vector<8x96xf32>
    %618 = arith.addf %617, %616 : vector<8x96xf32>
    %619 = arith.divf %617, %618 : vector<8x96xf32>
    %620 = vector.extract_strided_slice %613 {offsets = [0, 96], sizes = [8, 32], strides = [1, 1]} : vector<8x128xf32> to vector<8x32xf32>
    %621 = math.tanh %620 : vector<8x32xf32>
    %622 = vector.extract_strided_slice %619 {offsets = [0, 0], sizes = [8, 32], strides = [1, 1]} : vector<8x96xf32> to vector<8x32xf32>
    %623 = vector.extract_strided_slice %619 {offsets = [0, 32], sizes = [8, 32], strides = [1, 1]} : vector<8x96xf32> to vector<8x32xf32>
    %624 = vector.extract_strided_slice %619 {offsets = [0, 64], sizes = [8, 32], strides = [1, 1]} : vector<8x96xf32> to vector<8x32xf32>
    %625 = arith.mulf %623, %561 : vector<8x32xf32>
    %626 = arith.mulf %622, %621 : vector<8x32xf32>
    %627 = arith.addf %625, %626 : vector<8x32xf32>
    %628 = math.tanh %627 : vector<8x32xf32>
    %629 = arith.mulf %624, %628 : vector<8x32xf32>
    %c8_i32_147 = arith.constant 8 : i32
    %630 = arith.cmpi slt, %c7_i32_137, %c8_i32_147 : i32
    %c1_i32_148 = arith.constant 1 : i32
    %631 = arith.cmpi sge, %c7_i32_137, %c1_i32_148 : i32
    %c8_i32_149 = arith.constant 8 : i32
    %632 = arith.cmpi sle, %c7_i32_137, %c8_i32_149 : i32
    %633 = arith.andi %631, %632 : i1
    %c2_i32_150 = arith.constant 2 : i32
    %634 = arith.cmpi sge, %c7_i32_137, %c2_i32_150 : i32
    %635 = arith.select %630, %589, %556 : vector<8x32xf32>
    %636 = arith.select %630, %587, %557 : vector<8x32xf32>
    %637 = arith.select %633, %609, %558 : vector<8x32xf32>
    %638 = arith.select %633, %607, %559 : vector<8x32xf32>
    %639 = arith.select %634, %629, %560 : vector<8x32xf32>
    %640 = arith.select %634, %627, %561 : vector<8x32xf32>
    %c2_i32_151 = arith.constant 2 : i32
    %641 = arith.subi %c7_i32_137, %c2_i32_151 : i32
    %c0_i32_152 = arith.constant 0 : i32
    %642 = arith.maxsi %641, %c0_i32_152 : i32
    %643 = arith.index_cast %642 : i32 to index
    %c0_153 = arith.constant 0 : index
    %c0_154 = arith.constant 0 : index
    %644 = vector.load %arg21[%643, %c0_153, %c0_154] : memref<8x8x32xf32, #tpu.memory_space<vmem>>, vector<1x8x32xf32>
    %645 = vector.shape_cast %644 : vector<1x8x32xf32> to vector<8x32xf32>
    %646 = vector.shape_cast %639 : vector<8x32xf32> to vector<1x8x32xf32>
    tpu.vector_store %arg21[%643, %c0_153, %c0_154], %646 {strides = array<i32>} : memref<8x8x32xf32, #tpu.memory_space<vmem>>, vector<1x8x32xf32>,
    %c8_i32_155 = arith.constant 8 : i32
    %c7_i32_156 = arith.constant 7 : i32
    %647 = arith.minsi %c8_i32_155, %c7_i32_156 : i32
    %648 = arith.index_cast %647 : i32 to index
    %c0_157 = arith.constant 0 : index
    %c0_158 = arith.constant 0 : index
    %649 = vector.load %arg20[%648, %c0_157, %c0_158] : memref<8x8x128xf32, #tpu.memory_space<vmem>>, vector<1x8x128xf32>
    %650 = vector.shape_cast %649 : vector<1x8x128xf32> to vector<8x128xf32>
    %cst_159 = arith.constant dense<0.000000e+00> : vector<8x128xf32>
    %651 = tpu.matmul %635, %9, %cst_159 {dimension_numbers = #tpu.dot_dimension_numbers<[1], [0], [0], [1], [0, 0, 1, 1], [], []>} : vector<8x32xf32>, vector<32x128xf32>, vector<8x128xf32> -> vector<8x128xf32>
    %652 = arith.addf %650, %651 : vector<8x128xf32>
    %653 = vector.extract_strided_slice %652 {offsets = [0, 0], sizes = [8, 96], strides = [1, 1]} : vector<8x128xf32> to vector<8x96xf32>
    %654 = arith.negf %653 : vector<8x96xf32>
    %655 = math.exp %654 : vector<8x96xf32>
    %cst_160 = arith.constant 1.000000e+00 : f32
    %656 = vector.broadcast %cst_160 : f32 to vector<8x96xf32>
    %657 = arith.addf %656, %655 : vector<8x96xf32>
    %658 = arith.divf %656, %657 : vector<8x96xf32>
    %659 = vector.extract_strided_slice %652 {offsets = [0, 96], sizes = [8, 32], strides = [1, 1]} : vector<8x128xf32> to vector<8x32xf32>
    %660 = math.tanh %659 : vector<8x32xf32>
    %661 = vector.extract_strided_slice %658 {offsets = [0, 0], sizes = [8, 32], strides = [1, 1]} : vector<8x96xf32> to vector<8x32xf32>
    %662 = vector.extract_strided_slice %658 {offsets = [0, 32], sizes = [8, 32], strides = [1, 1]} : vector<8x96xf32> to vector<8x32xf32>
    %663 = vector.extract_strided_slice %658 {offsets = [0, 64], sizes = [8, 32], strides = [1, 1]} : vector<8x96xf32> to vector<8x32xf32>
    %664 = arith.mulf %662, %636 : vector<8x32xf32>
    %665 = arith.mulf %661, %660 : vector<8x32xf32>
    %666 = arith.addf %664, %665 : vector<8x32xf32>
    %667 = math.tanh %666 : vector<8x32xf32>
    %668 = arith.mulf %663, %667 : vector<8x32xf32>
    %669 = tpu.concatenate %635, %637 in 1 : vector<8x32xf32>, vector<8x32xf32> -> vector<8x64xf32>
    %cst_161 = arith.constant dense<0.000000e+00> : vector<8x128xf32>
    %670 = tpu.matmul %669, %10, %cst_161 {dimension_numbers = #tpu.dot_dimension_numbers<[1], [0], [0], [1], [0, 0, 1, 1], [], []>} : vector<8x64xf32>, vector<64x128xf32>, vector<8x128xf32> -> vector<8x128xf32>
    %671 = vector.broadcast %12 : vector<1x128xf32> to vector<8x128xf32>
    %672 = arith.addf %670, %671 : vector<8x128xf32>
    %673 = vector.extract_strided_slice %672 {offsets = [0, 0], sizes = [8, 96], strides = [1, 1]} : vector<8x128xf32> to vector<8x96xf32>
    %674 = arith.negf %673 : vector<8x96xf32>
    %675 = math.exp %674 : vector<8x96xf32>
    %cst_162 = arith.constant 1.000000e+00 : f32
    %676 = vector.broadcast %cst_162 : f32 to vector<8x96xf32>
    %677 = arith.addf %676, %675 : vector<8x96xf32>
    %678 = arith.divf %676, %677 : vector<8x96xf32>
    %679 = vector.extract_strided_slice %672 {offsets = [0, 96], sizes = [8, 32], strides = [1, 1]} : vector<8x128xf32> to vector<8x32xf32>
    %680 = math.tanh %679 : vector<8x32xf32>
    %681 = vector.extract_strided_slice %678 {offsets = [0, 0], sizes = [8, 32], strides = [1, 1]} : vector<8x96xf32> to vector<8x32xf32>
    %682 = vector.extract_strided_slice %678 {offsets = [0, 32], sizes = [8, 32], strides = [1, 1]} : vector<8x96xf32> to vector<8x32xf32>
    %683 = vector.extract_strided_slice %678 {offsets = [0, 64], sizes = [8, 32], strides = [1, 1]} : vector<8x96xf32> to vector<8x32xf32>
    %684 = arith.mulf %682, %638 : vector<8x32xf32>
    %685 = arith.mulf %681, %680 : vector<8x32xf32>
    %686 = arith.addf %684, %685 : vector<8x32xf32>
    %687 = math.tanh %686 : vector<8x32xf32>
    %688 = arith.mulf %683, %687 : vector<8x32xf32>
    %689 = tpu.concatenate %637, %639 in 1 : vector<8x32xf32>, vector<8x32xf32> -> vector<8x64xf32>
    %cst_163 = arith.constant dense<0.000000e+00> : vector<8x128xf32>
    %690 = tpu.matmul %689, %11, %cst_163 {dimension_numbers = #tpu.dot_dimension_numbers<[1], [0], [0], [1], [0, 0, 1, 1], [], []>} : vector<8x64xf32>, vector<64x128xf32>, vector<8x128xf32> -> vector<8x128xf32>
    %691 = vector.broadcast %13 : vector<1x128xf32> to vector<8x128xf32>
    %692 = arith.addf %690, %691 : vector<8x128xf32>
    %693 = vector.extract_strided_slice %692 {offsets = [0, 0], sizes = [8, 96], strides = [1, 1]} : vector<8x128xf32> to vector<8x96xf32>
    %694 = arith.negf %693 : vector<8x96xf32>
    %695 = math.exp %694 : vector<8x96xf32>
    %cst_164 = arith.constant 1.000000e+00 : f32
    %696 = vector.broadcast %cst_164 : f32 to vector<8x96xf32>
    %697 = arith.addf %696, %695 : vector<8x96xf32>
    %698 = arith.divf %696, %697 : vector<8x96xf32>
    %699 = vector.extract_strided_slice %692 {offsets = [0, 96], sizes = [8, 32], strides = [1, 1]} : vector<8x128xf32> to vector<8x32xf32>
    %700 = math.tanh %699 : vector<8x32xf32>
    %701 = vector.extract_strided_slice %698 {offsets = [0, 0], sizes = [8, 32], strides = [1, 1]} : vector<8x96xf32> to vector<8x32xf32>
    %702 = vector.extract_strided_slice %698 {offsets = [0, 32], sizes = [8, 32], strides = [1, 1]} : vector<8x96xf32> to vector<8x32xf32>
    %703 = vector.extract_strided_slice %698 {offsets = [0, 64], sizes = [8, 32], strides = [1, 1]} : vector<8x96xf32> to vector<8x32xf32>
    %704 = arith.mulf %702, %640 : vector<8x32xf32>
    %705 = arith.mulf %701, %700 : vector<8x32xf32>
    %706 = arith.addf %704, %705 : vector<8x32xf32>
    %707 = math.tanh %706 : vector<8x32xf32>
    %708 = arith.mulf %703, %707 : vector<8x32xf32>
    %c8_i32_165 = arith.constant 8 : i32
    %709 = arith.cmpi slt, %c8_i32_155, %c8_i32_165 : i32
    %c1_i32_166 = arith.constant 1 : i32
    %710 = arith.cmpi sge, %c8_i32_155, %c1_i32_166 : i32
    %c8_i32_167 = arith.constant 8 : i32
    %711 = arith.cmpi sle, %c8_i32_155, %c8_i32_167 : i32
    %712 = arith.andi %710, %711 : i1
    %c2_i32_168 = arith.constant 2 : i32
    %713 = arith.cmpi sge, %c8_i32_155, %c2_i32_168 : i32
    %714 = arith.select %709, %668, %635 : vector<8x32xf32>
    %715 = arith.select %709, %666, %636 : vector<8x32xf32>
    %716 = arith.select %712, %688, %637 : vector<8x32xf32>
    %717 = arith.select %712, %686, %638 : vector<8x32xf32>
    %718 = arith.select %713, %708, %639 : vector<8x32xf32>
    %719 = arith.select %713, %706, %640 : vector<8x32xf32>
    %c2_i32_169 = arith.constant 2 : i32
    %720 = arith.subi %c8_i32_155, %c2_i32_169 : i32
    %c0_i32_170 = arith.constant 0 : i32
    %721 = arith.maxsi %720, %c0_i32_170 : i32
    %722 = arith.index_cast %721 : i32 to index
    %c0_171 = arith.constant 0 : index
    %c0_172 = arith.constant 0 : index
    %723 = vector.load %arg21[%722, %c0_171, %c0_172] : memref<8x8x32xf32, #tpu.memory_space<vmem>>, vector<1x8x32xf32>
    %724 = vector.shape_cast %723 : vector<1x8x32xf32> to vector<8x32xf32>
    %725 = vector.shape_cast %718 : vector<8x32xf32> to vector<1x8x32xf32>
    tpu.vector_store %arg21[%722, %c0_171, %c0_172], %725 {strides = array<i32>} : memref<8x8x32xf32, #tpu.memory_space<vmem>>, vector<1x8x32xf32>,
    %c9_i32 = arith.constant 9 : i32
    %c7_i32_173 = arith.constant 7 : i32
    %726 = arith.minsi %c9_i32, %c7_i32_173 : i32
    %727 = arith.index_cast %726 : i32 to index
    %c0_174 = arith.constant 0 : index
    %c0_175 = arith.constant 0 : index
    %728 = vector.load %arg20[%727, %c0_174, %c0_175] : memref<8x8x128xf32, #tpu.memory_space<vmem>>, vector<1x8x128xf32>
    %729 = vector.shape_cast %728 : vector<1x8x128xf32> to vector<8x128xf32>
    %cst_176 = arith.constant dense<0.000000e+00> : vector<8x128xf32>
    %730 = tpu.matmul %714, %9, %cst_176 {dimension_numbers = #tpu.dot_dimension_numbers<[1], [0], [0], [1], [0, 0, 1, 1], [], []>} : vector<8x32xf32>, vector<32x128xf32>, vector<8x128xf32> -> vector<8x128xf32>
    %731 = arith.addf %729, %730 : vector<8x128xf32>
    %732 = vector.extract_strided_slice %731 {offsets = [0, 0], sizes = [8, 96], strides = [1, 1]} : vector<8x128xf32> to vector<8x96xf32>
    %733 = arith.negf %732 : vector<8x96xf32>
    %734 = math.exp %733 : vector<8x96xf32>
    %cst_177 = arith.constant 1.000000e+00 : f32
    %735 = vector.broadcast %cst_177 : f32 to vector<8x96xf32>
    %736 = arith.addf %735, %734 : vector<8x96xf32>
    %737 = arith.divf %735, %736 : vector<8x96xf32>
    %738 = vector.extract_strided_slice %731 {offsets = [0, 96], sizes = [8, 32], strides = [1, 1]} : vector<8x128xf32> to vector<8x32xf32>
    %739 = math.tanh %738 : vector<8x32xf32>
    %740 = vector.extract_strided_slice %737 {offsets = [0, 0], sizes = [8, 32], strides = [1, 1]} : vector<8x96xf32> to vector<8x32xf32>
    %741 = vector.extract_strided_slice %737 {offsets = [0, 32], sizes = [8, 32], strides = [1, 1]} : vector<8x96xf32> to vector<8x32xf32>
    %742 = vector.extract_strided_slice %737 {offsets = [0, 64], sizes = [8, 32], strides = [1, 1]} : vector<8x96xf32> to vector<8x32xf32>
    %743 = arith.mulf %741, %715 : vector<8x32xf32>
    %744 = arith.mulf %740, %739 : vector<8x32xf32>
    %745 = arith.addf %743, %744 : vector<8x32xf32>
    %746 = math.tanh %745 : vector<8x32xf32>
    %747 = arith.mulf %742, %746 : vector<8x32xf32>
    %748 = tpu.concatenate %714, %716 in 1 : vector<8x32xf32>, vector<8x32xf32> -> vector<8x64xf32>
    %cst_178 = arith.constant dense<0.000000e+00> : vector<8x128xf32>
    %749 = tpu.matmul %748, %10, %cst_178 {dimension_numbers = #tpu.dot_dimension_numbers<[1], [0], [0], [1], [0, 0, 1, 1], [], []>} : vector<8x64xf32>, vector<64x128xf32>, vector<8x128xf32> -> vector<8x128xf32>
    %750 = vector.broadcast %12 : vector<1x128xf32> to vector<8x128xf32>
    %751 = arith.addf %749, %750 : vector<8x128xf32>
    %752 = vector.extract_strided_slice %751 {offsets = [0, 0], sizes = [8, 96], strides = [1, 1]} : vector<8x128xf32> to vector<8x96xf32>
    %753 = arith.negf %752 : vector<8x96xf32>
    %754 = math.exp %753 : vector<8x96xf32>
    %cst_179 = arith.constant 1.000000e+00 : f32
    %755 = vector.broadcast %cst_179 : f32 to vector<8x96xf32>
    %756 = arith.addf %755, %754 : vector<8x96xf32>
    %757 = arith.divf %755, %756 : vector<8x96xf32>
    %758 = vector.extract_strided_slice %751 {offsets = [0, 96], sizes = [8, 32], strides = [1, 1]} : vector<8x128xf32> to vector<8x32xf32>
    %759 = math.tanh %758 : vector<8x32xf32>
    %760 = vector.extract_strided_slice %757 {offsets = [0, 0], sizes = [8, 32], strides = [1, 1]} : vector<8x96xf32> to vector<8x32xf32>
    %761 = vector.extract_strided_slice %757 {offsets = [0, 32], sizes = [8, 32], strides = [1, 1]} : vector<8x96xf32> to vector<8x32xf32>
    %762 = vector.extract_strided_slice %757 {offsets = [0, 64], sizes = [8, 32], strides = [1, 1]} : vector<8x96xf32> to vector<8x32xf32>
    %763 = arith.mulf %761, %717 : vector<8x32xf32>
    %764 = arith.mulf %760, %759 : vector<8x32xf32>
    %765 = arith.addf %763, %764 : vector<8x32xf32>
    %766 = math.tanh %765 : vector<8x32xf32>
    %767 = arith.mulf %762, %766 : vector<8x32xf32>
    %768 = tpu.concatenate %716, %718 in 1 : vector<8x32xf32>, vector<8x32xf32> -> vector<8x64xf32>
    %cst_180 = arith.constant dense<0.000000e+00> : vector<8x128xf32>
    %769 = tpu.matmul %768, %11, %cst_180 {dimension_numbers = #tpu.dot_dimension_numbers<[1], [0], [0], [1], [0, 0, 1, 1], [], []>} : vector<8x64xf32>, vector<64x128xf32>, vector<8x128xf32> -> vector<8x128xf32>
    %770 = vector.broadcast %13 : vector<1x128xf32> to vector<8x128xf32>
    %771 = arith.addf %769, %770 : vector<8x128xf32>
    %772 = vector.extract_strided_slice %771 {offsets = [0, 0], sizes = [8, 96], strides = [1, 1]} : vector<8x128xf32> to vector<8x96xf32>
    %773 = arith.negf %772 : vector<8x96xf32>
    %774 = math.exp %773 : vector<8x96xf32>
    %cst_181 = arith.constant 1.000000e+00 : f32
    %775 = vector.broadcast %cst_181 : f32 to vector<8x96xf32>
    %776 = arith.addf %775, %774 : vector<8x96xf32>
    %777 = arith.divf %775, %776 : vector<8x96xf32>
    %778 = vector.extract_strided_slice %771 {offsets = [0, 96], sizes = [8, 32], strides = [1, 1]} : vector<8x128xf32> to vector<8x32xf32>
    %779 = math.tanh %778 : vector<8x32xf32>
    %780 = vector.extract_strided_slice %777 {offsets = [0, 0], sizes = [8, 32], strides = [1, 1]} : vector<8x96xf32> to vector<8x32xf32>
    %781 = vector.extract_strided_slice %777 {offsets = [0, 32], sizes = [8, 32], strides = [1, 1]} : vector<8x96xf32> to vector<8x32xf32>
    %782 = vector.extract_strided_slice %777 {offsets = [0, 64], sizes = [8, 32], strides = [1, 1]} : vector<8x96xf32> to vector<8x32xf32>
    %783 = arith.mulf %781, %719 : vector<8x32xf32>
    %784 = arith.mulf %780, %779 : vector<8x32xf32>
    %785 = arith.addf %783, %784 : vector<8x32xf32>
    %786 = math.tanh %785 : vector<8x32xf32>
    %787 = arith.mulf %782, %786 : vector<8x32xf32>
    %c8_i32_182 = arith.constant 8 : i32
    %788 = arith.cmpi slt, %c9_i32, %c8_i32_182 : i32
    %c1_i32_183 = arith.constant 1 : i32
    %789 = arith.cmpi sge, %c9_i32, %c1_i32_183 : i32
    %c8_i32_184 = arith.constant 8 : i32
    %790 = arith.cmpi sle, %c9_i32, %c8_i32_184 : i32
    %791 = arith.andi %789, %790 : i1
    %c2_i32_185 = arith.constant 2 : i32
    %792 = arith.cmpi sge, %c9_i32, %c2_i32_185 : i32
    %793 = arith.select %788, %747, %714 : vector<8x32xf32>
    %794 = arith.select %788, %745, %715 : vector<8x32xf32>
    %795 = arith.select %791, %767, %716 : vector<8x32xf32>
    %796 = arith.select %791, %765, %717 : vector<8x32xf32>
    %797 = arith.select %792, %787, %718 : vector<8x32xf32>
    %798 = arith.select %792, %785, %719 : vector<8x32xf32>
    %c2_i32_186 = arith.constant 2 : i32
    %799 = arith.subi %c9_i32, %c2_i32_186 : i32
    %c0_i32_187 = arith.constant 0 : i32
    %800 = arith.maxsi %799, %c0_i32_187 : i32
    %801 = arith.index_cast %800 : i32 to index
    %c0_188 = arith.constant 0 : index
    %c0_189 = arith.constant 0 : index
    %802 = vector.load %arg21[%801, %c0_188, %c0_189] : memref<8x8x32xf32, #tpu.memory_space<vmem>>, vector<1x8x32xf32>
    %803 = vector.shape_cast %802 : vector<1x8x32xf32> to vector<8x32xf32>
    %804 = vector.shape_cast %797 : vector<8x32xf32> to vector<1x8x32xf32>
    tpu.vector_store %arg21[%801, %c0_188, %c0_189], %804 {strides = array<i32>} : memref<8x8x32xf32, #tpu.memory_space<vmem>>, vector<1x8x32xf32>,
    %c10_i32 = arith.constant 10 : i32
    %c0_190 = arith.constant 0 : index
    %c0_191 = arith.constant 0 : index
    %c0_192 = arith.constant 0 : index
    %805 = vector.load %arg21[%c0_190, %c0_191, %c0_192] : memref<8x8x32xf32, #tpu.memory_space<vmem>>, vector<8x8x32xf32>
    %806 = vector.shape_cast %805 : vector<8x8x32xf32> to vector<64x32xf32>
    %c0_193 = arith.constant 0 : index
    %c0_194 = arith.constant 0 : index
    %807 = vector.load %arg2[%c0_193, %c0_194] : memref<8x4xf32, #tpu.memory_space<vmem>>, vector<8x4xf32>
    %c0_195 = arith.constant 0 : index
    %c0_196 = arith.constant 0 : index
    %808 = vector.load %arg11[%c0_195, %c0_196] : memref<4x32xf32, #tpu.memory_space<vmem>>, vector<4x32xf32>
    %cst_197 = arith.constant dense<0.000000e+00> : vector<8x32xf32>
    %809 = tpu.matmul %807, %808, %cst_197 {dimension_numbers = #tpu.dot_dimension_numbers<[1], [0], [0], [1], [0, 0, 1, 1], [], []>} : vector<8x4xf32>, vector<4x32xf32>, vector<8x32xf32> -> vector<8x32xf32>
    %c0_198 = arith.constant 0 : index
    %c0_199 = arith.constant 0 : index
    %810 = vector.load %arg12[%c0_198, %c0_199] : memref<1x32xf32, #tpu.memory_space<vmem>>, vector<1x32xf32>
    %811 = vector.broadcast %810 : vector<1x32xf32> to vector<8x32xf32>
    %812 = arith.addf %809, %811 : vector<8x32xf32>
    %c0_200 = arith.constant 0 : index
    %c0_201 = arith.constant 0 : index
    %813 = vector.load %arg10[%c0_200, %c0_201] : memref<32x32xf32, #tpu.memory_space<vmem>>, vector<32x32xf32>
    %cst_202 = arith.constant dense<0.000000e+00> : vector<64x32xf32>
    %814 = tpu.matmul %806, %813, %cst_202 {dimension_numbers = #tpu.dot_dimension_numbers<[1], [0], [0], [1], [0, 0, 1, 1], [], []>} : vector<64x32xf32>, vector<32x32xf32>, vector<64x32xf32> -> vector<64x32xf32>
    %815 = vector.shape_cast %814 : vector<64x32xf32> to vector<8x8x32xf32>
    %816 = vector.shape_cast %812 : vector<8x32xf32> to vector<1x8x32xf32>
    %817 = vector.broadcast %816 : vector<1x8x32xf32> to vector<8x8x32xf32>
    %818 = arith.addf %815, %817 : vector<8x8x32xf32>
    %cst_203 = arith.constant 0.000000e+00 : f32
    %819 = vector.broadcast %cst_203 : f32 to vector<8x8x32xf32>
    %820 = arith.maximumf %818, %819 : vector<8x8x32xf32>
    %821 = vector.shape_cast %820 : vector<8x8x32xf32> to vector<64x32xf32>
    %c0_204 = arith.constant 0 : index
    %c0_205 = arith.constant 0 : index
    %822 = vector.load %arg13[%c0_204, %c0_205] : memref<32x32xf32, #tpu.memory_space<vmem>>, vector<32x32xf32>
    %cst_206 = arith.constant dense<0.000000e+00> : vector<64x32xf32>
    %823 = tpu.matmul %821, %822, %cst_206 {dimension_numbers = #tpu.dot_dimension_numbers<[1], [0], [0], [1], [0, 0, 1, 1], [], []>} : vector<64x32xf32>, vector<32x32xf32>, vector<64x32xf32> -> vector<64x32xf32>
    %c0_207 = arith.constant 0 : index
    %c0_208 = arith.constant 0 : index
    %824 = vector.load %arg14[%c0_207, %c0_208] : memref<1x32xf32, #tpu.memory_space<vmem>>, vector<1x32xf32>
    %825 = vector.broadcast %824 : vector<1x32xf32> to vector<64x32xf32>
    %826 = arith.addf %823, %825 : vector<64x32xf32>
    %cst_209 = arith.constant 0.000000e+00 : f32
    %827 = vector.broadcast %cst_209 : f32 to vector<64x32xf32>
    %828 = arith.maximumf %826, %827 : vector<64x32xf32>
    %c0_210 = arith.constant 0 : index
    %c0_211 = arith.constant 0 : index
    %829 = vector.load %arg15[%c0_210, %c0_211] : memref<32x32xf32, #tpu.memory_space<vmem>>, vector<32x32xf32>
    %cst_212 = arith.constant dense<0.000000e+00> : vector<64x32xf32>
    %830 = tpu.matmul %828, %829, %cst_212 {dimension_numbers = #tpu.dot_dimension_numbers<[1], [0], [0], [1], [0, 0, 1, 1], [], []>} : vector<64x32xf32>, vector<32x32xf32>, vector<64x32xf32> -> vector<64x32xf32>
    %c0_213 = arith.constant 0 : index
    %c0_214 = arith.constant 0 : index
    %831 = vector.load %arg16[%c0_213, %c0_214] : memref<1x32xf32, #tpu.memory_space<vmem>>, vector<1x32xf32>
    %832 = vector.broadcast %831 : vector<1x32xf32> to vector<64x32xf32>
    %833 = arith.addf %830, %832 : vector<64x32xf32>
    %cst_215 = arith.constant 0.000000e+00 : f32
    %834 = vector.broadcast %cst_215 : f32 to vector<64x32xf32>
    %835 = arith.maximumf %833, %834 : vector<64x32xf32>
    %836 = vector.shape_cast %835 : vector<64x32xf32> to vector<8x8x32xf32>
    %c0_216 = arith.constant 0 : index
    %c0_217 = arith.constant 0 : index
    %837 = vector.load %arg17[%c0_216, %c0_217] : memref<1x32xf32, #tpu.memory_space<vmem>>, vector<1x32xf32>
    %838 = vector.shape_cast %837 : vector<1x32xf32> to vector<1x1x32xf32>
    %839 = vector.broadcast %838 : vector<1x1x32xf32> to vector<8x8x32xf32>
    %840 = arith.mulf %836, %839 : vector<8x8x32xf32>
    %cst_218 = arith.constant dense<0.000000e+00> : vector<8x8xf32>
    %841 = vector.multi_reduction <add>, %840, %cst_218 [2] : vector<8x8x32xf32> to vector<8x8xf32>
    %c0_219 = arith.constant 0 : index
    %c0_220 = arith.constant 0 : index
    %842 = vector.load %arg18[%c0_219, %c0_220] : memref<1x1xf32, #tpu.memory_space<vmem>>, vector<1x1xf32>
    %843 = vector.broadcast %842 : vector<1x1xf32> to vector<8x8xf32>
    %844 = arith.addf %841, %843 : vector<8x8xf32>
    %845 = arith.negf %844 : vector<8x8xf32>
    %846 = math.exp %845 : vector<8x8xf32>
    %cst_221 = arith.constant 1.000000e+00 : f32
    %847 = vector.broadcast %cst_221 : f32 to vector<8x8xf32>
    %848 = arith.addf %847, %846 : vector<8x8xf32>
    %849 = arith.divf %847, %848 : vector<8x8xf32>
    %c0_222 = arith.constant 0 : index
    %c0_223 = arith.constant 0 : index
    %850 = vector.load %arg19[%c0_222, %c0_223] : memref<8x8xf32, #tpu.memory_space<vmem>>, vector<8x8xf32>
    tpu.vector_store %arg19[%c0_222, %c0_223], %849 {strides = array<i32>} : memref<8x8xf32, #tpu.memory_space<vmem>>, vector<8x8xf32>,
    return
  }
  func.func @transform_0(%arg0: i32) -> (i32, i32, i32) {
    %c0_i32 = arith.constant 0 : i32
    %c0_i32_0 = arith.constant 0 : i32
    %c0_i32_1 = arith.constant 0 : i32
    return %c0_i32, %arg0, %c0_i32_0 : i32, i32, i32
  }
  func.func @transform_1(%arg0: i32) -> (i32, i32) {
    %c0_i32 = arith.constant 0 : i32
    %c0_i32_0 = arith.constant 0 : i32
    return %arg0, %c0_i32 : i32, i32
  }
  func.func @transform_2(%arg0: i32) -> (i32, i32) {
    %c0_i32 = arith.constant 0 : i32
    %c0_i32_0 = arith.constant 0 : i32
    %c0_i32_1 = arith.constant 0 : i32
    return %c0_i32, %c0_i32_0 : i32, i32
  }
  func.func @transform_3(%arg0: i32) -> (i32, i32) {
    %c0_i32 = arith.constant 0 : i32
    %c0_i32_0 = arith.constant 0 : i32
    %c0_i32_1 = arith.constant 0 : i32
    return %c0_i32, %c0_i32_0 : i32, i32
  }
  func.func @transform_4(%arg0: i32) -> (i32, i32) {
    %c0_i32 = arith.constant 0 : i32
    %c0_i32_0 = arith.constant 0 : i32
    %c0_i32_1 = arith.constant 0 : i32
    return %c0_i32, %c0_i32_0 : i32, i32
  }
  func.func @transform_5(%arg0: i32) -> (i32, i32) {
    %c0_i32 = arith.constant 0 : i32
    %c0_i32_0 = arith.constant 0 : i32
    %c0_i32_1 = arith.constant 0 : i32
    return %c0_i32, %c0_i32_0 : i32, i32
  }
  func.func @transform_6(%arg0: i32) -> (i32, i32) {
    %c0_i32 = arith.constant 0 : i32
    %c0_i32_0 = arith.constant 0 : i32
    %c0_i32_1 = arith.constant 0 : i32
    return %c0_i32, %c0_i32_0 : i32, i32
  }
  func.func @transform_7(%arg0: i32) -> (i32, i32) {
    %c0_i32 = arith.constant 0 : i32
    %c0_i32_0 = arith.constant 0 : i32
    %c0_i32_1 = arith.constant 0 : i32
    return %c0_i32, %c0_i32_0 : i32, i32
  }
  func.func @transform_8(%arg0: i32) -> (i32, i32) {
    %c0_i32 = arith.constant 0 : i32
    %c0_i32_0 = arith.constant 0 : i32
    %c0_i32_1 = arith.constant 0 : i32
    return %c0_i32, %c0_i32_0 : i32, i32
  }
  func.func @transform_9(%arg0: i32) -> (i32, i32) {
    %c0_i32 = arith.constant 0 : i32
    %c0_i32_0 = arith.constant 0 : i32
    %c0_i32_1 = arith.constant 0 : i32
    return %c0_i32, %c0_i32_0 : i32, i32
  }
  func.func @transform_10(%arg0: i32) -> (i32, i32) {
    %c0_i32 = arith.constant 0 : i32
    %c0_i32_0 = arith.constant 0 : i32
    %c0_i32_1 = arith.constant 0 : i32
    return %c0_i32, %c0_i32_0 : i32, i32
  }
  func.func @transform_11(%arg0: i32) -> (i32, i32) {
    %c0_i32 = arith.constant 0 : i32
    %c0_i32_0 = arith.constant 0 : i32
    %c0_i32_1 = arith.constant 0 : i32
    return %c0_i32, %c0_i32_0 : i32, i32
  }
  func.func @transform_12(%arg0: i32) -> (i32, i32) {
    %c0_i32 = arith.constant 0 : i32
    %c0_i32_0 = arith.constant 0 : i32
    %c0_i32_1 = arith.constant 0 : i32
    return %c0_i32, %c0_i32_0 : i32, i32
  }
  func.func @transform_13(%arg0: i32) -> (i32, i32) {
    %c0_i32 = arith.constant 0 : i32
    %c0_i32_0 = arith.constant 0 : i32
    %c0_i32_1 = arith.constant 0 : i32
    return %c0_i32, %c0_i32_0 : i32, i32
  }
  func.func @transform_14(%arg0: i32) -> (i32, i32) {
    %c0_i32 = arith.constant 0 : i32
    %c0_i32_0 = arith.constant 0 : i32
    %c0_i32_1 = arith.constant 0 : i32
    return %c0_i32, %c0_i32_0 : i32, i32
  }
  func.func @transform_15(%arg0: i32) -> (i32, i32) {
    %c0_i32 = arith.constant 0 : i32
    %c0_i32_0 = arith.constant 0 : i32
    %c0_i32_1 = arith.constant 0 : i32
    return %c0_i32, %c0_i32_0 : i32, i32
  }
  func.func @transform_16(%arg0: i32) -> (i32, i32) {
    %c0_i32 = arith.constant 0 : i32
    %c0_i32_0 = arith.constant 0 : i32
    %c0_i32_1 = arith.constant 0 : i32
    return %c0_i32, %c0_i32_0 : i32, i32
  }
  func.func @transform_17(%arg0: i32) -> (i32, i32) {
    %c0_i32 = arith.constant 0 : i32
    %c0_i32_0 = arith.constant 0 : i32
    %c0_i32_1 = arith.constant 0 : i32
    return %c0_i32, %c0_i32_0 : i32, i32
  }
  func.func @transform_18(%arg0: i32) -> (i32, i32) {
    %c0_i32 = arith.constant 0 : i32
    %c0_i32_0 = arith.constant 0 : i32
    return %c0_i32, %arg0 : i32, i32
  }
}

</mosaic_0001>

<llo_original>
// kernel: baseline_forward.1
$region0: #{baseline_forward.1}
  #allocation0 [shape = 'u32[]', space=smem, size = 0x4, offset = 0x4, fixed_abs, tag = 'smem constant byte address 0x4 - core index']
  #allocation1 [shape = 'u32[72,128]{1,0:T(1,128)}', space=vmem, size = 0x9000, scoped, tag = 'internal scratch']
  #allocation2 [shape = 'f32[8,8,128]{2,1,0:T(8,128)}', space=vmem, size = 0x8000, scoped, tag = 'scratch operand']
  #allocation3 [shape = 'f32[8,8,32]{2,1,0:T(8,128)}', space=vmem, size = 0x8000, scoped, tag = 'scratch operand']
  #allocation4 [shape = 'f32[1,1]{1,0:T(1,128)S(1)}', space=vmem, size = 0x200, scoped, tag = 'scoped memory for baseline_forward.1']
  %s0 = inlined_call_operand.vmem [shape: f32[8,8,8], index: 0, kind: input, shape index: {}]
  %s1 = inlined_call_operand.vmem [shape: f32[8,4], index: 1, kind: input, shape index: {}]
  %s2 = inlined_call_operand.vmem [shape: f32[8,128], index: 2, kind: input, shape index: {}]
  %s3 = inlined_call_operand.vmem [shape: f32[32,128], index: 3, kind: input, shape index: {}]
  %s4 = inlined_call_operand.vmem [shape: f32[1,128], index: 4, kind: input, shape index: {}]
  %s5 = inlined_call_operand.vmem [shape: f32[64,128], index: 5, kind: input, shape index: {}]
  %s6 = inlined_call_operand.vmem [shape: f32[1,128], index: 6, kind: input, shape index: {}]
  %s7 = inlined_call_operand.vmem [shape: f32[64,128], index: 7, kind: input, shape index: {}]
  %s8 = inlined_call_operand.vmem [shape: f32[1,128], index: 8, kind: input, shape index: {}]
  %s9 = inlined_call_operand.vmem [shape: f32[32,32], index: 9, kind: input, shape index: {}]
  %s10 = inlined_call_operand.vmem [shape: f32[4,32], index: 10, kind: input, shape index: {}]
  %s11 = inlined_call_operand.vmem [shape: f32[1,32], index: 11, kind: input, shape index: {}]
  %s12 = inlined_call_operand.vmem [shape: f32[32,32], index: 12, kind: input, shape index: {}]
  %s13 = inlined_call_operand.vmem [shape: f32[1,32], index: 13, kind: input, shape index: {}]
  %s14 = inlined_call_operand.vmem [shape: f32[32,32], index: 14, kind: input, shape index: {}]
  %s15 = inlined_call_operand.vmem [shape: f32[1,32], index: 15, kind: input, shape index: {}]
  %s16 = inlined_call_operand.vmem [shape: f32[1,32], index: 16, kind: input, shape index: {}]
  %s17 = inlined_call_operand.<no memory space> [shape: f32[1,1], index: 17, kind: input, shape index: {}]
  %s18 = inlined_call_operand.vmem [shape: f32[8,8], index: 18, kind: output, shape index: {}]
  %s19 = sld [smem:[#allocation0]]
  $region82: #{baseline_forward.1} parent=0
    _
  %s21 = ssub.s32 1, %s19
  %s22 = scalar_select 0, %s21, %s19
  %v23 = vstv %s17
  %24 = vst [vmem:[#allocation4] sm:$0x1] %v23
  // Predicated region
  $region2: #{baseline_forward.1} parent=0 // pred_check
    _
  $region3: #{baseline_forward.1} parent=0 // pred_check_branch
    %26 = sbr.rel (0) target = $region5
  $region4: #{baseline_forward.1} parent=0 // pred_region
    _
  $region5: #{baseline_forward.1} parent=0 // pred_fallthru
    _
  // Predicated region
  $region6: #{baseline_forward.1} parent=0 // pred_check
    _
  $region7: #{baseline_forward.1} parent=0 // pred_check_branch
    %28 = sbr.rel (0) target = $region9
  $region8: #{baseline_forward.1} parent=0 // pred_region
    _
  $region9: #{baseline_forward.1} parent=0 // pred_fallthru
    _
  // Predicated region
  $region10: #{baseline_forward.1} parent=0 // pred_check
    _
  $region11: #{baseline_forward.1} parent=0 // pred_check_branch
    %30 = sbr.rel (0) target = $region13
  $region12: #{baseline_forward.1} parent=0 // pred_region
    _
  $region13: #{baseline_forward.1} parent=0 // pred_fallthru
    _
  // Predicated region
  $region14: #{baseline_forward.1} parent=0 // pred_check
    _
  $region15: #{baseline_forward.1} parent=0 // pred_check_branch
    %32 = sbr.rel (0) target = $region17
  $region16: #{baseline_forward.1} parent=0 // pred_region
    _
  $region17: #{baseline_forward.1} parent=0 // pred_fallthru
    _
  // Predicated region
  $region18: #{baseline_forward.1} parent=0 // pred_check
    _
  $region19: #{baseline_forward.1} parent=0 // pred_check_branch
    %34 = sbr.rel (0) target = $region21
  $region20: #{baseline_forward.1} parent=0 // pred_region
    _
  $region21: #{baseline_forward.1} parent=0 // pred_fallthru
    _
  // Predicated region
  $region22: #{baseline_forward.1} parent=0 // pred_check
    _
  $region23: #{baseline_forward.1} parent=0 // pred_check_branch
    %36 = sbr.rel (0) target = $region25
  $region24: #{baseline_forward.1} parent=0 // pred_region
    _
  $region25: #{baseline_forward.1} parent=0 // pred_fallthru
    _
  // Predicated region
  $region26: #{baseline_forward.1} parent=0 // pred_check
    _
  $region27: #{baseline_forward.1} parent=0 // pred_check_branch
    %38 = sbr.rel (0) target = $region29
  $region28: #{baseline_forward.1} parent=0 // pred_region
    _
  $region29: #{baseline_forward.1} parent=0 // pred_fallthru
    _
  // Predicated region
  $region30: #{baseline_forward.1} parent=0 // pred_check
    _
  $region31: #{baseline_forward.1} parent=0 // pred_check_branch
    %40 = sbr.rel (0) target = $region33
  $region32: #{baseline_forward.1} parent=0 // pred_region
    _
  $region33: #{baseline_forward.1} parent=0 // pred_fallthru
    _
  // Predicated region
  $region34: #{baseline_forward.1} parent=0 // pred_check
    _
  $region35: #{baseline_forward.1} parent=0 // pred_check_branch
    %42 = sbr.rel (0) target = $region37
  $region36: #{baseline_forward.1} parent=0 // pred_region
    _
  $region37: #{baseline_forward.1} parent=0 // pred_fallthru
    _
  // Predicated region
  $region38: #{baseline_forward.1} parent=0 // pred_check
    _
  $region39: #{baseline_forward.1} parent=0 // pred_check_branch
    %44 = sbr.rel (0) target = $region41
  $region40: #{baseline_forward.1} parent=0 // pred_region
    _
  $region41: #{baseline_forward.1} parent=0 // pred_fallthru
    _
  // Predicated region
  $region42: #{baseline_forward.1} parent=0 // pred_check
    _
  $region43: #{baseline_forward.1} parent=0 // pred_check_branch
    %46 = sbr.rel (0) target = $region45
  $region44: #{baseline_forward.1} parent=0 // pred_region
    _
  $region45: #{baseline_forward.1} parent=0 // pred_fallthru
    _
  // Predicated region
  $region46: #{baseline_forward.1} parent=0 // pred_check
    _
  $region47: #{baseline_forward.1} parent=0 // pred_check_branch
    %48 = sbr.rel (0) target = $region49
  $region48: #{baseline_forward.1} parent=0 // pred_region
    _
  $region49: #{baseline_forward.1} parent=0 // pred_fallthru
    _
  // Predicated region
  $region50: #{baseline_forward.1} parent=0 // pred_check
    _
  $region51: #{baseline_forward.1} parent=0 // pred_check_branch
    %50 = sbr.rel (0) target = $region53
  $region52: #{baseline_forward.1} parent=0 // pred_region
    _
  $region53: #{baseline_forward.1} parent=0 // pred_fallthru
    _
  // Predicated region
  $region54: #{baseline_forward.1} parent=0 // pred_check
    _
  $region55: #{baseline_forward.1} parent=0 // pred_check_branch
    %52 = sbr.rel (0) target = $region57
  $region56: #{baseline_forward.1} parent=0 // pred_region
    _
  $region57: #{baseline_forward.1} parent=0 // pred_fallthru
    _
  // Predicated region
  $region58: #{baseline_forward.1} parent=0 // pred_check
    _
  $region59: #{baseline_forward.1} parent=0 // pred_check_branch
    %54 = sbr.rel (0) target = $region61
  $region60: #{baseline_forward.1} parent=0 // pred_region
    _
  $region61: #{baseline_forward.1} parent=0 // pred_fallthru
    _
  // Predicated region
  $region62: #{baseline_forward.1} parent=0 // pred_check
    _
  $region63: #{baseline_forward.1} parent=0 // pred_check_branch
    %56 = sbr.rel (0) target = $region65
  $region64: #{baseline_forward.1} parent=0 // pred_region
    _
  $region65: #{baseline_forward.1} parent=0 // pred_fallthru
    _
  // Predicated region
  $region66: #{baseline_forward.1} parent=0 // pred_check
    _
  $region67: #{baseline_forward.1} parent=0 // pred_check_branch
    %58 = sbr.rel (0) target = $region69
  $region68: #{baseline_forward.1} parent=0 // pred_region
    _
  $region69: #{baseline_forward.1} parent=0 // pred_fallthru
    _
  // Predicated region
  $region70: #{baseline_forward.1} parent=0 // pred_check
    _
  $region71: #{baseline_forward.1} parent=0 // pred_check_branch
    %60 = sbr.rel (0) target = $region73
  $region72: #{baseline_forward.1} parent=0 // pred_region
    _
  $region73: #{baseline_forward.1} parent=0 // pred_fallthru
    _
  %v61 = vld [vmem:[%s0] sm:$0xff]
  %v62 = vld [vmem:[%s0 + $0x8] sm:$0xff]
  %v63 = vld [vmem:[%s0 + $0x10] sm:$0xff]
  %v64 = vld [vmem:[%s0 + $0x18] sm:$0xff]
  %v65 = vld [vmem:[%s0 + $0x20] sm:$0xff]
  %v66 = vld [vmem:[%s0 + $0x28] sm:$0xff]
  %v67 = vld [vmem:[%s0 + $0x30] sm:$0xff]
  %v68 = vld [vmem:[%s0 + $0x38] sm:$0xff]
  %v69 = vld [vmem:[%s2] sm:$0xff]
  %v70 = vld [vmem:[%s4] sm:$0x1]
  %v72 = vperm.slane %v70, 0
  %vm74 = vcmask 64512
  %v76 = vsel %vm74, %v61, 0
  %v79 = vsel %vm74, %v62, 0
  %v82 = vsel %vm74, %v63, 0
  %v85 = vsel %vm74, %v64, 0
  %v88 = vsel %vm74, %v65, 0
  %v91 = vsel %vm74, %v66, 0
  %v94 = vsel %vm74, %v67, 0
  %v97 = vsel %vm74, %v68, 0
  %99 = vmatpush.msra.mxu0 0.0
  %100 = vmatpush.msra.mxu0 0.0
  %101 = vmatpush.msra.mxu0 0.0
  %102 = vmatpush.msra.mxu0 0.0
  %103 = vmatpush.msra.mxu0 0.0
  %104 = vmatpush.msra.mxu0 0.0
  %105 = vmatpush.msra.mxu0 0.0
  %106 = vmatpush.msra.mxu0 0.0
  %107 = vmatpush.msra.mxu0 0.0
  %108 = vmatpush.msra.mxu0 0.0
  %109 = vmatpush.msra.mxu0 0.0
  %110 = vmatpush.msra.mxu0 0.0
  %111 = vmatpush.msra.mxu0 0.0
  %112 = vmatpush.msra.mxu0 0.0
  %113 = vmatpush.msra.mxu0 0.0
  %114 = vmatpush.msra.mxu0 %v69
  %115 = vmatmul.f32.gmra.mxu0 %v76
  %v116 = vpop.f32.mrf.mxu0
  %v117 = vadd.f32 %v72, %v116
  %118 = vmatmul.f32.gmra.mxu0 %v79
  %v119 = vpop.f32.mrf.mxu0
  %v120 = vadd.f32 %v72, %v119
  %121 = vmatmul.f32.gmra.mxu0 %v82
  %v122 = vpop.f32.mrf.mxu0
  %v123 = vadd.f32 %v72, %v122
  %124 = vmatmul.f32.gmra.mxu0 %v85
  %v125 = vpop.f32.mrf.mxu0
  %v126 = vadd.f32 %v72, %v125
  %127 = vmatmul.f32.gmra.mxu0 %v88
  %v128 = vpop.f32.mrf.mxu0
  %v129 = vadd.f32 %v72, %v128
  %130 = vmatmul.f32.gmra.mxu0 %v91
  %v131 = vpop.f32.mrf.mxu0
  %v132 = vadd.f32 %v72, %v131
  %133 = vmatmul.f32.gmra.mxu0 %v94
  %v134 = vpop.f32.mrf.mxu0
  %v135 = vadd.f32 %v72, %v134
  %136 = vmatmul.f32.gmra.mxu0 %v97
  %v137 = vpop.f32.mrf.mxu0
  %v138 = vadd.f32 %v72, %v137
  %139 = vdwg.mxu0
  %140 = vst [vmem:[#allocation2] sm:$0xff] %v117
  %141 = vst [vmem:[#allocation2 + $0x8] sm:$0xff] %v120
  %142 = vst [vmem:[#allocation2 + $0x10] sm:$0xff] %v123
  %143 = vst [vmem:[#allocation2 + $0x18] sm:$0xff] %v126
  %144 = vst [vmem:[#allocation2 + $0x20] sm:$0xff] %v129
  %145 = vst [vmem:[#allocation2 + $0x28] sm:$0xff] %v132
  %146 = vst [vmem:[#allocation2 + $0x30] sm:$0xff] %v135
  %147 = vst [vmem:[#allocation2 + $0x38] sm:$0xff] %v138
  %v148 = vld [vmem:[%s3] sm:$0xff]
  %v149 = vld [vmem:[%s3 + $0x8] sm:$0xff]
  %v150 = vld [vmem:[%s3 + $0x10] sm:$0xff]
  %v151 = vld [vmem:[%s3 + $0x18] sm:$0xff]
  %v152 = vld [vmem:[%s5] sm:$0xff]
  %v153 = vld [vmem:[%s5 + $0x8] sm:$0xff]
  %v154 = vld [vmem:[%s5 + $0x10] sm:$0xff]
  %v155 = vld [vmem:[%s5 + $0x18] sm:$0xff]
  %v156 = vld [vmem:[%s5 + $0x20] sm:$0xff]
  %v157 = vld [vmem:[%s5 + $0x28] sm:$0xff]
  %v158 = vld [vmem:[%s5 + $0x30] sm:$0xff]
  %v159 = vld [vmem:[%s5 + $0x38] sm:$0xff]
  %v160 = vld [vmem:[%s7] sm:$0xff]
  %v161 = vld [vmem:[%s7 + $0x8] sm:$0xff]
  %v162 = vld [vmem:[%s7 + $0x10] sm:$0xff]
  %v163 = vld [vmem:[%s7 + $0x18] sm:$0xff]
  %v164 = vld [vmem:[%s7 + $0x20] sm:$0xff]
  %v165 = vld [vmem:[%s7 + $0x28] sm:$0xff]
  %v166 = vld [vmem:[%s7 + $0x30] sm:$0xff]
  %v167 = vld [vmem:[%s7 + $0x38] sm:$0xff]
  %v168 = vld [vmem:[%s6] sm:$0x1]
  %v169 = vld [vmem:[%s8] sm:$0x1]
  %v170 = vld [vmem:[#allocation2] sm:$0xff]
  %vm171 = vcmask 261120
  %v173 = vsel %vm171, 0.0, 0
  %175 = vmatpush.msra.mxu0 0.0
  %176 = vmatpush.msra.mxu0 0.0
  %177 = vmatpush.msra.mxu0 0.0
  %178 = vmatpush.msra.mxu0 0.0
  %179 = vmatpush.msra.mxu0 0.0
  %180 = vmatpush.msra.mxu0 0.0
  %181 = vmatpush.msra.mxu0 0.0
  %182 = vmatpush.msra.mxu0 0.0
  %183 = vmatpush.msra.mxu0 0.0
  %184 = vmatpush.msra.mxu0 0.0
  %185 = vmatpush.msra.mxu0 0.0
  %186 = vmatpush.msra.mxu0 0.0
  %187 = vmatpush.msra.mxu0 %v151
  %188 = vmatpush.msra.mxu0 %v150
  %189 = vmatpush.msra.mxu0 %v149
  %190 = vmatpush.msra.mxu0 %v148
  %191 = vmatmul.f32.gmra.mxu0 %v173
  %v192 = vpop.f32.mrf.mxu0
  %v193 = vadd.f32 0.0, %v192
  %194 = vdwg.mxu0
  %v195 = vadd.f32 %v170, %v193
  %v196 = vxor.u32 %v195, 2147483648
  %v197 = vmul.f32 %v196, 1.442695
  %v198 = vpow.pop %v197
  %v199 = vadd.f32 %v198, 1.0
  %v200 = vrcp.pop %v199
  %v201 = vmul.f32 %v199, %v200
  %v202 = vsub.f32 1.0, %v201
  %v203 = vmul.f32 %v200, %v202
  %v204 = vadd.f32 %v200, %v203
  %vm205 = vweird.f32 %v199
  %vm206 = vweird.f32 %v200
  %vm207 = vmor %vm205, %vm206
  %v208 = vsel %vm207, %v200, %v204
  %v209 = vand.u32 2147483647, %v199
  %vm210 = vcmp.eq.f32.partialorder %v209, 8.507059e+37
  %v211 = vand.u32 %v199, 2147483648
  %v212 = vor.u32 1.1754944e-38, %v211
  %v213 = vsel %vm210, %v212, %v208
  %v214 = vmul.f32 1.0, %v213
  %v215 = vtanh.pop %v195
  %v216 = vmul.f32 %v214, 0.0
  %218 = vrot.lane.b32.xlu0 %v215, 32
  %v219 = vpop.permute.xlu0 %218
  %v221 = vmul.f32 %v214, %v219
  %223 = vrot.lane.b32.xlu0 %v221, 32
  %v224 = vpop.permute.xlu0 %223
  %v226 = vadd.f32 %v216, %v224
  %v227 = vtanh.pop %v226
  %229 = vrot.lane.b32.xlu0 %v227, 32
  %v230 = vpop.permute.xlu0 %229
  %v232 = vmul.f32 %v214, %v230
  %233 = vst.msk [vmem:[#allocation3] sm:$0xff] %vm171, 0.0
  %s234 = scalar_lea.vmem [#allocation2], 8
  %v235 = vld [vmem:[%s234] sm:$0xff]
  %237 = vrot.lane.b32.xlu0 %v232, 64
  %v238 = vpop.permute.xlu0 %237
  %v239 = vsel %vm171, %v238, 0
  %241 = vmatpush.msra.mxu0 0.0
  %242 = vmatpush.msra.mxu0 0.0
  %243 = vmatpush.msra.mxu0 0.0
  %244 = vmatpush.msra.mxu0 0.0
  %245 = vmatpush.msra.mxu0 0.0
  %246 = vmatpush.msra.mxu0 0.0
  %247 = vmatpush.msra.mxu0 0.0
  %248 = vmatpush.msra.mxu0 0.0
  %249 = vmatpush.msra.mxu0 0.0
  %250 = vmatpush.msra.mxu0 0.0
  %251 = vmatpush.msra.mxu0 0.0
  %252 = vmatpush.msra.mxu0 0.0
  %253 = vmatpush.msra.mxu0 %v151
  %254 = vmatpush.msra.mxu0 %v150
  %255 = vmatpush.msra.mxu0 %v149
  %256 = vmatpush.msra.mxu0 %v148
  %257 = vmatmul.f32.gmra.mxu0 %v239
  %v258 = vpop.f32.mrf.mxu0
  %v259 = vadd.f32 0.0, %v258
  %260 = vdwg.mxu0
  %v261 = vadd.f32 %v235, %v259
  %v262 = vxor.u32 %v261, 2147483648
  %v263 = vmul.f32 %v262, 1.442695
  %v264 = vpow.pop %v263
  %v265 = vadd.f32 %v264, 1.0
  %v266 = vrcp.pop %v265
  %v267 = vmul.f32 %v265, %v266
  %v268 = vsub.f32 1.0, %v267
  %v269 = vmul.f32 %v266, %v268
  %v270 = vadd.f32 %v266, %v269
  %vm271 = vweird.f32 %v265
  %vm272 = vweird.f32 %v266
  %vm273 = vmor %vm271, %vm272
  %v274 = vsel %vm273, %v266, %v270
  %v275 = vand.u32 2147483647, %v265
  %vm276 = vcmp.eq.f32.partialorder %v275, 8.507059e+37
  %v277 = vand.u32 %v265, 2147483648
  %v278 = vor.u32 1.1754944e-38, %v277
  %v279 = vsel %vm276, %v278, %v274
  %v280 = vmul.f32 1.0, %v279
  %v281 = vtanh.pop %v261
  %v282 = vmul.f32 %v280, %v226
  %284 = vrot.lane.b32.xlu0 %v281, 32
  %v285 = vpop.permute.xlu0 %284
  %v287 = vmul.f32 %v280, %v285
  %289 = vrot.lane.b32.xlu0 %v287, 32
  %v290 = vpop.permute.xlu0 %289
  %v292 = vadd.f32 %v282, %v290
  %v293 = vtanh.pop %v292
  %295 = vrot.lane.b32.xlu0 %v293, 32
  %v296 = vpop.permute.xlu0 %295
  %v298 = vmul.f32 %v280, %v296
  %v300 = vsel %vm171, %v238, 0.0
  %v302 = vperm.slane %v168, 0
  %vm304 = vcmask 523264
  %v306 = vsel %vm304, %v300, 0
  %308 = vmatpush.msra.mxu0 0.0
  %309 = vmatpush.msra.mxu0 0.0
  %310 = vmatpush.msra.mxu0 0.0
  %311 = vmatpush.msra.mxu0 0.0
  %312 = vmatpush.msra.mxu0 0.0
  %313 = vmatpush.msra.mxu0 0.0
  %314 = vmatpush.msra.mxu0 0.0
  %315 = vmatpush.msra.mxu0 0.0
  %316 = vmatpush.msra.mxu0 %v159
  %317 = vmatpush.msra.mxu0 %v158
  %318 = vmatpush.msra.mxu0 %v157
  %319 = vmatpush.msra.mxu0 %v156
  %320 = vmatpush.msra.mxu0 %v155
  %321 = vmatpush.msra.mxu0 %v154
  %322 = vmatpush.msra.mxu0 %v153
  %323 = vmatpush.msra.mxu0 %v152
  %324 = vmatmul.f32.gmra.mxu0 %v306
  %v325 = vpop.f32.mrf.mxu0
  %v326 = vadd.f32 %v302, %v325
  %327 = vdwg.mxu0
  %v328 = vxor.u32 %v326, 2147483648
  %v329 = vmul.f32 %v328, 1.442695
  %v330 = vpow.pop %v329
  %v331 = vadd.f32 %v330, 1.0
  %v332 = vrcp.pop %v331
  %v333 = vmul.f32 %v331, %v332
  %v334 = vsub.f32 1.0, %v333
  %v335 = vmul.f32 %v332, %v334
  %v336 = vadd.f32 %v332, %v335
  %vm337 = vweird.f32 %v331
  %vm338 = vweird.f32 %v332
  %vm339 = vmor %vm337, %vm338
  %v340 = vsel %vm339, %v332, %v336
  %v341 = vand.u32 2147483647, %v331
  %vm342 = vcmp.eq.f32.partialorder %v341, 8.507059e+37
  %v343 = vand.u32 %v331, 2147483648
  %v344 = vor.u32 1.1754944e-38, %v343
  %v345 = vsel %vm342, %v344, %v340
  %v346 = vmul.f32 1.0, %v345
  %v347 = vtanh.pop %v326
  %v348 = vmul.f32 %v346, 0.0
  %350 = vrot.lane.b32.xlu0 %v347, 32
  %v351 = vpop.permute.xlu0 %350
  %v353 = vmul.f32 %v346, %v351
  %355 = vrot.lane.b32.xlu0 %v353, 32
  %v356 = vpop.permute.xlu0 %355
  %v358 = vadd.f32 %v348, %v356
  %v359 = vtanh.pop %v358
  %361 = vrot.lane.b32.xlu0 %v359, 32
  %v362 = vpop.permute.xlu0 %361
  %v364 = vmul.f32 %v346, %v362
  %365 = vst.msk [vmem:[#allocation3] sm:$0xff] %vm171, 0.0
  %s366 = scalar_lea.vmem [#allocation2], 16
  %v367 = vld [vmem:[%s366] sm:$0xff]
  %369 = vrot.lane.b32.xlu0 %v298, 64
  %v370 = vpop.permute.xlu0 %369
  %v371 = vsel %vm171, %v370, 0
  %373 = vmatpush.msra.mxu0 0.0
  %374 = vmatpush.msra.mxu0 0.0
  %375 = vmatpush.msra.mxu0 0.0
  %376 = vmatpush.msra.mxu0 0.0
  %377 = vmatpush.msra.mxu0 0.0
  %378 = vmatpush.msra.mxu0 0.0
  %379 = vmatpush.msra.mxu0 0.0
  %380 = vmatpush.msra.mxu0 0.0
  %381 = vmatpush.msra.mxu0 0.0
  %382 = vmatpush.msra.mxu0 0.0
  %383 = vmatpush.msra.mxu0 0.0
  %384 = vmatpush.msra.mxu0 0.0
  %385 = vmatpush.msra.mxu0 %v151
  %386 = vmatpush.msra.mxu0 %v150
  %387 = vmatpush.msra.mxu0 %v149
  %388 = vmatpush.msra.mxu0 %v148
  %389 = vmatmul.f32.gmra.mxu0 %v371
  %v390 = vpop.f32.mrf.mxu0
  %v391 = vadd.f32 0.0, %v390
  %392 = vdwg.mxu0
  %v393 = vadd.f32 %v367, %v391
  %v394 = vxor.u32 %v393, 2147483648
  %v395 = vmul.f32 %v394, 1.442695
  %v396 = vpow.pop %v395
  %v397 = vadd.f32 %v396, 1.0
  %v398 = vrcp.pop %v397
  %v399 = vmul.f32 %v397, %v398
  %v400 = vsub.f32 1.0, %v399
  %v401 = vmul.f32 %v398, %v400
  %v402 = vadd.f32 %v398, %v401
  %vm403 = vweird.f32 %v397
  %vm404 = vweird.f32 %v398
  %vm405 = vmor %vm403, %vm404
  %v406 = vsel %vm405, %v398, %v402
  %v407 = vand.u32 2147483647, %v397
  %vm408 = vcmp.eq.f32.partialorder %v407, 8.507059e+37
  %v409 = vand.u32 %v397, 2147483648
  %v410 = vor.u32 1.1754944e-38, %v409
  %v411 = vsel %vm408, %v410, %v406
  %v412 = vmul.f32 1.0, %v411
  %v413 = vtanh.pop %v393
  %v414 = vmul.f32 %v412, %v292
  %416 = vrot.lane.b32.xlu0 %v413, 32
  %v417 = vpop.permute.xlu0 %416
  %v419 = vmul.f32 %v412, %v417
  %421 = vrot.lane.b32.xlu0 %v419, 32
  %v422 = vpop.permute.xlu0 %421
  %v424 = vadd.f32 %v414, %v422
  %v425 = vtanh.pop %v424
  %427 = vrot.lane.b32.xlu0 %v425, 32
  %v428 = vpop.permute.xlu0 %427
  %v430 = vmul.f32 %v412, %v428
  %433 = vrot.lane.b32.xlu0 %v364, 96
  %v434 = vpop.permute.xlu0 %433
  %v436 = vsel %vm171, %v370, %v434
  %v438 = vsel %vm304, %v436, 0
  %440 = vmatpush.msra.mxu0 0.0
  %441 = vmatpush.msra.mxu0 0.0
  %442 = vmatpush.msra.mxu0 0.0
  %443 = vmatpush.msra.mxu0 0.0
  %444 = vmatpush.msra.mxu0 0.0
  %445 = vmatpush.msra.mxu0 0.0
  %446 = vmatpush.msra.mxu0 0.0
  %447 = vmatpush.msra.mxu0 0.0
  %448 = vmatpush.msra.mxu0 %v159
  %449 = vmatpush.msra.mxu0 %v158
  %450 = vmatpush.msra.mxu0 %v157
  %451 = vmatpush.msra.mxu0 %v156
  %452 = vmatpush.msra.mxu0 %v155
  %453 = vmatpush.msra.mxu0 %v154
  %454 = vmatpush.msra.mxu0 %v153
  %455 = vmatpush.msra.mxu0 %v152
  %456 = vmatmul.f32.gmra.mxu0 %v438
  %v457 = vpop.f32.mrf.mxu0
  %v458 = vadd.f32 %v302, %v457
  %459 = vdwg.mxu0
  %v460 = vxor.u32 %v458, 2147483648
  %v461 = vmul.f32 %v460, 1.442695
  %v462 = vpow.pop %v461
  %v463 = vadd.f32 %v462, 1.0
  %v464 = vrcp.pop %v463
  %v465 = vmul.f32 %v463, %v464
  %v466 = vsub.f32 1.0, %v465
  %v467 = vmul.f32 %v464, %v466
  %v468 = vadd.f32 %v464, %v467
  %vm469 = vweird.f32 %v463
  %vm470 = vweird.f32 %v464
  %vm471 = vmor %vm469, %vm470
  %v472 = vsel %vm471, %v464, %v468
  %v473 = vand.u32 2147483647, %v463
  %vm474 = vcmp.eq.f32.partialorder %v473, 8.507059e+37
  %v475 = vand.u32 %v463, 2147483648
  %v476 = vor.u32 1.1754944e-38, %v475
  %v477 = vsel %vm474, %v476, %v472
  %v478 = vmul.f32 1.0, %v477
  %v479 = vtanh.pop %v458
  %v480 = vmul.f32 %v478, %v358
  %482 = vrot.lane.b32.xlu0 %v479, 32
  %v483 = vpop.permute.xlu0 %482
  %v485 = vmul.f32 %v478, %v483
  %487 = vrot.lane.b32.xlu0 %v485, 32
  %v488 = vpop.permute.xlu0 %487
  %v490 = vadd.f32 %v480, %v488
  %v491 = vtanh.pop %v490
  %493 = vrot.lane.b32.xlu0 %v491, 32
  %v494 = vpop.permute.xlu0 %493
  %v496 = vmul.f32 %v478, %v494
  %497 = vrot.lane.b32.xlu0 %v364, 64
  %v498 = vpop.permute.xlu0 %497
  %v500 = vsel %vm171, %v498, 0.0
  %v502 = vperm.slane %v169, 0
  %v505 = vsel %vm304, %v500, 0
  %507 = vmatpush.msra.mxu0 0.0
  %508 = vmatpush.msra.mxu0 0.0
  %509 = vmatpush.msra.mxu0 0.0
  %510 = vmatpush.msra.mxu0 0.0
  %511 = vmatpush.msra.mxu0 0.0
  %512 = vmatpush.msra.mxu0 0.0
  %513 = vmatpush.msra.mxu0 0.0
  %514 = vmatpush.msra.mxu0 0.0
  %515 = vmatpush.msra.mxu0 %v167
  %516 = vmatpush.msra.mxu0 %v166
  %517 = vmatpush.msra.mxu0 %v165
  %518 = vmatpush.msra.mxu0 %v164
  %519 = vmatpush.msra.mxu0 %v163
  %520 = vmatpush.msra.mxu0 %v162
  %521 = vmatpush.msra.mxu0 %v161
  %522 = vmatpush.msra.mxu0 %v160
  %523 = vmatmul.f32.gmra.mxu0 %v505
  %v524 = vpop.f32.mrf.mxu0
  %v525 = vadd.f32 %v502, %v524
  %526 = vdwg.mxu0
  %v527 = vxor.u32 %v525, 2147483648
  %v528 = vmul.f32 %v527, 1.442695
  %v529 = vpow.pop %v528
  %v530 = vadd.f32 %v529, 1.0
  %v531 = vrcp.pop %v530
  %v532 = vmul.f32 %v530, %v531
  %v533 = vsub.f32 1.0, %v532
  %v534 = vmul.f32 %v531, %v533
  %v535 = vadd.f32 %v531, %v534
  %vm536 = vweird.f32 %v530
  %vm537 = vweird.f32 %v531
  %vm538 = vmor %vm536, %vm537
  %v539 = vsel %vm538, %v531, %v535
  %v540 = vand.u32 2147483647, %v530
  %vm541 = vcmp.eq.f32.partialorder %v540, 8.507059e+37
  %v542 = vand.u32 %v530, 2147483648
  %v543 = vor.u32 1.1754944e-38, %v542
  %v544 = vsel %vm541, %v543, %v539
  %v545 = vmul.f32 1.0, %v544
  %v546 = vtanh.pop %v525
  %v547 = vmul.f32 %v545, 0.0
  %549 = vrot.lane.b32.xlu0 %v546, 32
  %v550 = vpop.permute.xlu0 %549
  %v552 = vmul.f32 %v545, %v550
  %554 = vrot.lane.b32.xlu0 %v552, 32
  %v555 = vpop.permute.xlu0 %554
  %v557 = vadd.f32 %v547, %v555
  %v558 = vtanh.pop %v557
  %560 = vrot.lane.b32.xlu0 %v558, 32
  %v561 = vpop.permute.xlu0 %560
  %v563 = vmul.f32 %v545, %v561
  %565 = vrot.lane.b32.xlu0 %v563, 64
  %v566 = vpop.permute.xlu0 %565
  %568 = vst.msk [vmem:[#allocation3] sm:$0xff] %vm171, %v566
  %s569 = scalar_lea.vmem [#allocation2], 24
  %v570 = vld [vmem:[%s569] sm:$0xff]
  %572 = vrot.lane.b32.xlu0 %v430, 64
  %v573 = vpop.permute.xlu0 %572
  %v574 = vsel %vm171, %v573, 0
  %576 = vmatpush.msra.mxu0 0.0
  %577 = vmatpush.msra.mxu0 0.0
  %578 = vmatpush.msra.mxu0 0.0
  %579 = vmatpush.msra.mxu0 0.0
  %580 = vmatpush.msra.mxu0 0.0
  %581 = vmatpush.msra.mxu0 0.0
  %582 = vmatpush.msra.mxu0 0.0
  %583 = vmatpush.msra.mxu0 0.0
  %584 = vmatpush.msra.mxu0 0.0
  %585 = vmatpush.msra.mxu0 0.0
  %586 = vmatpush.msra.mxu0 0.0
  %587 = vmatpush.msra.mxu0 0.0
  %588 = vmatpush.msra.mxu0 %v151
  %589 = vmatpush.msra.mxu0 %v150
  %590 = vmatpush.msra.mxu0 %v149
  %591 = vmatpush.msra.mxu0 %v148
  %592 = vmatmul.f32.gmra.mxu0 %v574
  %v593 = vpop.f32.mrf.mxu0
  %v594 = vadd.f32 0.0, %v593
  %595 = vdwg.mxu0
  %v596 = vadd.f32 %v570, %v594
  %v597 = vxor.u32 %v596, 2147483648
  %v598 = vmul.f32 %v597, 1.442695
  %v599 = vpow.pop %v598
  %v600 = vadd.f32 %v599, 1.0
  %v601 = vrcp.pop %v600
  %v602 = vmul.f32 %v600, %v601
  %v603 = vsub.f32 1.0, %v602
  %v604 = vmul.f32 %v601, %v603
  %v605 = vadd.f32 %v601, %v604
  %vm606 = vweird.f32 %v600
  %vm607 = vweird.f32 %v601
  %vm608 = vmor %vm606, %vm607
  %v609 = vsel %vm608, %v601, %v605
  %v610 = vand.u32 2147483647, %v600
  %vm611 = vcmp.eq.f32.partialorder %v610, 8.507059e+37
  %v612 = vand.u32 %v600, 2147483648
  %v613 = vor.u32 1.1754944e-38, %v612
  %v614 = vsel %vm611, %v613, %v609
  %v615 = vmul.f32 1.0, %v614
  %v616 = vtanh.pop %v596
  %v617 = vmul.f32 %v615, %v424
  %619 = vrot.lane.b32.xlu0 %v616, 32
  %v620 = vpop.permute.xlu0 %619
  %v622 = vmul.f32 %v615, %v620
  %624 = vrot.lane.b32.xlu0 %v622, 32
  %v625 = vpop.permute.xlu0 %624
  %v627 = vadd.f32 %v617, %v625
  %v628 = vtanh.pop %v627
  %630 = vrot.lane.b32.xlu0 %v628, 32
  %v631 = vpop.permute.xlu0 %630
  %v633 = vmul.f32 %v615, %v631
  %636 = vrot.lane.b32.xlu0 %v496, 96
  %v637 = vpop.permute.xlu0 %636
  %v639 = vsel %vm171, %v573, %v637
  %v641 = vsel %vm304, %v639, 0
  %643 = vmatpush.msra.mxu0 0.0
  %644 = vmatpush.msra.mxu0 0.0
  %645 = vmatpush.msra.mxu0 0.0
  %646 = vmatpush.msra.mxu0 0.0
  %647 = vmatpush.msra.mxu0 0.0
  %648 = vmatpush.msra.mxu0 0.0
  %649 = vmatpush.msra.mxu0 0.0
  %650 = vmatpush.msra.mxu0 0.0
  %651 = vmatpush.msra.mxu0 %v159
  %652 = vmatpush.msra.mxu0 %v158
  %653 = vmatpush.msra.mxu0 %v157
  %654 = vmatpush.msra.mxu0 %v156
  %655 = vmatpush.msra.mxu0 %v155
  %656 = vmatpush.msra.mxu0 %v154
  %657 = vmatpush.msra.mxu0 %v153
  %658 = vmatpush.msra.mxu0 %v152
  %659 = vmatmul.f32.gmra.mxu0 %v641
  %v660 = vpop.f32.mrf.mxu0
  %v661 = vadd.f32 %v302, %v660
  %662 = vdwg.mxu0
  %v663 = vxor.u32 %v661, 2147483648
  %v664 = vmul.f32 %v663, 1.442695
  %v665 = vpow.pop %v664
  %v666 = vadd.f32 %v665, 1.0
  %v667 = vrcp.pop %v666
  %v668 = vmul.f32 %v666, %v667
  %v669 = vsub.f32 1.0, %v668
  %v670 = vmul.f32 %v667, %v669
  %v671 = vadd.f32 %v667, %v670
  %vm672 = vweird.f32 %v666
  %vm673 = vweird.f32 %v667
  %vm674 = vmor %vm672, %vm673
  %v675 = vsel %vm674, %v667, %v671
  %v676 = vand.u32 2147483647, %v666
  %vm677 = vcmp.eq.f32.partialorder %v676, 8.507059e+37
  %v678 = vand.u32 %v666, 2147483648
  %v679 = vor.u32 1.1754944e-38, %v678
  %v680 = vsel %vm677, %v679, %v675
  %v681 = vmul.f32 1.0, %v680
  %v682 = vtanh.pop %v661
  %v683 = vmul.f32 %v681, %v490
  %685 = vrot.lane.b32.xlu0 %v682, 32
  %v686 = vpop.permute.xlu0 %685
  %v688 = vmul.f32 %v681, %v686
  %690 = vrot.lane.b32.xlu0 %v688, 32
  %v691 = vpop.permute.xlu0 %690
  %v693 = vadd.f32 %v683, %v691
  %v694 = vtanh.pop %v693
  %696 = vrot.lane.b32.xlu0 %v694, 32
  %v697 = vpop.permute.xlu0 %696
  %v699 = vmul.f32 %v681, %v697
  %700 = vrot.lane.b32.xlu0 %v496, 64
  %v701 = vpop.permute.xlu0 %700
  %703 = vrot.lane.b32.xlu0 %v563, 96
  %v704 = vpop.permute.xlu0 %703
  %v706 = vsel %vm171, %v701, %v704
  %v708 = vsel %vm304, %v706, 0
  %710 = vmatpush.msra.mxu0 0.0
  %711 = vmatpush.msra.mxu0 0.0
  %712 = vmatpush.msra.mxu0 0.0
  %713 = vmatpush.msra.mxu0 0.0
  %714 = vmatpush.msra.mxu0 0.0
  %715 = vmatpush.msra.mxu0 0.0
  %716 = vmatpush.msra.mxu0 0.0
  %717 = vmatpush.msra.mxu0 0.0
  %718 = vmatpush.msra.mxu0 %v167
  %719 = vmatpush.msra.mxu0 %v166
  %720 = vmatpush.msra.mxu0 %v165
  %721 = vmatpush.msra.mxu0 %v164
  %722 = vmatpush.msra.mxu0 %v163
  %723 = vmatpush.msra.mxu0 %v162
  %724 = vmatpush.msra.mxu0 %v161
  %725 = vmatpush.msra.mxu0 %v160
  %726 = vmatmul.f32.gmra.mxu0 %v708
  %v727 = vpop.f32.mrf.mxu0
  %v728 = vadd.f32 %v502, %v727
  %729 = vdwg.mxu0
  %v730 = vxor.u32 %v728, 2147483648
  %v731 = vmul.f32 %v730, 1.442695
  %v732 = vpow.pop %v731
  %v733 = vadd.f32 %v732, 1.0
  %v734 = vrcp.pop %v733
  %v735 = vmul.f32 %v733, %v734
  %v736 = vsub.f32 1.0, %v735
  %v737 = vmul.f32 %v734, %v736
  %v738 = vadd.f32 %v734, %v737
  %vm739 = vweird.f32 %v733
  %vm740 = vweird.f32 %v734
  %vm741 = vmor %vm739, %vm740
  %v742 = vsel %vm741, %v734, %v738
  %v743 = vand.u32 2147483647, %v733
  %vm744 = vcmp.eq.f32.partialorder %v743, 8.507059e+37
  %v745 = vand.u32 %v733, 2147483648
  %v746 = vor.u32 1.1754944e-38, %v745
  %v747 = vsel %vm744, %v746, %v742
  %v748 = vmul.f32 1.0, %v747
  %v749 = vtanh.pop %v728
  %v750 = vmul.f32 %v748, %v557
  %752 = vrot.lane.b32.xlu0 %v749, 32
  %v753 = vpop.permute.xlu0 %752
  %v755 = vmul.f32 %v748, %v753
  %757 = vrot.lane.b32.xlu0 %v755, 32
  %v758 = vpop.permute.xlu0 %757
  %v760 = vadd.f32 %v750, %v758
  %v761 = vtanh.pop %v760
  %763 = vrot.lane.b32.xlu0 %v761, 32
  %v764 = vpop.permute.xlu0 %763
  %v766 = vmul.f32 %v748, %v764
  %768 = vrot.lane.b32.xlu0 %v766, 64
  %v769 = vpop.permute.xlu0 %768
  %s771 = scalar_lea.vmem [#allocation3], 8
  %772 = vst.msk [vmem:[%s771] sm:$0xff] %vm171, %v769
  %s773 = scalar_lea.vmem [#allocation2], 32
  %v774 = vld [vmem:[%s773] sm:$0xff]
  %776 = vrot.lane.b32.xlu0 %v633, 64
  %v777 = vpop.permute.xlu0 %776
  %v778 = vsel %vm171, %v777, 0
  %780 = vmatpush.msra.mxu0 0.0
  %781 = vmatpush.msra.mxu0 0.0
  %782 = vmatpush.msra.mxu0 0.0
  %783 = vmatpush.msra.mxu0 0.0
  %784 = vmatpush.msra.mxu0 0.0
  %785 = vmatpush.msra.mxu0 0.0
  %786 = vmatpush.msra.mxu0 0.0
  %787 = vmatpush.msra.mxu0 0.0
  %788 = vmatpush.msra.mxu0 0.0
  %789 = vmatpush.msra.mxu0 0.0
  %790 = vmatpush.msra.mxu0 0.0
  %791 = vmatpush.msra.mxu0 0.0
  %792 = vmatpush.msra.mxu0 %v151
  %793 = vmatpush.msra.mxu0 %v150
  %794 = vmatpush.msra.mxu0 %v149
  %795 = vmatpush.msra.mxu0 %v148
  %796 = vmatmul.f32.gmra.mxu0 %v778
  %v797 = vpop.f32.mrf.mxu0
  %v798 = vadd.f32 0.0, %v797
  %799 = vdwg.mxu0
  %v800 = vadd.f32 %v774, %v798
  %v801 = vxor.u32 %v800, 2147483648
  %v802 = vmul.f32 %v801, 1.442695
  %v803 = vpow.pop %v802
  %v804 = vadd.f32 %v803, 1.0
  %v805 = vrcp.pop %v804
  %v806 = vmul.f32 %v804, %v805
  %v807 = vsub.f32 1.0, %v806
  %v808 = vmul.f32 %v805, %v807
  %v809 = vadd.f32 %v805, %v808
  %vm810 = vweird.f32 %v804
  %vm811 = vweird.f32 %v805
  %vm812 = vmor %vm810, %vm811
  %v813 = vsel %vm812, %v805, %v809
  %v814 = vand.u32 2147483647, %v804
  %vm815 = vcmp.eq.f32.partialorder %v814, 8.507059e+37
  %v816 = vand.u32 %v804, 2147483648
  %v817 = vor.u32 1.1754944e-38, %v816
  %v818 = vsel %vm815, %v817, %v813
  %v819 = vmul.f32 1.0, %v818
  %v820 = vtanh.pop %v800
  %v821 = vmul.f32 %v819, %v627
  %823 = vrot.lane.b32.xlu0 %v820, 32
  %v824 = vpop.permute.xlu0 %823
  %v826 = vmul.f32 %v819, %v824
  %828 = vrot.lane.b32.xlu0 %v826, 32
  %v829 = vpop.permute.xlu0 %828
  %v831 = vadd.f32 %v821, %v829
  %v832 = vtanh.pop %v831
  %834 = vrot.lane.b32.xlu0 %v832, 32
  %v835 = vpop.permute.xlu0 %834
  %v837 = vmul.f32 %v819, %v835
  %840 = vrot.lane.b32.xlu0 %v699, 96
  %v841 = vpop.permute.xlu0 %840
  %v843 = vsel %vm171, %v777, %v841
  %v845 = vsel %vm304, %v843, 0
  %847 = vmatpush.msra.mxu0 0.0
  %848 = vmatpush.msra.mxu0 0.0
  %849 = vmatpush.msra.mxu0 0.0
  %850 = vmatpush.msra.mxu0 0.0
  %851 = vmatpush.msra.mxu0 0.0
  %852 = vmatpush.msra.mxu0 0.0
  %853 = vmatpush.msra.mxu0 0.0
  %854 = vmatpush.msra.mxu0 0.0
  %855 = vmatpush.msra.mxu0 %v159
  %856 = vmatpush.msra.mxu0 %v158
  %857 = vmatpush.msra.mxu0 %v157
  %858 = vmatpush.msra.mxu0 %v156
  %859 = vmatpush.msra.mxu0 %v155
  %860 = vmatpush.msra.mxu0 %v154
  %861 = vmatpush.msra.mxu0 %v153
  %862 = vmatpush.msra.mxu0 %v152
  %863 = vmatmul.f32.gmra.mxu0 %v845
  %v864 = vpop.f32.mrf.mxu0
  %v865 = vadd.f32 %v302, %v864
  %866 = vdwg.mxu0
  %v867 = vxor.u32 %v865, 2147483648
  %v868 = vmul.f32 %v867, 1.442695
  %v869 = vpow.pop %v868
  %v870 = vadd.f32 %v869, 1.0
  %v871 = vrcp.pop %v870
  %v872 = vmul.f32 %v870, %v871
  %v873 = vsub.f32 1.0, %v872
  %v874 = vmul.f32 %v871, %v873
  %v875 = vadd.f32 %v871, %v874
  %vm876 = vweird.f32 %v870
  %vm877 = vweird.f32 %v871
  %vm878 = vmor %vm876, %vm877
  %v879 = vsel %vm878, %v871, %v875
  %v880 = vand.u32 2147483647, %v870
  %vm881 = vcmp.eq.f32.partialorder %v880, 8.507059e+37
  %v882 = vand.u32 %v870, 2147483648
  %v883 = vor.u32 1.1754944e-38, %v882
  %v884 = vsel %vm881, %v883, %v879
  %v885 = vmul.f32 1.0, %v884
  %v886 = vtanh.pop %v865
  %v887 = vmul.f32 %v885, %v693
  %889 = vrot.lane.b32.xlu0 %v886, 32
  %v890 = vpop.permute.xlu0 %889
  %v892 = vmul.f32 %v885, %v890
  %894 = vrot.lane.b32.xlu0 %v892, 32
  %v895 = vpop.permute.xlu0 %894
  %v897 = vadd.f32 %v887, %v895
  %v898 = vtanh.pop %v897
  %900 = vrot.lane.b32.xlu0 %v898, 32
  %v901 = vpop.permute.xlu0 %900
  %v903 = vmul.f32 %v885, %v901
  %904 = vrot.lane.b32.xlu0 %v699, 64
  %v905 = vpop.permute.xlu0 %904
  %907 = vrot.lane.b32.xlu0 %v766, 96
  %v908 = vpop.permute.xlu0 %907
  %v910 = vsel %vm171, %v905, %v908
  %v912 = vsel %vm304, %v910, 0
  %914 = vmatpush.msra.mxu0 0.0
  %915 = vmatpush.msra.mxu0 0.0
  %916 = vmatpush.msra.mxu0 0.0
  %917 = vmatpush.msra.mxu0 0.0
  %918 = vmatpush.msra.mxu0 0.0
  %919 = vmatpush.msra.mxu0 0.0
  %920 = vmatpush.msra.mxu0 0.0
  %921 = vmatpush.msra.mxu0 0.0
  %922 = vmatpush.msra.mxu0 %v167
  %923 = vmatpush.msra.mxu0 %v166
  %924 = vmatpush.msra.mxu0 %v165
  %925 = vmatpush.msra.mxu0 %v164
  %926 = vmatpush.msra.mxu0 %v163
  %927 = vmatpush.msra.mxu0 %v162
  %928 = vmatpush.msra.mxu0 %v161
  %929 = vmatpush.msra.mxu0 %v160
  %930 = vmatmul.f32.gmra.mxu0 %v912
  %v931 = vpop.f32.mrf.mxu0
  %v932 = vadd.f32 %v502, %v931
  %933 = vdwg.mxu0
  %v934 = vxor.u32 %v932, 2147483648
  %v935 = vmul.f32 %v934, 1.442695
  %v936 = vpow.pop %v935
  %v937 = vadd.f32 %v936, 1.0
  %v938 = vrcp.pop %v937
  %v939 = vmul.f32 %v937, %v938
  %v940 = vsub.f32 1.0, %v939
  %v941 = vmul.f32 %v938, %v940
  %v942 = vadd.f32 %v938, %v941
  %vm943 = vweird.f32 %v937
  %vm944 = vweird.f32 %v938
  %vm945 = vmor %vm943, %vm944
  %v946 = vsel %vm945, %v938, %v942
  %v947 = vand.u32 2147483647, %v937
  %vm948 = vcmp.eq.f32.partialorder %v947, 8.507059e+37
  %v949 = vand.u32 %v937, 2147483648
  %v950 = vor.u32 1.1754944e-38, %v949
  %v951 = vsel %vm948, %v950, %v946
  %v952 = vmul.f32 1.0, %v951
  %v953 = vtanh.pop %v932
  %v954 = vmul.f32 %v952, %v760
  %956 = vrot.lane.b32.xlu0 %v953, 32
  %v957 = vpop.permute.xlu0 %956
  %v959 = vmul.f32 %v952, %v957
  %961 = vrot.lane.b32.xlu0 %v959, 32
  %v962 = vpop.permute.xlu0 %961
  %v964 = vadd.f32 %v954, %v962
  %v965 = vtanh.pop %v964
  %967 = vrot.lane.b32.xlu0 %v965, 32
  %v968 = vpop.permute.xlu0 %967
  %v970 = vmul.f32 %v952, %v968
  %972 = vrot.lane.b32.xlu0 %v970, 64
  %v973 = vpop.permute.xlu0 %972
  %s975 = scalar_lea.vmem [#allocation3], 16
  %976 = vst.msk [vmem:[%s975] sm:$0xff] %vm171, %v973
  %s977 = scalar_lea.vmem [#allocation2], 40
  %v978 = vld [vmem:[%s977] sm:$0xff]
  %980 = vrot.lane.b32.xlu0 %v837, 64
  %v981 = vpop.permute.xlu0 %980
  %v982 = vsel %vm171, %v981, 0
  %984 = vmatpush.msra.mxu0 0.0
  %985 = vmatpush.msra.mxu0 0.0
  %986 = vmatpush.msra.mxu0 0.0
  %987 = vmatpush.msra.mxu0 0.0
  %988 = vmatpush.msra.mxu0 0.0
  %989 = vmatpush.msra.mxu0 0.0
  %990 = vmatpush.msra.mxu0 0.0
  %991 = vmatpush.msra.mxu0 0.0
  %992 = vmatpush.msra.mxu0 0.0
  %993 = vmatpush.msra.mxu0 0.0
  %994 = vmatpush.msra.mxu0 0.0
  %995 = vmatpush.msra.mxu0 0.0
  %996 = vmatpush.msra.mxu0 %v151
  %997 = vmatpush.msra.mxu0 %v150
  %998 = vmatpush.msra.mxu0 %v149
  %999 = vmatpush.msra.mxu0 %v148
  %1000 = vmatmul.f32.gmra.mxu0 %v982
  %v1001 = vpop.f32.mrf.mxu0
  %v1002 = vadd.f32 0.0, %v1001
  %1003 = vdwg.mxu0
  %v1004 = vadd.f32 %v978, %v1002
  %v1005 = vxor.u32 %v1004, 2147483648
  %v1006 = vmul.f32 %v1005, 1.442695
  %v1007 = vpow.pop %v1006
  %v1008 = vadd.f32 %v1007, 1.0
  %v1009 = vrcp.pop %v1008
  %v1010 = vmul.f32 %v1008, %v1009
  %v1011 = vsub.f32 1.0, %v1010
  %v1012 = vmul.f32 %v1009, %v1011
  %v1013 = vadd.f32 %v1009, %v1012
  %vm1014 = vweird.f32 %v1008
  %vm1015 = vweird.f32 %v1009
  %vm1016 = vmor %vm1014, %vm1015
  %v1017 = vsel %vm1016, %v1009, %v1013
  %v1018 = vand.u32 2147483647, %v1008
  %vm1019 = vcmp.eq.f32.partialorder %v1018, 8.507059e+37
  %v1020 = vand.u32 %v1008, 2147483648
  %v1021 = vor.u32 1.1754944e-38, %v1020
  %v1022 = vsel %vm1019, %v1021, %v1017
  %v1023 = vmul.f32 1.0, %v1022
  %v1024 = vtanh.pop %v1004
  %v1025 = vmul.f32 %v1023, %v831
  %1027 = vrot.lane.b32.xlu0 %v1024, 32
  %v1028 = vpop.permute.xlu0 %1027
  %v1030 = vmul.f32 %v1023, %v1028
  %1032 = vrot.lane.b32.xlu0 %v1030, 32
  %v1033 = vpop.permute.xlu0 %1032
  %v1035 = vadd.f32 %v1025, %v1033
  %v1036 = vtanh.pop %v1035
  %1038 = vrot.lane.b32.xlu0 %v1036, 32
  %v1039 = vpop.permute.xlu0 %1038
  %v1041 = vmul.f32 %v1023, %v1039
  %1044 = vrot.lane.b32.xlu0 %v903, 96
  %v1045 = vpop.permute.xlu0 %1044
  %v1047 = vsel %vm171, %v981, %v1045
  %v1049 = vsel %vm304, %v1047, 0
  %1051 = vmatpush.msra.mxu0 0.0
  %1052 = vmatpush.msra.mxu0 0.0
  %1053 = vmatpush.msra.mxu0 0.0
  %1054 = vmatpush.msra.mxu0 0.0
  %1055 = vmatpush.msra.mxu0 0.0
  %1056 = vmatpush.msra.mxu0 0.0
  %1057 = vmatpush.msra.mxu0 0.0
  %1058 = vmatpush.msra.mxu0 0.0
  %1059 = vmatpush.msra.mxu0 %v159
  %1060 = vmatpush.msra.mxu0 %v158
  %1061 = vmatpush.msra.mxu0 %v157
  %1062 = vmatpush.msra.mxu0 %v156
  %1063 = vmatpush.msra.mxu0 %v155
  %1064 = vmatpush.msra.mxu0 %v154
  %1065 = vmatpush.msra.mxu0 %v153
  %1066 = vmatpush.msra.mxu0 %v152
  %1067 = vmatmul.f32.gmra.mxu0 %v1049
  %v1068 = vpop.f32.mrf.mxu0
  %v1069 = vadd.f32 %v302, %v1068
  %1070 = vdwg.mxu0
  %v1071 = vxor.u32 %v1069, 2147483648
  %v1072 = vmul.f32 %v1071, 1.442695
  %v1073 = vpow.pop %v1072
  %v1074 = vadd.f32 %v1073, 1.0
  %v1075 = vrcp.pop %v1074
  %v1076 = vmul.f32 %v1074, %v1075
  %v1077 = vsub.f32 1.0, %v1076
  %v1078 = vmul.f32 %v1075, %v1077
  %v1079 = vadd.f32 %v1075, %v1078
  %vm1080 = vweird.f32 %v1074
  %vm1081 = vweird.f32 %v1075
  %vm1082 = vmor %vm1080, %vm1081
  %v1083 = vsel %vm1082, %v1075, %v1079
  %v1084 = vand.u32 2147483647, %v1074
  %vm1085 = vcmp.eq.f32.partialorder %v1084, 8.507059e+37
  %v1086 = vand.u32 %v1074, 2147483648
  %v1087 = vor.u32 1.1754944e-38, %v1086
  %v1088 = vsel %vm1085, %v1087, %v1083
  %v1089 = vmul.f32 1.0, %v1088
  %v1090 = vtanh.pop %v1069
  %v1091 = vmul.f32 %v1089, %v897
  %1093 = vrot.lane.b32.xlu0 %v1090, 32
  %v1094 = vpop.permute.xlu0 %1093
  %v1096 = vmul.f32 %v1089, %v1094
  %1098 = vrot.lane.b32.xlu0 %v1096, 32
  %v1099 = vpop.permute.xlu0 %1098
  %v1101 = vadd.f32 %v1091, %v1099
  %v1102 = vtanh.pop %v1101
  %1104 = vrot.lane.b32.xlu0 %v1102, 32
  %v1105 = vpop.permute.xlu0 %1104
  %v1107 = vmul.f32 %v1089, %v1105
  %1108 = vrot.lane.b32.xlu0 %v903, 64
  %v1109 = vpop.permute.xlu0 %1108
  %1111 = vrot.lane.b32.xlu0 %v970, 96
  %v1112 = vpop.permute.xlu0 %1111
  %v1114 = vsel %vm171, %v1109, %v1112
  %v1116 = vsel %vm304, %v1114, 0
  %1118 = vmatpush.msra.mxu0 0.0
  %1119 = vmatpush.msra.mxu0 0.0
  %1120 = vmatpush.msra.mxu0 0.0
  %1121 = vmatpush.msra.mxu0 0.0
  %1122 = vmatpush.msra.mxu0 0.0
  %1123 = vmatpush.msra.mxu0 0.0
  %1124 = vmatpush.msra.mxu0 0.0
  %1125 = vmatpush.msra.mxu0 0.0
  %1126 = vmatpush.msra.mxu0 %v167
  %1127 = vmatpush.msra.mxu0 %v166
  %1128 = vmatpush.msra.mxu0 %v165
  %1129 = vmatpush.msra.mxu0 %v164
  %1130 = vmatpush.msra.mxu0 %v163
  %1131 = vmatpush.msra.mxu0 %v162
  %1132 = vmatpush.msra.mxu0 %v161
  %1133 = vmatpush.msra.mxu0 %v160
  %1134 = vmatmul.f32.gmra.mxu0 %v1116
  %v1135 = vpop.f32.mrf.mxu0
  %v1136 = vadd.f32 %v502, %v1135
  %1137 = vdwg.mxu0
  %v1138 = vxor.u32 %v1136, 2147483648
  %v1139 = vmul.f32 %v1138, 1.442695
  %v1140 = vpow.pop %v1139
  %v1141 = vadd.f32 %v1140, 1.0
  %v1142 = vrcp.pop %v1141
  %v1143 = vmul.f32 %v1141, %v1142
  %v1144 = vsub.f32 1.0, %v1143
  %v1145 = vmul.f32 %v1142, %v1144
  %v1146 = vadd.f32 %v1142, %v1145
  %vm1147 = vweird.f32 %v1141
  %vm1148 = vweird.f32 %v1142
  %vm1149 = vmor %vm1147, %vm1148
  %v1150 = vsel %vm1149, %v1142, %v1146
  %v1151 = vand.u32 2147483647, %v1141
  %vm1152 = vcmp.eq.f32.partialorder %v1151, 8.507059e+37
  %v1153 = vand.u32 %v1141, 2147483648
  %v1154 = vor.u32 1.1754944e-38, %v1153
  %v1155 = vsel %vm1152, %v1154, %v1150
  %v1156 = vmul.f32 1.0, %v1155
  %v1157 = vtanh.pop %v1136
  %v1158 = vmul.f32 %v1156, %v964
  %1160 = vrot.lane.b32.xlu0 %v1157, 32
  %v1161 = vpop.permute.xlu0 %1160
  %v1163 = vmul.f32 %v1156, %v1161
  %1165 = vrot.lane.b32.xlu0 %v1163, 32
  %v1166 = vpop.permute.xlu0 %1165
  %v1168 = vadd.f32 %v1158, %v1166
  %v1169 = vtanh.pop %v1168
  %1171 = vrot.lane.b32.xlu0 %v1169, 32
  %v1172 = vpop.permute.xlu0 %1171
  %v1174 = vmul.f32 %v1156, %v1172
  %1176 = vrot.lane.b32.xlu0 %v1174, 64
  %v1177 = vpop.permute.xlu0 %1176
  %s1179 = scalar_lea.vmem [#allocation3], 24
  %1180 = vst.msk [vmem:[%s1179] sm:$0xff] %vm171, %v1177
  %s1181 = scalar_lea.vmem [#allocation2], 48
  %v1182 = vld [vmem:[%s1181] sm:$0xff]
  %1184 = vrot.lane.b32.xlu0 %v1041, 64
  %v1185 = vpop.permute.xlu0 %1184
  %v1186 = vsel %vm171, %v1185, 0
  %1188 = vmatpush.msra.mxu0 0.0
  %1189 = vmatpush.msra.mxu0 0.0
  %1190 = vmatpush.msra.mxu0 0.0
  %1191 = vmatpush.msra.mxu0 0.0
  %1192 = vmatpush.msra.mxu0 0.0
  %1193 = vmatpush.msra.mxu0 0.0
  %1194 = vmatpush.msra.mxu0 0.0
  %1195 = vmatpush.msra.mxu0 0.0
  %1196 = vmatpush.msra.mxu0 0.0
  %1197 = vmatpush.msra.mxu0 0.0
  %1198 = vmatpush.msra.mxu0 0.0
  %1199 = vmatpush.msra.mxu0 0.0
  %1200 = vmatpush.msra.mxu0 %v151
  %1201 = vmatpush.msra.mxu0 %v150
  %1202 = vmatpush.msra.mxu0 %v149
  %1203 = vmatpush.msra.mxu0 %v148
  %1204 = vmatmul.f32.gmra.mxu0 %v1186
  %v1205 = vpop.f32.mrf.mxu0
  %v1206 = vadd.f32 0.0, %v1205
  %1207 = vdwg.mxu0
  %v1208 = vadd.f32 %v1182, %v1206
  %v1209 = vxor.u32 %v1208, 2147483648
  %v1210 = vmul.f32 %v1209, 1.442695
  %v1211 = vpow.pop %v1210
  %v1212 = vadd.f32 %v1211, 1.0
  %v1213 = vrcp.pop %v1212
  %v1214 = vmul.f32 %v1212, %v1213
  %v1215 = vsub.f32 1.0, %v1214
  %v1216 = vmul.f32 %v1213, %v1215
  %v1217 = vadd.f32 %v1213, %v1216
  %vm1218 = vweird.f32 %v1212
  %vm1219 = vweird.f32 %v1213
  %vm1220 = vmor %vm1218, %vm1219
  %v1221 = vsel %vm1220, %v1213, %v1217
  %v1222 = vand.u32 2147483647, %v1212
  %vm1223 = vcmp.eq.f32.partialorder %v1222, 8.507059e+37
  %v1224 = vand.u32 %v1212, 2147483648
  %v1225 = vor.u32 1.1754944e-38, %v1224
  %v1226 = vsel %vm1223, %v1225, %v1221
  %v1227 = vmul.f32 1.0, %v1226
  %v1228 = vtanh.pop %v1208
  %v1229 = vmul.f32 %v1227, %v1035
  %1231 = vrot.lane.b32.xlu0 %v1228, 32
  %v1232 = vpop.permute.xlu0 %1231
  %v1234 = vmul.f32 %v1227, %v1232
  %1236 = vrot.lane.b32.xlu0 %v1234, 32
  %v1237 = vpop.permute.xlu0 %1236
  %v1239 = vadd.f32 %v1229, %v1237
  %v1240 = vtanh.pop %v1239
  %1242 = vrot.lane.b32.xlu0 %v1240, 32
  %v1243 = vpop.permute.xlu0 %1242
  %v1245 = vmul.f32 %v1227, %v1243
  %1248 = vrot.lane.b32.xlu0 %v1107, 96
  %v1249 = vpop.permute.xlu0 %1248
  %v1251 = vsel %vm171, %v1185, %v1249
  %v1253 = vsel %vm304, %v1251, 0
  %1255 = vmatpush.msra.mxu0 0.0
  %1256 = vmatpush.msra.mxu0 0.0
  %1257 = vmatpush.msra.mxu0 0.0
  %1258 = vmatpush.msra.mxu0 0.0
  %1259 = vmatpush.msra.mxu0 0.0
  %1260 = vmatpush.msra.mxu0 0.0
  %1261 = vmatpush.msra.mxu0 0.0
  %1262 = vmatpush.msra.mxu0 0.0
  %1263 = vmatpush.msra.mxu0 %v159
  %1264 = vmatpush.msra.mxu0 %v158
  %1265 = vmatpush.msra.mxu0 %v157
  %1266 = vmatpush.msra.mxu0 %v156
  %1267 = vmatpush.msra.mxu0 %v155
  %1268 = vmatpush.msra.mxu0 %v154
  %1269 = vmatpush.msra.mxu0 %v153
  %1270 = vmatpush.msra.mxu0 %v152
  %1271 = vmatmul.f32.gmra.mxu0 %v1253
  %v1272 = vpop.f32.mrf.mxu0
  %v1273 = vadd.f32 %v302, %v1272
  %1274 = vdwg.mxu0
  %v1275 = vxor.u32 %v1273, 2147483648
  %v1276 = vmul.f32 %v1275, 1.442695
  %v1277 = vpow.pop %v1276
  %v1278 = vadd.f32 %v1277, 1.0
  %v1279 = vrcp.pop %v1278
  %v1280 = vmul.f32 %v1278, %v1279
  %v1281 = vsub.f32 1.0, %v1280
  %v1282 = vmul.f32 %v1279, %v1281
  %v1283 = vadd.f32 %v1279, %v1282
  %vm1284 = vweird.f32 %v1278
  %vm1285 = vweird.f32 %v1279
  %vm1286 = vmor %vm1284, %vm1285
  %v1287 = vsel %vm1286, %v1279, %v1283
  %v1288 = vand.u32 2147483647, %v1278
  %vm1289 = vcmp.eq.f32.partialorder %v1288, 8.507059e+37
  %v1290 = vand.u32 %v1278, 2147483648
  %v1291 = vor.u32 1.1754944e-38, %v1290
  %v1292 = vsel %vm1289, %v1291, %v1287
  %v1293 = vmul.f32 1.0, %v1292
  %v1294 = vtanh.pop %v1273
  %v1295 = vmul.f32 %v1293, %v1101
  %1297 = vrot.lane.b32.xlu0 %v1294, 32
  %v1298 = vpop.permute.xlu0 %1297
  %v1300 = vmul.f32 %v1293, %v1298
  %1302 = vrot.lane.b32.xlu0 %v1300, 32
  %v1303 = vpop.permute.xlu0 %1302
  %v1305 = vadd.f32 %v1295, %v1303
  %v1306 = vtanh.pop %v1305
  %1308 = vrot.lane.b32.xlu0 %v1306, 32
  %v1309 = vpop.permute.xlu0 %1308
  %v1311 = vmul.f32 %v1293, %v1309
  %1312 = vrot.lane.b32.xlu0 %v1107, 64
  %v1313 = vpop.permute.xlu0 %1312
  %1315 = vrot.lane.b32.xlu0 %v1174, 96
  %v1316 = vpop.permute.xlu0 %1315
  %v1318 = vsel %vm171, %v1313, %v1316
  %v1320 = vsel %vm304, %v1318, 0
  %1322 = vmatpush.msra.mxu0 0.0
  %1323 = vmatpush.msra.mxu0 0.0
  %1324 = vmatpush.msra.mxu0 0.0
  %1325 = vmatpush.msra.mxu0 0.0
  %1326 = vmatpush.msra.mxu0 0.0
  %1327 = vmatpush.msra.mxu0 0.0
  %1328 = vmatpush.msra.mxu0 0.0
  %1329 = vmatpush.msra.mxu0 0.0
  %1330 = vmatpush.msra.mxu0 %v167
  %1331 = vmatpush.msra.mxu0 %v166
  %1332 = vmatpush.msra.mxu0 %v165
  %1333 = vmatpush.msra.mxu0 %v164
  %1334 = vmatpush.msra.mxu0 %v163
  %1335 = vmatpush.msra.mxu0 %v162
  %1336 = vmatpush.msra.mxu0 %v161
  %1337 = vmatpush.msra.mxu0 %v160
  %1338 = vmatmul.f32.gmra.mxu0 %v1320
  %v1339 = vpop.f32.mrf.mxu0
  %v1340 = vadd.f32 %v502, %v1339
  %1341 = vdwg.mxu0
  %v1342 = vxor.u32 %v1340, 2147483648
  %v1343 = vmul.f32 %v1342, 1.442695
  %v1344 = vpow.pop %v1343
  %v1345 = vadd.f32 %v1344, 1.0
  %v1346 = vrcp.pop %v1345
  %v1347 = vmul.f32 %v1345, %v1346
  %v1348 = vsub.f32 1.0, %v1347
  %v1349 = vmul.f32 %v1346, %v1348
  %v1350 = vadd.f32 %v1346, %v1349
  %vm1351 = vweird.f32 %v1345
  %vm1352 = vweird.f32 %v1346
  %vm1353 = vmor %vm1351, %vm1352
  %v1354 = vsel %vm1353, %v1346, %v1350
  %v1355 = vand.u32 2147483647, %v1345
  %vm1356 = vcmp.eq.f32.partialorder %v1355, 8.507059e+37
  %v1357 = vand.u32 %v1345, 2147483648
  %v1358 = vor.u32 1.1754944e-38, %v1357
  %v1359 = vsel %vm1356, %v1358, %v1354
  %v1360 = vmul.f32 1.0, %v1359
  %v1361 = vtanh.pop %v1340
  %v1362 = vmul.f32 %v1360, %v1168
  %1364 = vrot.lane.b32.xlu0 %v1361, 32
  %v1365 = vpop.permute.xlu0 %1364
  %v1367 = vmul.f32 %v1360, %v1365
  %1369 = vrot.lane.b32.xlu0 %v1367, 32
  %v1370 = vpop.permute.xlu0 %1369
  %v1372 = vadd.f32 %v1362, %v1370
  %v1373 = vtanh.pop %v1372
  %1375 = vrot.lane.b32.xlu0 %v1373, 32
  %v1376 = vpop.permute.xlu0 %1375
  %v1378 = vmul.f32 %v1360, %v1376
  %1380 = vrot.lane.b32.xlu0 %v1378, 64
  %v1381 = vpop.permute.xlu0 %1380
  %s1383 = scalar_lea.vmem [#allocation3], 32
  %1384 = vst.msk [vmem:[%s1383] sm:$0xff] %vm171, %v1381
  %s1385 = scalar_lea.vmem [#allocation2], 56
  %v1386 = vld [vmem:[%s1385] sm:$0xff]
  %1388 = vrot.lane.b32.xlu0 %v1245, 64
  %v1389 = vpop.permute.xlu0 %1388
  %v1390 = vsel %vm171, %v1389, 0
  %1392 = vmatpush.msra.mxu0 0.0
  %1393 = vmatpush.msra.mxu0 0.0
  %1394 = vmatpush.msra.mxu0 0.0
  %1395 = vmatpush.msra.mxu0 0.0
  %1396 = vmatpush.msra.mxu0 0.0
  %1397 = vmatpush.msra.mxu0 0.0
  %1398 = vmatpush.msra.mxu0 0.0
  %1399 = vmatpush.msra.mxu0 0.0
  %1400 = vmatpush.msra.mxu0 0.0
  %1401 = vmatpush.msra.mxu0 0.0
  %1402 = vmatpush.msra.mxu0 0.0
  %1403 = vmatpush.msra.mxu0 0.0
  %1404 = vmatpush.msra.mxu0 %v151
  %1405 = vmatpush.msra.mxu0 %v150
  %1406 = vmatpush.msra.mxu0 %v149
  %1407 = vmatpush.msra.mxu0 %v148
  %1408 = vmatmul.f32.gmra.mxu0 %v1390
  %v1409 = vpop.f32.mrf.mxu0
  %v1410 = vadd.f32 0.0, %v1409
  %1411 = vdwg.mxu0
  %v1412 = vadd.f32 %v1386, %v1410
  %v1413 = vxor.u32 %v1412, 2147483648
  %v1414 = vmul.f32 %v1413, 1.442695
  %v1415 = vpow.pop %v1414
  %v1416 = vadd.f32 %v1415, 1.0
  %v1417 = vrcp.pop %v1416
  %v1418 = vmul.f32 %v1416, %v1417
  %v1419 = vsub.f32 1.0, %v1418
  %v1420 = vmul.f32 %v1417, %v1419
  %v1421 = vadd.f32 %v1417, %v1420
  %vm1422 = vweird.f32 %v1416
  %vm1423 = vweird.f32 %v1417
  %vm1424 = vmor %vm1422, %vm1423
  %v1425 = vsel %vm1424, %v1417, %v1421
  %v1426 = vand.u32 2147483647, %v1416
  %vm1427 = vcmp.eq.f32.partialorder %v1426, 8.507059e+37
  %v1428 = vand.u32 %v1416, 2147483648
  %v1429 = vor.u32 1.1754944e-38, %v1428
  %v1430 = vsel %vm1427, %v1429, %v1425
  %v1431 = vmul.f32 1.0, %v1430
  %v1432 = vtanh.pop %v1412
  %v1433 = vmul.f32 %v1431, %v1239
  %1435 = vrot.lane.b32.xlu0 %v1432, 32
  %v1436 = vpop.permute.xlu0 %1435
  %v1438 = vmul.f32 %v1431, %v1436
  %1440 = vrot.lane.b32.xlu0 %v1438, 32
  %v1441 = vpop.permute.xlu0 %1440
  %v1443 = vadd.f32 %v1433, %v1441
  %v1444 = vtanh.pop %v1443
  %1446 = vrot.lane.b32.xlu0 %v1444, 32
  %v1447 = vpop.permute.xlu0 %1446
  %v1449 = vmul.f32 %v1431, %v1447
  %1452 = vrot.lane.b32.xlu0 %v1311, 96
  %v1453 = vpop.permute.xlu0 %1452
  %v1455 = vsel %vm171, %v1389, %v1453
  %v1457 = vsel %vm304, %v1455, 0
  %1459 = vmatpush.msra.mxu0 0.0
  %1460 = vmatpush.msra.mxu0 0.0
  %1461 = vmatpush.msra.mxu0 0.0
  %1462 = vmatpush.msra.mxu0 0.0
  %1463 = vmatpush.msra.mxu0 0.0
  %1464 = vmatpush.msra.mxu0 0.0
  %1465 = vmatpush.msra.mxu0 0.0
  %1466 = vmatpush.msra.mxu0 0.0
  %1467 = vmatpush.msra.mxu0 %v159
  %1468 = vmatpush.msra.mxu0 %v158
  %1469 = vmatpush.msra.mxu0 %v157
  %1470 = vmatpush.msra.mxu0 %v156
  %1471 = vmatpush.msra.mxu0 %v155
  %1472 = vmatpush.msra.mxu0 %v154
  %1473 = vmatpush.msra.mxu0 %v153
  %1474 = vmatpush.msra.mxu0 %v152
  %1475 = vmatmul.f32.gmra.mxu0 %v1457
  %v1476 = vpop.f32.mrf.mxu0
  %v1477 = vadd.f32 %v302, %v1476
  %1478 = vdwg.mxu0
  %v1479 = vxor.u32 %v1477, 2147483648
  %v1480 = vmul.f32 %v1479, 1.442695
  %v1481 = vpow.pop %v1480
  %v1482 = vadd.f32 %v1481, 1.0
  %v1483 = vrcp.pop %v1482
  %v1484 = vmul.f32 %v1482, %v1483
  %v1485 = vsub.f32 1.0, %v1484
  %v1486 = vmul.f32 %v1483, %v1485
  %v1487 = vadd.f32 %v1483, %v1486
  %vm1488 = vweird.f32 %v1482
  %vm1489 = vweird.f32 %v1483
  %vm1490 = vmor %vm1488, %vm1489
  %v1491 = vsel %vm1490, %v1483, %v1487
  %v1492 = vand.u32 2147483647, %v1482
  %vm1493 = vcmp.eq.f32.partialorder %v1492, 8.507059e+37
  %v1494 = vand.u32 %v1482, 2147483648
  %v1495 = vor.u32 1.1754944e-38, %v1494
  %v1496 = vsel %vm1493, %v1495, %v1491
  %v1497 = vmul.f32 1.0, %v1496
  %v1498 = vtanh.pop %v1477
  %v1499 = vmul.f32 %v1497, %v1305
  %1501 = vrot.lane.b32.xlu0 %v1498, 32
  %v1502 = vpop.permute.xlu0 %1501
  %v1504 = vmul.f32 %v1497, %v1502
  %1506 = vrot.lane.b32.xlu0 %v1504, 32
  %v1507 = vpop.permute.xlu0 %1506
  %v1509 = vadd.f32 %v1499, %v1507
  %v1510 = vtanh.pop %v1509
  %1512 = vrot.lane.b32.xlu0 %v1510, 32
  %v1513 = vpop.permute.xlu0 %1512
  %v1515 = vmul.f32 %v1497, %v1513
  %1516 = vrot.lane.b32.xlu0 %v1311, 64
  %v1517 = vpop.permute.xlu0 %1516
  %1519 = vrot.lane.b32.xlu0 %v1378, 96
  %v1520 = vpop.permute.xlu0 %1519
  %v1522 = vsel %vm171, %v1517, %v1520
  %v1524 = vsel %vm304, %v1522, 0
  %1526 = vmatpush.msra.mxu0 0.0
  %1527 = vmatpush.msra.mxu0 0.0
  %1528 = vmatpush.msra.mxu0 0.0
  %1529 = vmatpush.msra.mxu0 0.0
  %1530 = vmatpush.msra.mxu0 0.0
  %1531 = vmatpush.msra.mxu0 0.0
  %1532 = vmatpush.msra.mxu0 0.0
  %1533 = vmatpush.msra.mxu0 0.0
  %1534 = vmatpush.msra.mxu0 %v167
  %1535 = vmatpush.msra.mxu0 %v166
  %1536 = vmatpush.msra.mxu0 %v165
  %1537 = vmatpush.msra.mxu0 %v164
  %1538 = vmatpush.msra.mxu0 %v163
  %1539 = vmatpush.msra.mxu0 %v162
  %1540 = vmatpush.msra.mxu0 %v161
  %1541 = vmatpush.msra.mxu0 %v160
  %1542 = vmatmul.f32.gmra.mxu0 %v1524
  %v1543 = vpop.f32.mrf.mxu0
  %v1544 = vadd.f32 %v502, %v1543
  %1545 = vdwg.mxu0
  %v1546 = vxor.u32 %v1544, 2147483648
  %v1547 = vmul.f32 %v1546, 1.442695
  %v1548 = vpow.pop %v1547
  %v1549 = vadd.f32 %v1548, 1.0
  %v1550 = vrcp.pop %v1549
  %v1551 = vmul.f32 %v1549, %v1550
  %v1552 = vsub.f32 1.0, %v1551
  %v1553 = vmul.f32 %v1550, %v1552
  %v1554 = vadd.f32 %v1550, %v1553
  %vm1555 = vweird.f32 %v1549
  %vm1556 = vweird.f32 %v1550
  %vm1557 = vmor %vm1555, %vm1556
  %v1558 = vsel %vm1557, %v1550, %v1554
  %v1559 = vand.u32 2147483647, %v1549
  %vm1560 = vcmp.eq.f32.partialorder %v1559, 8.507059e+37
  %v1561 = vand.u32 %v1549, 2147483648
  %v1562 = vor.u32 1.1754944e-38, %v1561
  %v1563 = vsel %vm1560, %v1562, %v1558
  %v1564 = vmul.f32 1.0, %v1563
  %v1565 = vtanh.pop %v1544
  %v1566 = vmul.f32 %v1564, %v1372
  %1568 = vrot.lane.b32.xlu0 %v1565, 32
  %v1569 = vpop.permute.xlu0 %1568
  %v1571 = vmul.f32 %v1564, %v1569
  %1573 = vrot.lane.b32.xlu0 %v1571, 32
  %v1574 = vpop.permute.xlu0 %1573
  %v1576 = vadd.f32 %v1566, %v1574
  %v1577 = vtanh.pop %v1576
  %1579 = vrot.lane.b32.xlu0 %v1577, 32
  %v1580 = vpop.permute.xlu0 %1579
  %v1582 = vmul.f32 %v1564, %v1580
  %1584 = vrot.lane.b32.xlu0 %v1582, 64
  %v1585 = vpop.permute.xlu0 %1584
  %s1587 = scalar_lea.vmem [#allocation3], 40
  %1588 = vst.msk [vmem:[%s1587] sm:$0xff] %vm171, %v1585
  %1590 = vrot.lane.b32.xlu0 %v1449, 64
  %v1591 = vpop.permute.xlu0 %1590
  %1594 = vrot.lane.b32.xlu0 %v1515, 96
  %v1595 = vpop.permute.xlu0 %1594
  %v1597 = vsel %vm171, %v1591, %v1595
  %v1599 = vsel %vm304, %v1597, 0
  %1601 = vmatpush.msra.mxu0 0.0
  %1602 = vmatpush.msra.mxu0 0.0
  %1603 = vmatpush.msra.mxu0 0.0
  %1604 = vmatpush.msra.mxu0 0.0
  %1605 = vmatpush.msra.mxu0 0.0
  %1606 = vmatpush.msra.mxu0 0.0
  %1607 = vmatpush.msra.mxu0 0.0
  %1608 = vmatpush.msra.mxu0 0.0
  %1609 = vmatpush.msra.mxu0 %v159
  %1610 = vmatpush.msra.mxu0 %v158
  %1611 = vmatpush.msra.mxu0 %v157
  %1612 = vmatpush.msra.mxu0 %v156
  %1613 = vmatpush.msra.mxu0 %v155
  %1614 = vmatpush.msra.mxu0 %v154
  %1615 = vmatpush.msra.mxu0 %v153
  %1616 = vmatpush.msra.mxu0 %v152
  %1617 = vmatmul.f32.gmra.mxu0 %v1599
  %v1618 = vpop.f32.mrf.mxu0
  %v1619 = vadd.f32 %v302, %v1618
  %1620 = vdwg.mxu0
  %v1621 = vxor.u32 %v1619, 2147483648
  %v1622 = vmul.f32 %v1621, 1.442695
  %v1623 = vpow.pop %v1622
  %v1624 = vadd.f32 %v1623, 1.0
  %v1625 = vrcp.pop %v1624
  %v1626 = vmul.f32 %v1624, %v1625
  %v1627 = vsub.f32 1.0, %v1626
  %v1628 = vmul.f32 %v1625, %v1627
  %v1629 = vadd.f32 %v1625, %v1628
  %vm1630 = vweird.f32 %v1624
  %vm1631 = vweird.f32 %v1625
  %vm1632 = vmor %vm1630, %vm1631
  %v1633 = vsel %vm1632, %v1625, %v1629
  %v1634 = vand.u32 2147483647, %v1624
  %vm1635 = vcmp.eq.f32.partialorder %v1634, 8.507059e+37
  %v1636 = vand.u32 %v1624, 2147483648
  %v1637 = vor.u32 1.1754944e-38, %v1636
  %v1638 = vsel %vm1635, %v1637, %v1633
  %v1639 = vmul.f32 1.0, %v1638
  %v1640 = vtanh.pop %v1619
  %v1641 = vmul.f32 %v1639, %v1509
  %1643 = vrot.lane.b32.xlu0 %v1640, 32
  %v1644 = vpop.permute.xlu0 %1643
  %v1646 = vmul.f32 %v1639, %v1644
  %1648 = vrot.lane.b32.xlu0 %v1646, 32
  %v1649 = vpop.permute.xlu0 %1648
  %v1651 = vadd.f32 %v1641, %v1649
  %v1652 = vtanh.pop %v1651
  %1654 = vrot.lane.b32.xlu0 %v1652, 32
  %v1655 = vpop.permute.xlu0 %1654
  %v1657 = vmul.f32 %v1639, %v1655
  %1658 = vrot.lane.b32.xlu0 %v1515, 64
  %v1659 = vpop.permute.xlu0 %1658
  %1661 = vrot.lane.b32.xlu0 %v1582, 96
  %v1662 = vpop.permute.xlu0 %1661
  %v1664 = vsel %vm171, %v1659, %v1662
  %v1666 = vsel %vm304, %v1664, 0
  %1668 = vmatpush.msra.mxu0 0.0
  %1669 = vmatpush.msra.mxu0 0.0
  %1670 = vmatpush.msra.mxu0 0.0
  %1671 = vmatpush.msra.mxu0 0.0
  %1672 = vmatpush.msra.mxu0 0.0
  %1673 = vmatpush.msra.mxu0 0.0
  %1674 = vmatpush.msra.mxu0 0.0
  %1675 = vmatpush.msra.mxu0 0.0
  %1676 = vmatpush.msra.mxu0 %v167
  %1677 = vmatpush.msra.mxu0 %v166
  %1678 = vmatpush.msra.mxu0 %v165
  %1679 = vmatpush.msra.mxu0 %v164
  %1680 = vmatpush.msra.mxu0 %v163
  %1681 = vmatpush.msra.mxu0 %v162
  %1682 = vmatpush.msra.mxu0 %v161
  %1683 = vmatpush.msra.mxu0 %v160
  %1684 = vmatmul.f32.gmra.mxu0 %v1666
  %v1685 = vpop.f32.mrf.mxu0
  %v1686 = vadd.f32 %v502, %v1685
  %1687 = vdwg.mxu0
  %v1688 = vxor.u32 %v1686, 2147483648
  %v1689 = vmul.f32 %v1688, 1.442695
  %v1690 = vpow.pop %v1689
  %v1691 = vadd.f32 %v1690, 1.0
  %v1692 = vrcp.pop %v1691
  %v1693 = vmul.f32 %v1691, %v1692
  %v1694 = vsub.f32 1.0, %v1693
  %v1695 = vmul.f32 %v1692, %v1694
  %v1696 = vadd.f32 %v1692, %v1695
  %vm1697 = vweird.f32 %v1691
  %vm1698 = vweird.f32 %v1692
  %vm1699 = vmor %vm1697, %vm1698
  %v1700 = vsel %vm1699, %v1692, %v1696
  %v1701 = vand.u32 2147483647, %v1691
  %vm1702 = vcmp.eq.f32.partialorder %v1701, 8.507059e+37
  %v1703 = vand.u32 %v1691, 2147483648
  %v1704 = vor.u32 1.1754944e-38, %v1703
  %v1705 = vsel %vm1702, %v1704, %v1700
  %v1706 = vmul.f32 1.0, %v1705
  %v1707 = vtanh.pop %v1686
  %v1708 = vmul.f32 %v1706, %v1576
  %1710 = vrot.lane.b32.xlu0 %v1707, 32
  %v1711 = vpop.permute.xlu0 %1710
  %v1713 = vmul.f32 %v1706, %v1711
  %1715 = vrot.lane.b32.xlu0 %v1713, 32
  %v1716 = vpop.permute.xlu0 %1715
  %v1718 = vadd.f32 %v1708, %v1716
  %v1719 = vtanh.pop %v1718
  %1721 = vrot.lane.b32.xlu0 %v1719, 32
  %v1722 = vpop.permute.xlu0 %1721
  %v1724 = vmul.f32 %v1706, %v1722
  %1726 = vrot.lane.b32.xlu0 %v1724, 64
  %v1727 = vpop.permute.xlu0 %1726
  %s1729 = scalar_lea.vmem [#allocation3], 48
  %1730 = vst.msk [vmem:[%s1729] sm:$0xff] %vm171, %v1727
  %1732 = vrot.lane.b32.xlu0 %v1657, 64
  %v1733 = vpop.permute.xlu0 %1732
  %1735 = vrot.lane.b32.xlu0 %v1724, 96
  %v1736 = vpop.permute.xlu0 %1735
  %v1738 = vsel %vm171, %v1733, %v1736
  %v1740 = vsel %vm304, %v1738, 0
  %1742 = vmatpush.msra.mxu0 0.0
  %1743 = vmatpush.msra.mxu0 0.0
  %1744 = vmatpush.msra.mxu0 0.0
  %1745 = vmatpush.msra.mxu0 0.0
  %1746 = vmatpush.msra.mxu0 0.0
  %1747 = vmatpush.msra.mxu0 0.0
  %1748 = vmatpush.msra.mxu0 0.0
  %1749 = vmatpush.msra.mxu0 0.0
  %1750 = vmatpush.msra.mxu0 %v167
  %1751 = vmatpush.msra.mxu0 %v166
  %1752 = vmatpush.msra.mxu0 %v165
  %1753 = vmatpush.msra.mxu0 %v164
  %1754 = vmatpush.msra.mxu0 %v163
  %1755 = vmatpush.msra.mxu0 %v162
  %1756 = vmatpush.msra.mxu0 %v161
  %1757 = vmatpush.msra.mxu0 %v160
  %1758 = vmatmul.f32.gmra.mxu0 %v1740
  %v1759 = vpop.f32.mrf.mxu0
  %v1760 = vadd.f32 %v502, %v1759
  %1761 = vdwg.mxu0
  %v1762 = vxor.u32 %v1760, 2147483648
  %v1763 = vmul.f32 %v1762, 1.442695
  %v1764 = vpow.pop %v1763
  %v1765 = vadd.f32 %v1764, 1.0
  %v1766 = vrcp.pop %v1765
  %v1767 = vmul.f32 %v1765, %v1766
  %v1768 = vsub.f32 1.0, %v1767
  %v1769 = vmul.f32 %v1766, %v1768
  %v1770 = vadd.f32 %v1766, %v1769
  %vm1771 = vweird.f32 %v1765
  %vm1772 = vweird.f32 %v1766
  %vm1773 = vmor %vm1771, %vm1772
  %v1774 = vsel %vm1773, %v1766, %v1770
  %v1775 = vand.u32 2147483647, %v1765
  %vm1776 = vcmp.eq.f32.partialorder %v1775, 8.507059e+37
  %v1777 = vand.u32 %v1765, 2147483648
  %v1778 = vor.u32 1.1754944e-38, %v1777
  %v1779 = vsel %vm1776, %v1778, %v1774
  %v1780 = vmul.f32 1.0, %v1779
  %v1781 = vtanh.pop %v1760
  %v1782 = vmul.f32 %v1780, %v1718
  %1784 = vrot.lane.b32.xlu0 %v1781, 32
  %v1785 = vpop.permute.xlu0 %1784
  %v1787 = vmul.f32 %v1780, %v1785
  %1789 = vrot.lane.b32.xlu0 %v1787, 32
  %v1790 = vpop.permute.xlu0 %1789
  %v1792 = vadd.f32 %v1782, %v1790
  %v1793 = vtanh.pop %v1792
  %1795 = vrot.lane.b32.xlu0 %v1793, 32
  %v1796 = vpop.permute.xlu0 %1795
  %v1798 = vmul.f32 %v1780, %v1796
  %1800 = vrot.lane.b32.xlu0 %v1798, 64
  %v1801 = vpop.permute.xlu0 %1800
  %s1803 = scalar_lea.vmem [#allocation3], 56
  %1804 = vst.msk [vmem:[%s1803] sm:$0xff] %vm171, %v1801
  %v1805 = vld [vmem:[#allocation3] sm:$0xff]
  %v1806 = vld [vmem:[#allocation3 + $0x8] sm:$0xff]
  %v1807 = vld [vmem:[#allocation3 + $0x10] sm:$0xff]
  %v1808 = vld [vmem:[#allocation3 + $0x18] sm:$0xff]
  %v1809 = vld [vmem:[#allocation3 + $0x20] sm:$0xff]
  %v1810 = vld [vmem:[#allocation3 + $0x28] sm:$0xff]
  %v1811 = vld [vmem:[#allocation3 + $0x30] sm:$0xff]
  %v1812 = vld [vmem:[#allocation3 + $0x38] sm:$0xff]
  %v1813 = vld [vmem:[%s1] sm:$0xff]
  %v1814 = vld [vmem:[%s10] sm:$0xf]
  %v1815 = vld [vmem:[%s11] sm:$0x1]
  %v1817 = vperm.slane %v1815, 0
  %vm1819 = vcmask 31744
  %v1821 = vsel %vm1819, %v1813, 0
  %vm1823 = vcmask 1043456
  %v1825 = vsel %vm1823, %v1814, 0
  %1827 = vmatpush.msra.mxu0 0.0
  %1828 = vmatpush.msra.mxu0 0.0
  %1829 = vmatpush.msra.mxu0 0.0
  %1830 = vmatpush.msra.mxu0 0.0
  %1831 = vmatpush.msra.mxu0 0.0
  %1832 = vmatpush.msra.mxu0 0.0
  %1833 = vmatpush.msra.mxu0 0.0
  %1834 = vmatpush.msra.mxu0 0.0
  %1835 = vmatpush.msra.mxu0 0.0
  %1836 = vmatpush.msra.mxu0 0.0
  %1837 = vmatpush.msra.mxu0 0.0
  %1838 = vmatpush.msra.mxu0 0.0
  %1839 = vmatpush.msra.mxu0 0.0
  %1840 = vmatpush.msra.mxu0 0.0
  %1841 = vmatpush.msra.mxu0 0.0
  %1842 = vmatpush.msra.mxu0 %v1825
  %1843 = vmatmul.f32.gmra.mxu0 %v1821
  %v1844 = vpop.f32.mrf.mxu0
  %v1845 = vadd.f32 %v1817, %v1844
  %1846 = vdwg.mxu0
  %v1847 = vld [vmem:[%s9] sm:$0xff]
  %v1848 = vld [vmem:[%s9 + $0x8] sm:$0xff]
  %v1849 = vld [vmem:[%s9 + $0x10] sm:$0xff]
  %v1850 = vld [vmem:[%s9 + $0x18] sm:$0xff]
  %v1852 = vsel %vm171, %v1805, 0
  %v1855 = vsel %vm171, %v1806, 0
  %v1858 = vsel %vm171, %v1807, 0
  %v1861 = vsel %vm171, %v1808, 0
  %v1864 = vsel %vm171, %v1809, 0
  %v1867 = vsel %vm171, %v1810, 0
  %v1870 = vsel %vm171, %v1811, 0
  %v1873 = vsel %vm171, %v1812, 0
  %1875 = vmatpush.msra.mxu0 0.0
  %1876 = vmatpush.msra.mxu0 0.0
  %1877 = vmatpush.msra.mxu0 0.0
  %1878 = vmatpush.msra.mxu0 0.0
  %1879 = vmatpush.msra.mxu0 0.0
  %1880 = vmatpush.msra.mxu0 0.0
  %1881 = vmatpush.msra.mxu0 0.0
  %1882 = vmatpush.msra.mxu0 0.0
  %1883 = vmatpush.msra.mxu0 0.0
  %1884 = vmatpush.msra.mxu0 0.0
  %1885 = vmatpush.msra.mxu0 0.0
  %1886 = vmatpush.msra.mxu0 0.0
  %1887 = vmatpush.msra.mxu0 %v1850
  %1888 = vmatpush.msra.mxu0 %v1849
  %1889 = vmatpush.msra.mxu0 %v1848
  %1890 = vmatpush.msra.mxu0 %v1847
  %1891 = vmatmul.f32.gmra.mxu0 %v1852
  %v1892 = vpop.f32.mrf.mxu0
  %v1893 = vadd.f32 0.0, %v1892
  %1894 = vmatmul.f32.gmra.mxu0 %v1855
  %v1895 = vpop.f32.mrf.mxu0
  %v1896 = vadd.f32 0.0, %v1895
  %1897 = vmatmul.f32.gmra.mxu0 %v1858
  %v1898 = vpop.f32.mrf.mxu0
  %v1899 = vadd.f32 0.0, %v1898
  %1900 = vmatmul.f32.gmra.mxu0 %v1861
  %v1901 = vpop.f32.mrf.mxu0
  %v1902 = vadd.f32 0.0, %v1901
  %1903 = vmatmul.f32.gmra.mxu0 %v1864
  %v1904 = vpop.f32.mrf.mxu0
  %v1905 = vadd.f32 0.0, %v1904
  %1906 = vmatmul.f32.gmra.mxu0 %v1867
  %v1907 = vpop.f32.mrf.mxu0
  %v1908 = vadd.f32 0.0, %v1907
  %1909 = vmatmul.f32.gmra.mxu0 %v1870
  %v1910 = vpop.f32.mrf.mxu0
  %v1911 = vadd.f32 0.0, %v1910
  %1912 = vmatmul.f32.gmra.mxu0 %v1873
  %v1913 = vpop.f32.mrf.mxu0
  %v1914 = vadd.f32 0.0, %v1913
  %1915 = vdwg.mxu0
  %v1916 = vadd.f32 %v1893, %v1845
  %v1917 = vadd.f32 %v1896, %v1845
  %v1918 = vadd.f32 %v1899, %v1845
  %v1919 = vadd.f32 %v1902, %v1845
  %v1920 = vadd.f32 %v1905, %v1845
  %v1921 = vadd.f32 %v1908, %v1845
  %v1922 = vadd.f32 %v1911, %v1845
  %v1923 = vadd.f32 %v1914, %v1845
  %v1924 = vmax.f32 %v1916, 0.0
  %v1925 = vmax.f32 %v1917, 0.0
  %v1926 = vmax.f32 %v1918, 0.0
  %v1927 = vmax.f32 %v1919, 0.0
  %v1928 = vmax.f32 %v1920, 0.0
  %v1929 = vmax.f32 %v1921, 0.0
  %v1930 = vmax.f32 %v1922, 0.0
  %v1931 = vmax.f32 %v1923, 0.0
  %v1932 = vld [vmem:[%s12] sm:$0xff]
  %v1933 = vld [vmem:[%s12 + $0x8] sm:$0xff]
  %v1934 = vld [vmem:[%s12 + $0x10] sm:$0xff]
  %v1935 = vld [vmem:[%s12 + $0x18] sm:$0xff]
  %v1936 = vld [vmem:[%s13] sm:$0x1]
  %v1938 = vperm.slane %v1936, 0
  %v1941 = vsel %vm171, %v1924, 0
  %v1944 = vsel %vm171, %v1925, 0
  %v1947 = vsel %vm171, %v1926, 0
  %v1950 = vsel %vm171, %v1927, 0
  %v1953 = vsel %vm171, %v1928, 0
  %v1956 = vsel %vm171, %v1929, 0
  %v1959 = vsel %vm171, %v1930, 0
  %v1962 = vsel %vm171, %v1931, 0
  %1964 = vmatpush.msra.mxu0 0.0
  %1965 = vmatpush.msra.mxu0 0.0
  %1966 = vmatpush.msra.mxu0 0.0
  %1967 = vmatpush.msra.mxu0 0.0
  %1968 = vmatpush.msra.mxu0 0.0
  %1969 = vmatpush.msra.mxu0 0.0
  %1970 = vmatpush.msra.mxu0 0.0
  %1971 = vmatpush.msra.mxu0 0.0
  %1972 = vmatpush.msra.mxu0 0.0
  %1973 = vmatpush.msra.mxu0 0.0
  %1974 = vmatpush.msra.mxu0 0.0
  %1975 = vmatpush.msra.mxu0 0.0
  %1976 = vmatpush.msra.mxu0 %v1935
  %1977 = vmatpush.msra.mxu0 %v1934
  %1978 = vmatpush.msra.mxu0 %v1933
  %1979 = vmatpush.msra.mxu0 %v1932
  %1980 = vmatmul.f32.gmra.mxu0 %v1941
  %v1981 = vpop.f32.mrf.mxu0
  %v1982 = vadd.f32 %v1938, %v1981
  %1983 = vmatmul.f32.gmra.mxu0 %v1944
  %v1984 = vpop.f32.mrf.mxu0
  %v1985 = vadd.f32 %v1938, %v1984
  %1986 = vmatmul.f32.gmra.mxu0 %v1947
  %v1987 = vpop.f32.mrf.mxu0
  %v1988 = vadd.f32 %v1938, %v1987
  %1989 = vmatmul.f32.gmra.mxu0 %v1950
  %v1990 = vpop.f32.mrf.mxu0
  %v1991 = vadd.f32 %v1938, %v1990
  %1992 = vmatmul.f32.gmra.mxu0 %v1953
  %v1993 = vpop.f32.mrf.mxu0
  %v1994 = vadd.f32 %v1938, %v1993
  %1995 = vmatmul.f32.gmra.mxu0 %v1956
  %v1996 = vpop.f32.mrf.mxu0
  %v1997 = vadd.f32 %v1938, %v1996
  %1998 = vmatmul.f32.gmra.mxu0 %v1959
  %v1999 = vpop.f32.mrf.mxu0
  %v2000 = vadd.f32 %v1938, %v1999
  %2001 = vmatmul.f32.gmra.mxu0 %v1962
  %v2002 = vpop.f32.mrf.mxu0
  %v2003 = vadd.f32 %v1938, %v2002
  %2004 = vdwg.mxu0
  %v2005 = vmax.f32 %v1982, 0.0
  %v2006 = vmax.f32 %v1985, 0.0
  %v2007 = vmax.f32 %v1988, 0.0
  %v2008 = vmax.f32 %v1991, 0.0
  %v2009 = vmax.f32 %v1994, 0.0
  %v2010 = vmax.f32 %v1997, 0.0
  %v2011 = vmax.f32 %v2000, 0.0
  %v2012 = vmax.f32 %v2003, 0.0
  %v2013 = vld [vmem:[%s14] sm:$0xff]
  %v2014 = vld [vmem:[%s14 + $0x8] sm:$0xff]
  %v2015 = vld [vmem:[%s14 + $0x10] sm:$0xff]
  %v2016 = vld [vmem:[%s14 + $0x18] sm:$0xff]
  %v2017 = vld [vmem:[%s15] sm:$0x1]
  %v2019 = vperm.slane %v2017, 0
  %v2022 = vsel %vm171, %v2005, 0
  %v2025 = vsel %vm171, %v2006, 0
  %v2028 = vsel %vm171, %v2007, 0
  %v2031 = vsel %vm171, %v2008, 0
  %v2034 = vsel %vm171, %v2009, 0
  %v2037 = vsel %vm171, %v2010, 0
  %v2040 = vsel %vm171, %v2011, 0
  %v2043 = vsel %vm171, %v2012, 0
  %2045 = vmatpush.msra.mxu0 0.0
  %2046 = vmatpush.msra.mxu0 0.0
  %2047 = vmatpush.msra.mxu0 0.0
  %2048 = vmatpush.msra.mxu0 0.0
  %2049 = vmatpush.msra.mxu0 0.0
  %2050 = vmatpush.msra.mxu0 0.0
  %2051 = vmatpush.msra.mxu0 0.0
  %2052 = vmatpush.msra.mxu0 0.0
  %2053 = vmatpush.msra.mxu0 0.0
  %2054 = vmatpush.msra.mxu0 0.0
  %2055 = vmatpush.msra.mxu0 0.0
  %2056 = vmatpush.msra.mxu0 0.0
  %2057 = vmatpush.msra.mxu0 %v2016
  %2058 = vmatpush.msra.mxu0 %v2015
  %2059 = vmatpush.msra.mxu0 %v2014
  %2060 = vmatpush.msra.mxu0 %v2013
  %2061 = vmatmul.f32.gmra.mxu0 %v2022
  %v2062 = vpop.f32.mrf.mxu0
  %v2063 = vadd.f32 %v2019, %v2062
  %2064 = vmatmul.f32.gmra.mxu0 %v2025
  %v2065 = vpop.f32.mrf.mxu0
  %v2066 = vadd.f32 %v2019, %v2065
  %2067 = vmatmul.f32.gmra.mxu0 %v2028
  %v2068 = vpop.f32.mrf.mxu0
  %v2069 = vadd.f32 %v2019, %v2068
  %2070 = vmatmul.f32.gmra.mxu0 %v2031
  %v2071 = vpop.f32.mrf.mxu0
  %v2072 = vadd.f32 %v2019, %v2071
  %2073 = vmatmul.f32.gmra.mxu0 %v2034
  %v2074 = vpop.f32.mrf.mxu0
  %v2075 = vadd.f32 %v2019, %v2074
  %2076 = vmatmul.f32.gmra.mxu0 %v2037
  %v2077 = vpop.f32.mrf.mxu0
  %v2078 = vadd.f32 %v2019, %v2077
  %2079 = vmatmul.f32.gmra.mxu0 %v2040
  %v2080 = vpop.f32.mrf.mxu0
  %v2081 = vadd.f32 %v2019, %v2080
  %2082 = vmatmul.f32.gmra.mxu0 %v2043
  %v2083 = vpop.f32.mrf.mxu0
  %v2084 = vadd.f32 %v2019, %v2083
  %2085 = vdwg.mxu0
  %v2086 = vmax.f32 %v2063, 0.0
  %v2087 = vmax.f32 %v2066, 0.0
  %v2088 = vmax.f32 %v2069, 0.0
  %v2089 = vmax.f32 %v2072, 0.0
  %v2090 = vmax.f32 %v2075, 0.0
  %v2091 = vmax.f32 %v2078, 0.0
  %v2092 = vmax.f32 %v2081, 0.0
  %v2093 = vmax.f32 %v2084, 0.0
  %v2094 = vld [vmem:[%s16] sm:$0x1]
  %v2096 = vperm.slane %v2094, 0
  %v2098 = vmul.f32 %v2086, %v2096
  %v2099 = vmul.f32 %v2087, %v2096
  %v2100 = vmul.f32 %v2088, %v2096
  %v2101 = vmul.f32 %v2089, %v2096
  %v2102 = vmul.f32 %v2090, %v2096
  %v2103 = vmul.f32 %v2091, %v2096
  %v2104 = vmul.f32 %v2092, %v2096
  %v2105 = vmul.f32 %v2093, %v2096
  %v2106 = vsel %vm171, %v2098, 0.0
  %2107 = vadd.xlane.f32.xlu0 %v2106
  %v2108 = vpop.xlane.xlu0 %2107
  %v2109 = vsel %vm171, %v2099, 0.0
  %2110 = vadd.xlane.f32.xlu0 %v2109
  %v2111 = vpop.xlane.xlu0 %2110
  %v2112 = vsel %vm171, %v2100, 0.0
  %2113 = vadd.xlane.f32.xlu0 %v2112
  %v2114 = vpop.xlane.xlu0 %2113
  %v2115 = vsel %vm171, %v2101, 0.0
  %2116 = vadd.xlane.f32.xlu0 %v2115
  %v2117 = vpop.xlane.xlu0 %2116
  %v2118 = vsel %vm171, %v2102, 0.0
  %2119 = vadd.xlane.f32.xlu0 %v2118
  %v2120 = vpop.xlane.xlu0 %2119
  %v2121 = vsel %vm171, %v2103, 0.0
  %2122 = vadd.xlane.f32.xlu0 %v2121
  %v2123 = vpop.xlane.xlu0 %2122
  %v2124 = vsel %vm171, %v2104, 0.0
  %2125 = vadd.xlane.f32.xlu0 %v2124
  %v2126 = vpop.xlane.xlu0 %2125
  %v2127 = vsel %vm171, %v2105, 0.0
  %2128 = vadd.xlane.f32.xlu0 %v2127
  %v2129 = vpop.xlane.xlu0 %2128
  %v2130 = vld [vmem:[#allocation4] sm:$0x1]
  %v2132 = vperm.slane %v2130, 0
  %2133 = vset.pattern.permute.xlu0 0
  %2134 = vperm.xlu0 %2133, %v2132
  %v2135 = vpop.permute.xlu0 %2134
  %v2137 = vadd.f32 %v2108, %v2135
  %v2138 = vadd.f32 %v2111, %v2135
  %v2139 = vadd.f32 %v2114, %v2135
  %v2140 = vadd.f32 %v2117, %v2135
  %v2141 = vadd.f32 %v2120, %v2135
  %v2142 = vadd.f32 %v2123, %v2135
  %v2143 = vadd.f32 %v2126, %v2135
  %v2144 = vadd.f32 %v2129, %v2135
  %v2145 = vxor.u32 %v2137, 2147483648
  %v2146 = vxor.u32 %v2138, 2147483648
  %v2147 = vxor.u32 %v2139, 2147483648
  %v2148 = vxor.u32 %v2140, 2147483648
  %v2149 = vxor.u32 %v2141, 2147483648
  %v2150 = vxor.u32 %v2142, 2147483648
  %v2151 = vxor.u32 %v2143, 2147483648
  %v2152 = vxor.u32 %v2144, 2147483648
  %v2153 = vmul.f32 %v2145, 1.442695
  %v2154 = vpow.pop %v2153
  %v2155 = vmul.f32 %v2146, 1.442695
  %v2156 = vpow.pop %v2155
  %v2157 = vmul.f32 %v2147, 1.442695
  %v2158 = vpow.pop %v2157
  %v2159 = vmul.f32 %v2148, 1.442695
  %v2160 = vpow.pop %v2159
  %v2161 = vmul.f32 %v2149, 1.442695
  %v2162 = vpow.pop %v2161
  %v2163 = vmul.f32 %v2150, 1.442695
  %v2164 = vpow.pop %v2163
  %v2165 = vmul.f32 %v2151, 1.442695
  %v2166 = vpow.pop %v2165
  %v2167 = vmul.f32 %v2152, 1.442695
  %v2168 = vpow.pop %v2167
  %v2169 = vadd.f32 %v2154, 1.0
  %v2170 = vadd.f32 %v2156, 1.0
  %v2171 = vadd.f32 %v2158, 1.0
  %v2172 = vadd.f32 %v2160, 1.0
  %v2173 = vadd.f32 %v2162, 1.0
  %v2174 = vadd.f32 %v2164, 1.0
  %v2175 = vadd.f32 %v2166, 1.0
  %v2176 = vadd.f32 %v2168, 1.0
  %v2177 = vrcp.pop %v2169
  %v2178 = vmul.f32 %v2169, %v2177
  %v2179 = vsub.f32 1.0, %v2178
  %v2180 = vmul.f32 %v2177, %v2179
  %v2181 = vadd.f32 %v2177, %v2180
  %vm2182 = vweird.f32 %v2169
  %vm2183 = vweird.f32 %v2177
  %vm2184 = vmor %vm2182, %vm2183
  %v2185 = vsel %vm2184, %v2177, %v2181
  %v2186 = vand.u32 2147483647, %v2169
  %vm2187 = vcmp.eq.f32.partialorder %v2186, 8.507059e+37
  %v2188 = vand.u32 %v2169, 2147483648
  %v2189 = vor.u32 1.1754944e-38, %v2188
  %v2190 = vsel %vm2187, %v2189, %v2185
  %v2191 = vmul.f32 1.0, %v2190
  %v2192 = vrcp.pop %v2170
  %v2193 = vmul.f32 %v2170, %v2192
  %v2194 = vsub.f32 1.0, %v2193
  %v2195 = vmul.f32 %v2192, %v2194
  %v2196 = vadd.f32 %v2192, %v2195
  %vm2197 = vweird.f32 %v2170
  %vm2198 = vweird.f32 %v2192
  %vm2199 = vmor %vm2197, %vm2198
  %v2200 = vsel %vm2199, %v2192, %v2196
  %v2201 = vand.u32 2147483647, %v2170
  %vm2202 = vcmp.eq.f32.partialorder %v2201, 8.507059e+37
  %v2203 = vand.u32 %v2170, 2147483648
  %v2204 = vor.u32 1.1754944e-38, %v2203
  %v2205 = vsel %vm2202, %v2204, %v2200
  %v2206 = vmul.f32 1.0, %v2205
  %v2207 = vrcp.pop %v2171
  %v2208 = vmul.f32 %v2171, %v2207
  %v2209 = vsub.f32 1.0, %v2208
  %v2210 = vmul.f32 %v2207, %v2209
  %v2211 = vadd.f32 %v2207, %v2210
  %vm2212 = vweird.f32 %v2171
  %vm2213 = vweird.f32 %v2207
  %vm2214 = vmor %vm2212, %vm2213
  %v2215 = vsel %vm2214, %v2207, %v2211
  %v2216 = vand.u32 2147483647, %v2171
  %vm2217 = vcmp.eq.f32.partialorder %v2216, 8.507059e+37
  %v2218 = vand.u32 %v2171, 2147483648
  %v2219 = vor.u32 1.1754944e-38, %v2218
  %v2220 = vsel %vm2217, %v2219, %v2215
  %v2221 = vmul.f32 1.0, %v2220
  %v2222 = vrcp.pop %v2172
  %v2223 = vmul.f32 %v2172, %v2222
  %v2224 = vsub.f32 1.0, %v2223
  %v2225 = vmul.f32 %v2222, %v2224
  %v2226 = vadd.f32 %v2222, %v2225
  %vm2227 = vweird.f32 %v2172
  %vm2228 = vweird.f32 %v2222
  %vm2229 = vmor %vm2227, %vm2228
  %v2230 = vsel %vm2229, %v2222, %v2226
  %v2231 = vand.u32 2147483647, %v2172
  %vm2232 = vcmp.eq.f32.partialorder %v2231, 8.507059e+37
  %v2233 = vand.u32 %v2172, 2147483648
  %v2234 = vor.u32 1.1754944e-38, %v2233
  %v2235 = vsel %vm2232, %v2234, %v2230
  %v2236 = vmul.f32 1.0, %v2235
  %v2237 = vrcp.pop %v2173
  %v2238 = vmul.f32 %v2173, %v2237
  %v2239 = vsub.f32 1.0, %v2238
  %v2240 = vmul.f32 %v2237, %v2239
  %v2241 = vadd.f32 %v2237, %v2240
  %vm2242 = vweird.f32 %v2173
  %vm2243 = vweird.f32 %v2237
  %vm2244 = vmor %vm2242, %vm2243
  %v2245 = vsel %vm2244, %v2237, %v2241
  %v2246 = vand.u32 2147483647, %v2173
  %vm2247 = vcmp.eq.f32.partialorder %v2246, 8.507059e+37
  %v2248 = vand.u32 %v2173, 2147483648
  %v2249 = vor.u32 1.1754944e-38, %v2248
  %v2250 = vsel %vm2247, %v2249, %v2245
  %v2251 = vmul.f32 1.0, %v2250
  %v2252 = vrcp.pop %v2174
  %v2253 = vmul.f32 %v2174, %v2252
  %v2254 = vsub.f32 1.0, %v2253
  %v2255 = vmul.f32 %v2252, %v2254
  %v2256 = vadd.f32 %v2252, %v2255
  %vm2257 = vweird.f32 %v2174
  %vm2258 = vweird.f32 %v2252
  %vm2259 = vmor %vm2257, %vm2258
  %v2260 = vsel %vm2259, %v2252, %v2256
  %v2261 = vand.u32 2147483647, %v2174
  %vm2262 = vcmp.eq.f32.partialorder %v2261, 8.507059e+37
  %v2263 = vand.u32 %v2174, 2147483648
  %v2264 = vor.u32 1.1754944e-38, %v2263
  %v2265 = vsel %vm2262, %v2264, %v2260
  %v2266 = vmul.f32 1.0, %v2265
  %v2267 = vrcp.pop %v2175
  %v2268 = vmul.f32 %v2175, %v2267
  %v2269 = vsub.f32 1.0, %v2268
  %v2270 = vmul.f32 %v2267, %v2269
  %v2271 = vadd.f32 %v2267, %v2270
  %vm2272 = vweird.f32 %v2175
  %vm2273 = vweird.f32 %v2267
  %vm2274 = vmor %vm2272, %vm2273
  %v2275 = vsel %vm2274, %v2267, %v2271
  %v2276 = vand.u32 2147483647, %v2175
  %vm2277 = vcmp.eq.f32.partialorder %v2276, 8.507059e+37
  %v2278 = vand.u32 %v2175, 2147483648
  %v2279 = vor.u32 1.1754944e-38, %v2278
  %v2280 = vsel %vm2277, %v2279, %v2275
  %v2281 = vmul.f32 1.0, %v2280
  %v2282 = vrcp.pop %v2176
  %v2283 = vmul.f32 %v2176, %v2282
  %v2284 = vsub.f32 1.0, %v2283
  %v2285 = vmul.f32 %v2282, %v2284
  %v2286 = vadd.f32 %v2282, %v2285
  %vm2287 = vweird.f32 %v2176
  %vm2288 = vweird.f32 %v2282
  %vm2289 = vmor %vm2287, %vm2288
  %v2290 = vsel %vm2289, %v2282, %v2286
  %v2291 = vand.u32 2147483647, %v2176
  %vm2292 = vcmp.eq.f32.partialorder %v2291, 8.507059e+37
  %v2293 = vand.u32 %v2176, 2147483648
  %v2294 = vor.u32 1.1754944e-38, %v2293
  %v2295 = vsel %vm2292, %v2294, %v2290
  %v2296 = vmul.f32 1.0, %v2295
  %v2305 = vlaneseq
  %v2306 = vand.u32 %v2305, 127
  %v2307 = vperm.slane %v2191, %v2306
  %v2308 = vperm.slane %v2206, %v2306
  %v2309 = vperm.slane %v2221, %v2306
  %v2310 = vperm.slane %v2236, %v2306
  %v2311 = vperm.slane %v2251, %v2306
  %v2312 = vperm.slane %v2266, %v2306
  %v2313 = vperm.slane %v2281, %v2306
  %v2314 = vperm.slane %v2296, %v2306
  %vm2315 = vcmask 1041409
  %v2316 = vsel %vm2315, %v2308, %v2307
  %vm2317 = vcmask 1042434
  %v2318 = vsel %vm2317, %v2309, %v2316
  %vm2319 = vcmask 1043459
  %v2320 = vsel %vm2319, %v2310, %v2318
  %vm2321 = vcmask 1044484
  %v2322 = vsel %vm2321, %v2311, %v2320
  %vm2323 = vcmask 1045509
  %v2324 = vsel %vm2323, %v2312, %v2322
  %vm2325 = vcmask 1046534
  %v2326 = vsel %vm2325, %v2313, %v2324
  %vm2327 = vcmask 1047559
  %v2328 = vsel %vm2327, %v2314, %v2326
  %2330 = vst.msk [vmem:[%s18] sm:$0xff] %vm74, %v2328
  // Predicated region
  $region74: #{baseline_forward.1} parent=0 // pred_check
    _
  $region75: #{baseline_forward.1} parent=0 // pred_check_branch
    %2332 = sbr.rel (0) target = $region77
  $region76: #{baseline_forward.1} parent=0 // pred_region
    _
  $region77: #{baseline_forward.1} parent=0 // pred_fallthru
    _
  // Predicated region
  $region78: #{baseline_forward.1} parent=0 // pred_check
    _
  $region79: #{baseline_forward.1} parent=0 // pred_check_branch
    %2334 = sbr.rel (0) target = $region81
  $region80: #{baseline_forward.1} parent=0 // pred_region
    _
  $region81: #{baseline_forward.1} parent=0 // pred_fallthru
    _

</llo_original>
